<compile_context>
chip_gen: v7x
topology: tpu7x:2x2x1
jax: 0.10.0
libtpu: 0.0.40
codegen_flags: <defaults>
</compile_context>

<pallas_src>
import functools

import jax
import jax.numpy as jnp
from jax.experimental import pallas as pl
from jax.experimental.pallas import tpu as pltpu


CFG = dict(
    image_size=32,
    patch=8,
    channels=3,
    hidden=32,
    heads=4,
    layers=2,
    mlp=64,
    eps=1e-5,
)

CLIP_MEAN = jnp.array([0.48145466, 0.4578275, 0.40821073], dtype=jnp.float32)
CLIP_STD = jnp.array([0.26862954, 0.26130258, 0.27777932], dtype=jnp.float32)


# ----------------------------------------------------------------------------
# Fused forward kernel: entire CLIP vision tower for ONE image per grid step.
# ----------------------------------------------------------------------------


def _clip_forward_kernel(
    patches_ref, pw_ref, pb_ref, cls_ref, posp_ref,
    pre_g_ref, pre_b_ref,
    qkv_w_ref, qkv_b_ref, o_w_ref, o_b_ref,
    ln1_g_ref, ln1_b_ref, ln2_g_ref, ln2_b_ref,
    fc1_w_ref, fc1_b_ref, fc2_w_ref, fc2_b_ref,
    post_g_ref, post_b_ref,
    out_ref,
    *, D, H, M, L, eps):
  f32 = jnp.float32
  bf16 = jnp.bfloat16
  Dh = D // H

  def ln(x, g_row, b_row):
    mu = jnp.mean(x, axis=-1, keepdims=True)
    var = jnp.mean(jnp.square(x - mu), axis=-1, keepdims=True)
    return (x - mu) * jax.lax.rsqrt(var + eps) * g_row + b_row

  # ---- patch embedding (processor rescale + mean/std folded into pw/pb) ----
  patches = patches_ref[0].astype(bf16)                              # (Np, C*P*P)
  pe = jnp.dot(patches, pw_ref[...], preferred_element_type=f32) + pb_ref[...]

  # ---- token assembly as a value: [CLS | patches + pos]  -> (S, D) ----
  tokens = jnp.concatenate([cls_ref[...], pe + posp_ref[...]], axis=0)

  # ---- pre-layernorm ----
  hidden = ln(tokens, pre_g_ref[...], pre_b_ref[...])                # (S, D) f32

  # ---- encoder layers (statically unrolled, layer-stacked weights in VMEM) ----
  for l in range(L):
    # --- self-attention block ---
    x = ln(hidden, ln1_g_ref[l:l + 1, :], ln1_b_ref[l:l + 1, :])
    qkv = (jnp.dot(x.astype(bf16), qkv_w_ref[l * D:(l + 1) * D, :],
                   preferred_element_type=f32)
           + qkv_b_ref[l:l + 1, :])                                  # (S, 3D) f32 value
    heads = []
    for h in range(H):
      c0 = h * Dh
      q = qkv[:, c0:c0 + Dh].astype(bf16)          # q already scaled by Dh**-0.5
      k = qkv[:, D + c0:D + c0 + Dh].astype(bf16)
      v = qkv[:, 2 * D + c0:2 * D + c0 + Dh].astype(bf16)
      # q . k^T via contracted RHS dim (no materialized transpose).
      s = jax.lax.dot_general(q, k, (((1,), (1,)), ((), ())),
                              preferred_element_type=f32)            # (S, S) f32
      m = jnp.max(s, axis=-1, keepdims=True)
      p = jnp.exp(s - m)
      p = p * pl.reciprocal(jnp.sum(p, axis=-1, keepdims=True), approx=True)
      heads.append(jnp.dot(p.astype(bf16), v, preferred_element_type=f32))
    attn_in = jnp.concatenate(heads, axis=-1)                        # (S, D) f32 value
    attn = (jnp.dot(attn_in.astype(bf16), o_w_ref[l * D:(l + 1) * D, :],
                    preferred_element_type=f32)
            + o_b_ref[l:l + 1, :])
    hidden = hidden + attn

    # --- MLP block (quick_gelu: x * sigmoid(1.702 x), f32 elementwise) ---
    x = ln(hidden, ln2_g_ref[l:l + 1, :], ln2_b_ref[l:l + 1, :])
    h1 = (jnp.dot(x.astype(bf16), fc1_w_ref[l * D:(l + 1) * D, :],
                  preferred_element_type=f32)
          + fc1_b_ref[l:l + 1, :])
    h1 = h1 * jax.nn.sigmoid(1.702 * h1)
    h2 = (jnp.dot(h1.astype(bf16), fc2_w_ref[l * M:(l + 1) * M, :],
                  preferred_element_type=f32)
          + fc2_b_ref[l:l + 1, :])
    hidden = hidden + h2

  # ---- pooler: post_layernorm(CLS token), single write to out_ref ----
  out_ref[0] = ln(hidden[0:1, :], post_g_ref[...], post_b_ref[...])


# ----------------------------------------------------------------------------
# Parameters (PyTorch-layout init + one-time repack into kernel layout)
# ----------------------------------------------------------------------------


def init_params(key, cfg):
  D, C, P, M = cfg["hidden"], cfg["channels"], cfg["patch"], cfg["mlp"]
  n_patches = (cfg["image_size"] // P) ** 2
  S = n_patches + 1

  def normal(k, shape, std=0.02):
    return std * jax.random.normal(k, shape, dtype=jnp.float32)

  keys = iter(jax.random.split(key, 8 + 12 * cfg["layers"]))
  params = {
      "patch_w": normal(next(keys), (D, C, P, P)),     # Conv2d weight (no bias)
      "class_emb": normal(next(keys), (D,)),
      "pos_emb": normal(next(keys), (S, D)),
      "pre_ln_g": jnp.ones((D,), jnp.float32),
      "pre_ln_b": jnp.zeros((D,), jnp.float32),
      "post_ln_g": jnp.ones((D,), jnp.float32),
      "post_ln_b": jnp.zeros((D,), jnp.float32),
      "layers": [],
  }
  for _ in range(cfg["layers"]):
    lp = {
        "ln1_g": jnp.ones((D,), jnp.float32), "ln1_b": jnp.zeros((D,), jnp.float32),
        "q_w": normal(next(keys), (D, D)), "q_b": jnp.zeros((D,), jnp.float32),
        "k_w": normal(next(keys), (D, D)), "k_b": jnp.zeros((D,), jnp.float32),
        "v_w": normal(next(keys), (D, D)), "v_b": jnp.zeros((D,), jnp.float32),
        "o_w": normal(next(keys), (D, D)), "o_b": jnp.zeros((D,), jnp.float32),
        "ln2_g": jnp.ones((D,), jnp.float32), "ln2_b": jnp.zeros((D,), jnp.float32),
        "fc1_w": normal(next(keys), (M, D)), "fc1_b": jnp.zeros((M,), jnp.float32),
        "fc2_w": normal(next(keys), (D, M)), "fc2_b": jnp.zeros((D,), jnp.float32),
    }
    params["layers"].append(lp)
  return params


def prepare_kernel_params(params, cfg):
  """One-time repack: pre-transposed, layer-stacked, QKV-fused weights; q-scale and
  image rescale/normalization folded in; MXU weights cast to bf16 (LN/bias stay f32)."""
  D, C, P, H = cfg["hidden"], cfg["channels"], cfg["patch"], cfg["heads"]
  Dh = D // H
  scale = Dh ** -0.5
  f32, bf16 = jnp.float32, jnp.bfloat16

  # Fold processor rescale(1/255) + (x - mean)/std into the patch-embedding conv:
  #   x_norm = x * a_c + c_c  ->  W' = W * a_c ,  b' = sum(W * c_c)
  a = (1.0 / (255.0 * CLIP_STD)).reshape(1, C, 1, 1)
  c = (-CLIP_MEAN / CLIP_STD).reshape(1, C, 1, 1)
  w = params["patch_w"]                                               # (D, C, P, P)
  pw = (w * a).reshape(D, C * P * P).T.astype(bf16)                   # (C*P*P, D) bf16
  pb = jnp.sum(w * c, axis=(1, 2, 3)).reshape(1, D).astype(f32)

  kp = {
      "pw": pw, "pb": pb,
      "cls": (params["class_emb"] + params["pos_emb"][0]).reshape(1, D).astype(f32),
      "pos_patch": params["pos_emb"][1:].astype(f32),                 # (Np, D)
      "pre_g": params["pre_ln_g"].reshape(1, D), "pre_b": params["pre_ln_b"].reshape(1, D),
      "post_g": params["post_ln_g"].reshape(1, D), "post_b": params["post_ln_b"].reshape(1, D),
  }

  qkv_w, qkv_b, o_w, o_b = [], [], [], []
  ln1_g, ln1_b, ln2_g, ln2_b = [], [], [], []
  fc1_w, fc1_b, fc2_w, fc2_b = [], [], [], []
  for lp in params["layers"]:
    # CLIP scales q (weights AND bias) by Dh**-0.5 right after q_proj -> fold it in.
    qkv_w.append(jnp.concatenate([lp["q_w"].T * scale, lp["k_w"].T, lp["v_w"].T], axis=1))
    qkv_b.append(jnp.concatenate([lp["q_b"] * scale, lp["k_b"], lp["v_b"]]))
    o_w.append(lp["o_w"].T); o_b.append(lp["o_b"])
    ln1_g.append(lp["ln1_g"]); ln1_b.append(lp["ln1_b"])
    ln2_g.append(lp["ln2_g"]); ln2_b.append(lp["ln2_b"])
    fc1_w.append(lp["fc1_w"].T); fc1_b.append(lp["fc1_b"])            # (D, M)
    fc2_w.append(lp["fc2_w"].T); fc2_b.append(lp["fc2_b"])            # (M, D)

  kp.update(
      qkv_w=jnp.concatenate(qkv_w, axis=0).astype(bf16),              # (L*D, 3D)
      qkv_b=jnp.stack(qkv_b).astype(f32),                             # (L, 3D)
      o_w=jnp.concatenate(o_w, axis=0).astype(bf16),                  # (L*D, D)
      o_b=jnp.stack(o_b).astype(f32),                                 # (L, D)
      ln1_g=jnp.stack(ln1_g), ln1_b=jnp.stack(ln1_b),
      ln2_g=jnp.stack(ln2_g), ln2_b=jnp.stack(ln2_b),
      fc1_w=jnp.concatenate(fc1_w, axis=0).astype(bf16),              # (L*D, M)
      fc1_b=jnp.stack(fc1_b).astype(f32),                             # (L, M)
      fc2_w=jnp.concatenate(fc2_w, axis=0).astype(bf16),              # (L*M, D)
      fc2_b=jnp.stack(fc2_b).astype(f32),                             # (L, D)
  )
  return kp


# ----------------------------------------------------------------------------
# Forward wrapper
# ----------------------------------------------------------------------------


def semantic_network_forward(images, kp, cfg):
  """images: (B, 3, H, W) float32 in [0, 255] (NCHW, PyTorch processor convention).
  Returns pooler_output: (B, hidden)."""
  B, C, Himg, Wimg = images.shape
  P, D, H, M, L = cfg["patch"], cfg["hidden"], cfg["heads"], cfg["mlp"], cfg["layers"]
  Hp, Wp = Himg // P, Wimg // P
  Np = Hp * Wp
  CPP = C * P * P

  # Patch extraction (Conv2d stride=P expressed as a matmul over flattened patches);
  # rescale + mean/std normalization is already folded into kp["pw"] / kp["pb"].
  patches = (images.reshape(B, C, Hp, P, Wp, P)
             .transpose(0, 2, 4, 1, 3, 5)
             .reshape(B, Np, CPP))

  weights = (kp["pw"], kp["pb"], kp["cls"], kp["pos_patch"],
             kp["pre_g"], kp["pre_b"],
             kp["qkv_w"], kp["qkv_b"], kp["o_w"], kp["o_b"],
             kp["ln1_g"], kp["ln1_b"], kp["ln2_g"], kp["ln2_b"],
             kp["fc1_w"], kp["fc1_b"], kp["fc2_w"], kp["fc2_b"],
             kp["post_g"], kp["post_b"])

  kernel = functools.partial(_clip_forward_kernel,
                             D=D, H=H, M=M, L=L, eps=cfg["eps"])

  # Batch grid: one image per step ("parallel" so v7x's 2 TensorCores split it);
  # weights get constant index_maps so they stay VMEM-resident across grid steps.
  in_specs = [pl.BlockSpec((1, Np, CPP), lambda b: (b, 0, 0))]
  in_specs += [pl.BlockSpec(w.shape, lambda b: (0, 0)) for w in weights]

  out = pl.pallas_call(
      kernel,
      grid=(B,),
      out_shape=jax.ShapeDtypeStruct((B, 1, D), jnp.float32),
      in_specs=in_specs,
      out_specs=pl.BlockSpec((1, 1, D), lambda b: (b, 0, 0)),
      compiler_params=pltpu.CompilerParams(dimension_semantics=("parallel",)),
  )(patches, *weights)
  return out.reshape(B, D)


# ----------------------------------------------------------------------------
# Main
# ----------------------------------------------------------------------------

if __name__ == "__main__":
  key = jax.random.PRNGKey(0)
  k_img, k_par = jax.random.split(key)

  B = 2
  images = jax.random.uniform(
      k_img, (B, CFG["channels"], CFG["image_size"], CFG["image_size"]),
      minval=0.0, maxval=255.0, dtype=jnp.float32)

  params = init_params(k_par, CFG)
  kparams = prepare_kernel_params(params, CFG)

  fwd = jax.jit(functools.partial(semantic_network_forward, cfg=CFG))
  out = jax.block_until_ready(fwd(images, kparams))

  assert out.shape == (B, CFG["hidden"]) and out.dtype == jnp.float32
  assert bool(jnp.all(jnp.isfinite(out)))
  print("KERNEL_OK")
</pallas_src>

<mosaic_0001>
module attributes {stable_mosaic.version = 11 : i64} {
  func.func @_clip_forward_kernel(%arg0: i32, %arg1: memref<1x16x192xf32, #tpu.memory_space<vmem>>, %arg2: memref<192x32xbf16, #tpu.memory_space<vmem>>, %arg3: memref<1x32xf32, #tpu.memory_space<vmem>>, %arg4: memref<1x32xf32, #tpu.memory_space<vmem>>, %arg5: memref<16x32xf32, #tpu.memory_space<vmem>>, %arg6: memref<1x32xf32, #tpu.memory_space<vmem>>, %arg7: memref<1x32xf32, #tpu.memory_space<vmem>>, %arg8: memref<64x96xbf16, #tpu.memory_space<vmem>>, %arg9: memref<2x96xf32, #tpu.memory_space<vmem>>, %arg10: memref<64x32xbf16, #tpu.memory_space<vmem>>, %arg11: memref<2x32xf32, #tpu.memory_space<vmem>>, %arg12: memref<2x32xf32, #tpu.memory_space<vmem>>, %arg13: memref<2x32xf32, #tpu.memory_space<vmem>>, %arg14: memref<2x32xf32, #tpu.memory_space<vmem>>, %arg15: memref<2x32xf32, #tpu.memory_space<vmem>>, %arg16: memref<64x64xbf16, #tpu.memory_space<vmem>>, %arg17: memref<2x64xf32, #tpu.memory_space<vmem>>, %arg18: memref<128x32xbf16, #tpu.memory_space<vmem>>, %arg19: memref<2x32xf32, #tpu.memory_space<vmem>>, %arg20: memref<1x32xf32, #tpu.memory_space<vmem>>, %arg21: memref<1x32xf32, #tpu.memory_space<vmem>>, %arg22: memref<1x1x32xf32, #tpu.memory_space<vmem>>) attributes {dimension_semantics = [#tpu.dimension_semantics<parallel>], iteration_bounds = array<i64: 2>, scalar_prefetch = 0 : i64, scratch_operands = 0 : i64, tpu.core_type = #tpu.core_type<tc>, window_params = [{transform_indices = @transform_0, window_bounds = array<i64: 1, 16, 192>}, {pipeline_mode = #tpu.pipeline_mode<synchronous>, transform_indices = @transform_1, window_bounds = array<i64: 192, 32>}, {pipeline_mode = #tpu.pipeline_mode<synchronous>, transform_indices = @transform_2, window_bounds = array<i64: 1, 32>}, {pipeline_mode = #tpu.pipeline_mode<synchronous>, transform_indices = @transform_3, window_bounds = array<i64: 1, 32>}, {pipeline_mode = #tpu.pipeline_mode<synchronous>, transform_indices = @transform_4, window_bounds = array<i64: 16, 32>}, {pipeline_mode = #tpu.pipeline_mode<synchronous>, transform_indices = @transform_5, window_bounds = array<i64: 1, 32>}, {pipeline_mode = #tpu.pipeline_mode<synchronous>, transform_indices = @transform_6, window_bounds = array<i64: 1, 32>}, {pipeline_mode = #tpu.pipeline_mode<synchronous>, transform_indices = @transform_7, window_bounds = array<i64: 64, 96>}, {pipeline_mode = #tpu.pipeline_mode<synchronous>, transform_indices = @transform_8, window_bounds = array<i64: 2, 96>}, {pipeline_mode = #tpu.pipeline_mode<synchronous>, transform_indices = @transform_9, window_bounds = array<i64: 64, 32>}, {pipeline_mode = #tpu.pipeline_mode<synchronous>, transform_indices = @transform_10, window_bounds = array<i64: 2, 32>}, {pipeline_mode = #tpu.pipeline_mode<synchronous>, transform_indices = @transform_11, window_bounds = array<i64: 2, 32>}, {pipeline_mode = #tpu.pipeline_mode<synchronous>, transform_indices = @transform_12, window_bounds = array<i64: 2, 32>}, {pipeline_mode = #tpu.pipeline_mode<synchronous>, transform_indices = @transform_13, window_bounds = array<i64: 2, 32>}, {pipeline_mode = #tpu.pipeline_mode<synchronous>, transform_indices = @transform_14, window_bounds = array<i64: 2, 32>}, {pipeline_mode = #tpu.pipeline_mode<synchronous>, transform_indices = @transform_15, window_bounds = array<i64: 64, 64>}, {pipeline_mode = #tpu.pipeline_mode<synchronous>, transform_indices = @transform_16, window_bounds = array<i64: 2, 64>}, {pipeline_mode = #tpu.pipeline_mode<synchronous>, transform_indices = @transform_17, window_bounds = array<i64: 128, 32>}, {pipeline_mode = #tpu.pipeline_mode<synchronous>, transform_indices = @transform_18, window_bounds = array<i64: 2, 32>}, {pipeline_mode = #tpu.pipeline_mode<synchronous>, transform_indices = @transform_19, window_bounds = array<i64: 1, 32>}, {pipeline_mode = #tpu.pipeline_mode<synchronous>, transform_indices = @transform_20, window_bounds = array<i64: 1, 32>}, {transform_indices = @transform_21, window_bounds = array<i64: 1, 1, 32>}]} {
    %c0 = arith.constant 0 : index
    %c0_0 = arith.constant 0 : index
    %c0_1 = arith.constant 0 : index
    %0 = vector.load %arg1[%c0, %c0_0, %c0_1] : memref<1x16x192xf32, #tpu.memory_space<vmem>>, vector<1x16x192xf32>
    %1 = vector.shape_cast %0 : vector<1x16x192xf32> to vector<16x192xf32>
    %2 = arith.truncf %1 : vector<16x192xf32> to vector<16x192xbf16>
    %c0_2 = arith.constant 0 : index
    %c0_3 = arith.constant 0 : index
    %3 = vector.load %arg2[%c0_2, %c0_3] : memref<192x32xbf16, #tpu.memory_space<vmem>>, vector<192x32xbf16>
    %cst = arith.constant dense<0.000000e+00> : vector<16x32xf32>
    %4 = tpu.matmul %2, %3, %cst {dimension_numbers = #tpu.dot_dimension_numbers<[1], [0], [0], [1], [0, 0, 1, 1], [], []>} : vector<16x192xbf16>, vector<192x32xbf16>, vector<16x32xf32> -> vector<16x32xf32>
    %c0_4 = arith.constant 0 : index
    %c0_5 = arith.constant 0 : index
    %5 = vector.load %arg3[%c0_4, %c0_5] : memref<1x32xf32, #tpu.memory_space<vmem>>, vector<1x32xf32>
    %6 = vector.broadcast %5 : vector<1x32xf32> to vector<16x32xf32>
    %7 = arith.addf %4, %6 : vector<16x32xf32>
    %c0_6 = arith.constant 0 : index
    %c0_7 = arith.constant 0 : index
    %8 = vector.load %arg4[%c0_6, %c0_7] : memref<1x32xf32, #tpu.memory_space<vmem>>, vector<1x32xf32>
    %c0_8 = arith.constant 0 : index
    %c0_9 = arith.constant 0 : index
    %9 = vector.load %arg5[%c0_8, %c0_9] : memref<16x32xf32, #tpu.memory_space<vmem>>, vector<16x32xf32>
    %10 = arith.addf %7, %9 : vector<16x32xf32>
    %11 = tpu.concatenate %8, %10 in 0 : vector<1x32xf32>, vector<16x32xf32> -> vector<17x32xf32>
    %c0_10 = arith.constant 0 : index
    %c0_11 = arith.constant 0 : index
    %12 = vector.load %arg6[%c0_10, %c0_11] : memref<1x32xf32, #tpu.memory_space<vmem>>, vector<1x32xf32>
    %c0_12 = arith.constant 0 : index
    %c0_13 = arith.constant 0 : index
    %13 = vector.load %arg7[%c0_12, %c0_13] : memref<1x32xf32, #tpu.memory_space<vmem>>, vector<1x32xf32>
    %cst_14 = arith.constant dense<0.000000e+00> : vector<17xf32>
    %14 = vector.multi_reduction <add>, %11, %cst_14 [1] : vector<17x32xf32> to vector<17xf32>
    %15 = vector.shape_cast %14 : vector<17xf32> to vector<17x1xf32>
    %cst_15 = arith.constant 3.200000e+01 : f32
    %16 = vector.broadcast %cst_15 : f32 to vector<17x1xf32>
    %17 = arith.divf %15, %16 : vector<17x1xf32>
    %18 = vector.broadcast %17 : vector<17x1xf32> to vector<17x32xf32>
    %19 = arith.subf %11, %18 : vector<17x32xf32>
    %20 = arith.mulf %19, %19 : vector<17x32xf32>
    %cst_16 = arith.constant dense<0.000000e+00> : vector<17xf32>
    %21 = vector.multi_reduction <add>, %20, %cst_16 [1] : vector<17x32xf32> to vector<17xf32>
    %22 = vector.shape_cast %21 : vector<17xf32> to vector<17x1xf32>
    %cst_17 = arith.constant 3.200000e+01 : f32
    %23 = vector.broadcast %cst_17 : f32 to vector<17x1xf32>
    %24 = arith.divf %22, %23 : vector<17x1xf32>
    %25 = vector.broadcast %17 : vector<17x1xf32> to vector<17x32xf32>
    %26 = arith.subf %11, %25 : vector<17x32xf32>
    %cst_18 = arith.constant 9.99999974E-6 : f32
    %27 = vector.broadcast %cst_18 : f32 to vector<17x1xf32>
    %28 = arith.addf %24, %27 : vector<17x1xf32>
    %29 = math.rsqrt %28 : vector<17x1xf32>
    %30 = vector.broadcast %29 : vector<17x1xf32> to vector<17x32xf32>
    %31 = arith.mulf %26, %30 : vector<17x32xf32>
    %32 = vector.broadcast %12 : vector<1x32xf32> to vector<17x32xf32>
    %33 = arith.mulf %31, %32 : vector<17x32xf32>
    %34 = vector.broadcast %13 : vector<1x32xf32> to vector<17x32xf32>
    %35 = arith.addf %33, %34 : vector<17x32xf32>
    %c0_19 = arith.constant 0 : index
    %c0_20 = arith.constant 0 : index
    %36 = vector.load %arg12[%c0_19, %c0_20] : memref<2x32xf32, #tpu.memory_space<vmem>>, vector<1x32xf32>
    %c0_21 = arith.constant 0 : index
    %c0_22 = arith.constant 0 : index
    %37 = vector.load %arg13[%c0_21, %c0_22] : memref<2x32xf32, #tpu.memory_space<vmem>>, vector<1x32xf32>
    %cst_23 = arith.constant dense<0.000000e+00> : vector<17xf32>
    %38 = vector.multi_reduction <add>, %35, %cst_23 [1] : vector<17x32xf32> to vector<17xf32>
    %39 = vector.shape_cast %38 : vector<17xf32> to vector<17x1xf32>
    %cst_24 = arith.constant 3.200000e+01 : f32
    %40 = vector.broadcast %cst_24 : f32 to vector<17x1xf32>
    %41 = arith.divf %39, %40 : vector<17x1xf32>
    %42 = vector.broadcast %41 : vector<17x1xf32> to vector<17x32xf32>
    %43 = arith.subf %35, %42 : vector<17x32xf32>
    %44 = arith.mulf %43, %43 : vector<17x32xf32>
    %cst_25 = arith.constant dense<0.000000e+00> : vector<17xf32>
    %45 = vector.multi_reduction <add>, %44, %cst_25 [1] : vector<17x32xf32> to vector<17xf32>
    %46 = vector.shape_cast %45 : vector<17xf32> to vector<17x1xf32>
    %cst_26 = arith.constant 3.200000e+01 : f32
    %47 = vector.broadcast %cst_26 : f32 to vector<17x1xf32>
    %48 = arith.divf %46, %47 : vector<17x1xf32>
    %49 = vector.broadcast %41 : vector<17x1xf32> to vector<17x32xf32>
    %50 = arith.subf %35, %49 : vector<17x32xf32>
    %cst_27 = arith.constant 9.99999974E-6 : f32
    %51 = vector.broadcast %cst_27 : f32 to vector<17x1xf32>
    %52 = arith.addf %48, %51 : vector<17x1xf32>
    %53 = math.rsqrt %52 : vector<17x1xf32>
    %54 = vector.broadcast %53 : vector<17x1xf32> to vector<17x32xf32>
    %55 = arith.mulf %50, %54 : vector<17x32xf32>
    %56 = vector.broadcast %36 : vector<1x32xf32> to vector<17x32xf32>
    %57 = arith.mulf %55, %56 : vector<17x32xf32>
    %58 = vector.broadcast %37 : vector<1x32xf32> to vector<17x32xf32>
    %59 = arith.addf %57, %58 : vector<17x32xf32>
    %60 = arith.truncf %59 : vector<17x32xf32> to vector<17x32xbf16>
    %c0_28 = arith.constant 0 : index
    %c0_29 = arith.constant 0 : index
    %61 = vector.load %arg8[%c0_28, %c0_29] : memref<64x96xbf16, #tpu.memory_space<vmem>>, vector<32x96xbf16>
    %cst_30 = arith.constant dense<0.000000e+00> : vector<17x96xf32>
    %62 = tpu.matmul %60, %61, %cst_30 {dimension_numbers = #tpu.dot_dimension_numbers<[1], [0], [0], [1], [0, 0, 1, 1], [], []>} : vector<17x32xbf16>, vector<32x96xbf16>, vector<17x96xf32> -> vector<17x96xf32>
    %c0_31 = arith.constant 0 : index
    %c0_32 = arith.constant 0 : index
    %63 = vector.load %arg9[%c0_31, %c0_32] : memref<2x96xf32, #tpu.memory_space<vmem>>, vector<1x96xf32>
    %64 = vector.broadcast %63 : vector<1x96xf32> to vector<17x96xf32>
    %65 = arith.addf %62, %64 : vector<17x96xf32>
    %66 = vector.extract_strided_slice %65 {offsets = [0, 0], sizes = [17, 8], strides = [1, 1]} : vector<17x96xf32> to vector<17x8xf32>
    %67 = arith.truncf %66 : vector<17x8xf32> to vector<17x8xbf16>
    %68 = vector.extract_strided_slice %65 {offsets = [0, 32], sizes = [17, 8], strides = [1, 1]} : vector<17x96xf32> to vector<17x8xf32>
    %69 = arith.truncf %68 : vector<17x8xf32> to vector<17x8xbf16>
    %70 = vector.extract_strided_slice %65 {offsets = [0, 64], sizes = [17, 8], strides = [1, 1]} : vector<17x96xf32> to vector<17x8xf32>
    %71 = arith.truncf %70 : vector<17x8xf32> to vector<17x8xbf16>
    %cst_33 = arith.constant dense<0.000000e+00> : vector<17x17xf32>
    %72 = tpu.matmul %67, %69, %cst_33 {dimension_numbers = #tpu.dot_dimension_numbers<[1], [1], [0], [0], [0, 0, 1, 0], [], []>} : vector<17x8xbf16>, vector<17x8xbf16>, vector<17x17xf32> -> vector<17x17xf32>
    %cst_34 = arith.constant dense<0xFF800000> : vector<17xf32>
    %73 = vector.multi_reduction <maximumf>, %72, %cst_34 [1] : vector<17x17xf32> to vector<17xf32>
    %74 = vector.shape_cast %73 : vector<17xf32> to vector<17x1xf32>
    %75 = vector.broadcast %74 : vector<17x1xf32> to vector<17x17xf32>
    %76 = arith.subf %72, %75 : vector<17x17xf32>
    %77 = math.exp %76 : vector<17x17xf32>
    %cst_35 = arith.constant dense<0.000000e+00> : vector<17xf32>
    %78 = vector.multi_reduction <add>, %77, %cst_35 [1] : vector<17x17xf32> to vector<17xf32>
    %79 = vector.shape_cast %78 : vector<17xf32> to vector<17x1xf32>
    %80 = tpu.reciprocal %79 {approx = true} : vector<17x1xf32> -> vector<17x1xf32>
    %81 = vector.broadcast %80 : vector<17x1xf32> to vector<17x17xf32>
    %82 = arith.mulf %77, %81 : vector<17x17xf32>
    %83 = arith.truncf %82 : vector<17x17xf32> to vector<17x17xbf16>
    %cst_36 = arith.constant dense<0.000000e+00> : vector<17x8xf32>
    %84 = tpu.matmul %83, %71, %cst_36 {dimension_numbers = #tpu.dot_dimension_numbers<[1], [0], [0], [1], [0, 0, 1, 1], [], []>} : vector<17x17xbf16>, vector<17x8xbf16>, vector<17x8xf32> -> vector<17x8xf32>
    %85 = vector.extract_strided_slice %65 {offsets = [0, 8], sizes = [17, 8], strides = [1, 1]} : vector<17x96xf32> to vector<17x8xf32>
    %86 = arith.truncf %85 : vector<17x8xf32> to vector<17x8xbf16>
    %87 = vector.extract_strided_slice %65 {offsets = [0, 40], sizes = [17, 8], strides = [1, 1]} : vector<17x96xf32> to vector<17x8xf32>
    %88 = arith.truncf %87 : vector<17x8xf32> to vector<17x8xbf16>
    %89 = vector.extract_strided_slice %65 {offsets = [0, 72], sizes = [17, 8], strides = [1, 1]} : vector<17x96xf32> to vector<17x8xf32>
    %90 = arith.truncf %89 : vector<17x8xf32> to vector<17x8xbf16>
    %cst_37 = arith.constant dense<0.000000e+00> : vector<17x17xf32>
    %91 = tpu.matmul %86, %88, %cst_37 {dimension_numbers = #tpu.dot_dimension_numbers<[1], [1], [0], [0], [0, 0, 1, 0], [], []>} : vector<17x8xbf16>, vector<17x8xbf16>, vector<17x17xf32> -> vector<17x17xf32>
    %cst_38 = arith.constant dense<0xFF800000> : vector<17xf32>
    %92 = vector.multi_reduction <maximumf>, %91, %cst_38 [1] : vector<17x17xf32> to vector<17xf32>
    %93 = vector.shape_cast %92 : vector<17xf32> to vector<17x1xf32>
    %94 = vector.broadcast %93 : vector<17x1xf32> to vector<17x17xf32>
    %95 = arith.subf %91, %94 : vector<17x17xf32>
    %96 = math.exp %95 : vector<17x17xf32>
    %cst_39 = arith.constant dense<0.000000e+00> : vector<17xf32>
    %97 = vector.multi_reduction <add>, %96, %cst_39 [1] : vector<17x17xf32> to vector<17xf32>
    %98 = vector.shape_cast %97 : vector<17xf32> to vector<17x1xf32>
    %99 = tpu.reciprocal %98 {approx = true} : vector<17x1xf32> -> vector<17x1xf32>
    %100 = vector.broadcast %99 : vector<17x1xf32> to vector<17x17xf32>
    %101 = arith.mulf %96, %100 : vector<17x17xf32>
    %102 = arith.truncf %101 : vector<17x17xf32> to vector<17x17xbf16>
    %cst_40 = arith.constant dense<0.000000e+00> : vector<17x8xf32>
    %103 = tpu.matmul %102, %90, %cst_40 {dimension_numbers = #tpu.dot_dimension_numbers<[1], [0], [0], [1], [0, 0, 1, 1], [], []>} : vector<17x17xbf16>, vector<17x8xbf16>, vector<17x8xf32> -> vector<17x8xf32>
    %104 = vector.extract_strided_slice %65 {offsets = [0, 16], sizes = [17, 8], strides = [1, 1]} : vector<17x96xf32> to vector<17x8xf32>
    %105 = arith.truncf %104 : vector<17x8xf32> to vector<17x8xbf16>
    %106 = vector.extract_strided_slice %65 {offsets = [0, 48], sizes = [17, 8], strides = [1, 1]} : vector<17x96xf32> to vector<17x8xf32>
    %107 = arith.truncf %106 : vector<17x8xf32> to vector<17x8xbf16>
    %108 = vector.extract_strided_slice %65 {offsets = [0, 80], sizes = [17, 8], strides = [1, 1]} : vector<17x96xf32> to vector<17x8xf32>
    %109 = arith.truncf %108 : vector<17x8xf32> to vector<17x8xbf16>
    %cst_41 = arith.constant dense<0.000000e+00> : vector<17x17xf32>
    %110 = tpu.matmul %105, %107, %cst_41 {dimension_numbers = #tpu.dot_dimension_numbers<[1], [1], [0], [0], [0, 0, 1, 0], [], []>} : vector<17x8xbf16>, vector<17x8xbf16>, vector<17x17xf32> -> vector<17x17xf32>
    %cst_42 = arith.constant dense<0xFF800000> : vector<17xf32>
    %111 = vector.multi_reduction <maximumf>, %110, %cst_42 [1] : vector<17x17xf32> to vector<17xf32>
    %112 = vector.shape_cast %111 : vector<17xf32> to vector<17x1xf32>
    %113 = vector.broadcast %112 : vector<17x1xf32> to vector<17x17xf32>
    %114 = arith.subf %110, %113 : vector<17x17xf32>
    %115 = math.exp %114 : vector<17x17xf32>
    %cst_43 = arith.constant dense<0.000000e+00> : vector<17xf32>
    %116 = vector.multi_reduction <add>, %115, %cst_43 [1] : vector<17x17xf32> to vector<17xf32>
    %117 = vector.shape_cast %116 : vector<17xf32> to vector<17x1xf32>
    %118 = tpu.reciprocal %117 {approx = true} : vector<17x1xf32> -> vector<17x1xf32>
    %119 = vector.broadcast %118 : vector<17x1xf32> to vector<17x17xf32>
    %120 = arith.mulf %115, %119 : vector<17x17xf32>
    %121 = arith.truncf %120 : vector<17x17xf32> to vector<17x17xbf16>
    %cst_44 = arith.constant dense<0.000000e+00> : vector<17x8xf32>
    %122 = tpu.matmul %121, %109, %cst_44 {dimension_numbers = #tpu.dot_dimension_numbers<[1], [0], [0], [1], [0, 0, 1, 1], [], []>} : vector<17x17xbf16>, vector<17x8xbf16>, vector<17x8xf32> -> vector<17x8xf32>
    %123 = vector.extract_strided_slice %65 {offsets = [0, 24], sizes = [17, 8], strides = [1, 1]} : vector<17x96xf32> to vector<17x8xf32>
    %124 = arith.truncf %123 : vector<17x8xf32> to vector<17x8xbf16>
    %125 = vector.extract_strided_slice %65 {offsets = [0, 56], sizes = [17, 8], strides = [1, 1]} : vector<17x96xf32> to vector<17x8xf32>
    %126 = arith.truncf %125 : vector<17x8xf32> to vector<17x8xbf16>
    %127 = vector.extract_strided_slice %65 {offsets = [0, 88], sizes = [17, 8], strides = [1, 1]} : vector<17x96xf32> to vector<17x8xf32>
    %128 = arith.truncf %127 : vector<17x8xf32> to vector<17x8xbf16>
    %cst_45 = arith.constant dense<0.000000e+00> : vector<17x17xf32>
    %129 = tpu.matmul %124, %126, %cst_45 {dimension_numbers = #tpu.dot_dimension_numbers<[1], [1], [0], [0], [0, 0, 1, 0], [], []>} : vector<17x8xbf16>, vector<17x8xbf16>, vector<17x17xf32> -> vector<17x17xf32>
    %cst_46 = arith.constant dense<0xFF800000> : vector<17xf32>
    %130 = vector.multi_reduction <maximumf>, %129, %cst_46 [1] : vector<17x17xf32> to vector<17xf32>
    %131 = vector.shape_cast %130 : vector<17xf32> to vector<17x1xf32>
    %132 = vector.broadcast %131 : vector<17x1xf32> to vector<17x17xf32>
    %133 = arith.subf %129, %132 : vector<17x17xf32>
    %134 = math.exp %133 : vector<17x17xf32>
    %cst_47 = arith.constant dense<0.000000e+00> : vector<17xf32>
    %135 = vector.multi_reduction <add>, %134, %cst_47 [1] : vector<17x17xf32> to vector<17xf32>
    %136 = vector.shape_cast %135 : vector<17xf32> to vector<17x1xf32>
    %137 = tpu.reciprocal %136 {approx = true} : vector<17x1xf32> -> vector<17x1xf32>
    %138 = vector.broadcast %137 : vector<17x1xf32> to vector<17x17xf32>
    %139 = arith.mulf %134, %138 : vector<17x17xf32>
    %140 = arith.truncf %139 : vector<17x17xf32> to vector<17x17xbf16>
    %cst_48 = arith.constant dense<0.000000e+00> : vector<17x8xf32>
    %141 = tpu.matmul %140, %128, %cst_48 {dimension_numbers = #tpu.dot_dimension_numbers<[1], [0], [0], [1], [0, 0, 1, 1], [], []>} : vector<17x17xbf16>, vector<17x8xbf16>, vector<17x8xf32> -> vector<17x8xf32>
    %142 = tpu.concatenate %84, %103, %122, %141 in 1 : vector<17x8xf32>, vector<17x8xf32>, vector<17x8xf32>, vector<17x8xf32> -> vector<17x32xf32>
    %143 = arith.truncf %142 : vector<17x32xf32> to vector<17x32xbf16>
    %c0_49 = arith.constant 0 : index
    %c0_50 = arith.constant 0 : index
    %144 = vector.load %arg10[%c0_49, %c0_50] : memref<64x32xbf16, #tpu.memory_space<vmem>>, vector<32x32xbf16>
    %cst_51 = arith.constant dense<0.000000e+00> : vector<17x32xf32>
    %145 = tpu.matmul %143, %144, %cst_51 {dimension_numbers = #tpu.dot_dimension_numbers<[1], [0], [0], [1], [0, 0, 1, 1], [], []>} : vector<17x32xbf16>, vector<32x32xbf16>, vector<17x32xf32> -> vector<17x32xf32>
    %c0_52 = arith.constant 0 : index
    %c0_53 = arith.constant 0 : index
    %146 = vector.load %arg11[%c0_52, %c0_53] : memref<2x32xf32, #tpu.memory_space<vmem>>, vector<1x32xf32>
    %147 = vector.broadcast %146 : vector<1x32xf32> to vector<17x32xf32>
    %148 = arith.addf %145, %147 : vector<17x32xf32>
    %149 = arith.addf %35, %148 : vector<17x32xf32>
    %c0_54 = arith.constant 0 : index
    %c0_55 = arith.constant 0 : index
    %150 = vector.load %arg14[%c0_54, %c0_55] : memref<2x32xf32, #tpu.memory_space<vmem>>, vector<1x32xf32>
    %c0_56 = arith.constant 0 : index
    %c0_57 = arith.constant 0 : index
    %151 = vector.load %arg15[%c0_56, %c0_57] : memref<2x32xf32, #tpu.memory_space<vmem>>, vector<1x32xf32>
    %cst_58 = arith.constant dense<0.000000e+00> : vector<17xf32>
    %152 = vector.multi_reduction <add>, %149, %cst_58 [1] : vector<17x32xf32> to vector<17xf32>
    %153 = vector.shape_cast %152 : vector<17xf32> to vector<17x1xf32>
    %cst_59 = arith.constant 3.200000e+01 : f32
    %154 = vector.broadcast %cst_59 : f32 to vector<17x1xf32>
    %155 = arith.divf %153, %154 : vector<17x1xf32>
    %156 = vector.broadcast %155 : vector<17x1xf32> to vector<17x32xf32>
    %157 = arith.subf %149, %156 : vector<17x32xf32>
    %158 = arith.mulf %157, %157 : vector<17x32xf32>
    %cst_60 = arith.constant dense<0.000000e+00> : vector<17xf32>
    %159 = vector.multi_reduction <add>, %158, %cst_60 [1] : vector<17x32xf32> to vector<17xf32>
    %160 = vector.shape_cast %159 : vector<17xf32> to vector<17x1xf32>
    %cst_61 = arith.constant 3.200000e+01 : f32
    %161 = vector.broadcast %cst_61 : f32 to vector<17x1xf32>
    %162 = arith.divf %160, %161 : vector<17x1xf32>
    %163 = vector.broadcast %155 : vector<17x1xf32> to vector<17x32xf32>
    %164 = arith.subf %149, %163 : vector<17x32xf32>
    %cst_62 = arith.constant 9.99999974E-6 : f32
    %165 = vector.broadcast %cst_62 : f32 to vector<17x1xf32>
    %166 = arith.addf %162, %165 : vector<17x1xf32>
    %167 = math.rsqrt %166 : vector<17x1xf32>
    %168 = vector.broadcast %167 : vector<17x1xf32> to vector<17x32xf32>
    %169 = arith.mulf %164, %168 : vector<17x32xf32>
    %170 = vector.broadcast %150 : vector<1x32xf32> to vector<17x32xf32>
    %171 = arith.mulf %169, %170 : vector<17x32xf32>
    %172 = vector.broadcast %151 : vector<1x32xf32> to vector<17x32xf32>
    %173 = arith.addf %171, %172 : vector<17x32xf32>
    %174 = arith.truncf %173 : vector<17x32xf32> to vector<17x32xbf16>
    %c0_63 = arith.constant 0 : index
    %c0_64 = arith.constant 0 : index
    %175 = vector.load %arg16[%c0_63, %c0_64] : memref<64x64xbf16, #tpu.memory_space<vmem>>, vector<32x64xbf16>
    %cst_65 = arith.constant dense<0.000000e+00> : vector<17x64xf32>
    %176 = tpu.matmul %174, %175, %cst_65 {dimension_numbers = #tpu.dot_dimension_numbers<[1], [0], [0], [1], [0, 0, 1, 1], [], []>} : vector<17x32xbf16>, vector<32x64xbf16>, vector<17x64xf32> -> vector<17x64xf32>
    %c0_66 = arith.constant 0 : index
    %c0_67 = arith.constant 0 : index
    %177 = vector.load %arg17[%c0_66, %c0_67] : memref<2x64xf32, #tpu.memory_space<vmem>>, vector<1x64xf32>
    %178 = vector.broadcast %177 : vector<1x64xf32> to vector<17x64xf32>
    %179 = arith.addf %176, %178 : vector<17x64xf32>
    %cst_68 = arith.constant 1.702000e+00 : f32
    %180 = vector.broadcast %cst_68 : f32 to vector<17x64xf32>
    %181 = arith.mulf %180, %179 : vector<17x64xf32>
    %182 = arith.negf %181 : vector<17x64xf32>
    %183 = math.exp %182 : vector<17x64xf32>
    %cst_69 = arith.constant 1.000000e+00 : f32
    %184 = vector.broadcast %cst_69 : f32 to vector<17x64xf32>
    %185 = arith.addf %184, %183 : vector<17x64xf32>
    %186 = arith.divf %184, %185 : vector<17x64xf32>
    %187 = arith.mulf %179, %186 : vector<17x64xf32>
    %188 = arith.truncf %187 : vector<17x64xf32> to vector<17x64xbf16>
    %c0_70 = arith.constant 0 : index
    %c0_71 = arith.constant 0 : index
    %189 = vector.load %arg18[%c0_70, %c0_71] : memref<128x32xbf16, #tpu.memory_space<vmem>>, vector<64x32xbf16>
    %cst_72 = arith.constant dense<0.000000e+00> : vector<17x32xf32>
    %190 = tpu.matmul %188, %189, %cst_72 {dimension_numbers = #tpu.dot_dimension_numbers<[1], [0], [0], [1], [0, 0, 1, 1], [], []>} : vector<17x64xbf16>, vector<64x32xbf16>, vector<17x32xf32> -> vector<17x32xf32>
    %c0_73 = arith.constant 0 : index
    %c0_74 = arith.constant 0 : index
    %191 = vector.load %arg19[%c0_73, %c0_74] : memref<2x32xf32, #tpu.memory_space<vmem>>, vector<1x32xf32>
    %192 = vector.broadcast %191 : vector<1x32xf32> to vector<17x32xf32>
    %193 = arith.addf %190, %192 : vector<17x32xf32>
    %194 = arith.addf %149, %193 : vector<17x32xf32>
    %c1 = arith.constant 1 : index
    %c0_75 = arith.constant 0 : index
    %195 = vector.load %arg12[%c1, %c0_75] : memref<2x32xf32, #tpu.memory_space<vmem>>, vector<1x32xf32>
    %c1_76 = arith.constant 1 : index
    %c0_77 = arith.constant 0 : index
    %196 = vector.load %arg13[%c1_76, %c0_77] : memref<2x32xf32, #tpu.memory_space<vmem>>, vector<1x32xf32>
    %cst_78 = arith.constant dense<0.000000e+00> : vector<17xf32>
    %197 = vector.multi_reduction <add>, %194, %cst_78 [1] : vector<17x32xf32> to vector<17xf32>
    %198 = vector.shape_cast %197 : vector<17xf32> to vector<17x1xf32>
    %cst_79 = arith.constant 3.200000e+01 : f32
    %199 = vector.broadcast %cst_79 : f32 to vector<17x1xf32>
    %200 = arith.divf %198, %199 : vector<17x1xf32>
    %201 = vector.broadcast %200 : vector<17x1xf32> to vector<17x32xf32>
    %202 = arith.subf %194, %201 : vector<17x32xf32>
    %203 = arith.mulf %202, %202 : vector<17x32xf32>
    %cst_80 = arith.constant dense<0.000000e+00> : vector<17xf32>
    %204 = vector.multi_reduction <add>, %203, %cst_80 [1] : vector<17x32xf32> to vector<17xf32>
    %205 = vector.shape_cast %204 : vector<17xf32> to vector<17x1xf32>
    %cst_81 = arith.constant 3.200000e+01 : f32
    %206 = vector.broadcast %cst_81 : f32 to vector<17x1xf32>
    %207 = arith.divf %205, %206 : vector<17x1xf32>
    %208 = vector.broadcast %200 : vector<17x1xf32> to vector<17x32xf32>
    %209 = arith.subf %194, %208 : vector<17x32xf32>
    %cst_82 = arith.constant 9.99999974E-6 : f32
    %210 = vector.broadcast %cst_82 : f32 to vector<17x1xf32>
    %211 = arith.addf %207, %210 : vector<17x1xf32>
    %212 = math.rsqrt %211 : vector<17x1xf32>
    %213 = vector.broadcast %212 : vector<17x1xf32> to vector<17x32xf32>
    %214 = arith.mulf %209, %213 : vector<17x32xf32>
    %215 = vector.broadcast %195 : vector<1x32xf32> to vector<17x32xf32>
    %216 = arith.mulf %214, %215 : vector<17x32xf32>
    %217 = vector.broadcast %196 : vector<1x32xf32> to vector<17x32xf32>
    %218 = arith.addf %216, %217 : vector<17x32xf32>
    %219 = arith.truncf %218 : vector<17x32xf32> to vector<17x32xbf16>
    %c32 = arith.constant 32 : index
    %c0_83 = arith.constant 0 : index
    %220 = vector.load %arg8[%c32, %c0_83] : memref<64x96xbf16, #tpu.memory_space<vmem>>, vector<32x96xbf16>
    %cst_84 = arith.constant dense<0.000000e+00> : vector<17x96xf32>
    %221 = tpu.matmul %219, %220, %cst_84 {dimension_numbers = #tpu.dot_dimension_numbers<[1], [0], [0], [1], [0, 0, 1, 1], [], []>} : vector<17x32xbf16>, vector<32x96xbf16>, vector<17x96xf32> -> vector<17x96xf32>
    %c1_85 = arith.constant 1 : index
    %c0_86 = arith.constant 0 : index
    %222 = vector.load %arg9[%c1_85, %c0_86] : memref<2x96xf32, #tpu.memory_space<vmem>>, vector<1x96xf32>
    %223 = vector.broadcast %222 : vector<1x96xf32> to vector<17x96xf32>
    %224 = arith.addf %221, %223 : vector<17x96xf32>
    %225 = vector.extract_strided_slice %224 {offsets = [0, 0], sizes = [17, 8], strides = [1, 1]} : vector<17x96xf32> to vector<17x8xf32>
    %226 = arith.truncf %225 : vector<17x8xf32> to vector<17x8xbf16>
    %227 = vector.extract_strided_slice %224 {offsets = [0, 32], sizes = [17, 8], strides = [1, 1]} : vector<17x96xf32> to vector<17x8xf32>
    %228 = arith.truncf %227 : vector<17x8xf32> to vector<17x8xbf16>
    %229 = vector.extract_strided_slice %224 {offsets = [0, 64], sizes = [17, 8], strides = [1, 1]} : vector<17x96xf32> to vector<17x8xf32>
    %230 = arith.truncf %229 : vector<17x8xf32> to vector<17x8xbf16>
    %cst_87 = arith.constant dense<0.000000e+00> : vector<17x17xf32>
    %231 = tpu.matmul %226, %228, %cst_87 {dimension_numbers = #tpu.dot_dimension_numbers<[1], [1], [0], [0], [0, 0, 1, 0], [], []>} : vector<17x8xbf16>, vector<17x8xbf16>, vector<17x17xf32> -> vector<17x17xf32>
    %cst_88 = arith.constant dense<0xFF800000> : vector<17xf32>
    %232 = vector.multi_reduction <maximumf>, %231, %cst_88 [1] : vector<17x17xf32> to vector<17xf32>
    %233 = vector.shape_cast %232 : vector<17xf32> to vector<17x1xf32>
    %234 = vector.broadcast %233 : vector<17x1xf32> to vector<17x17xf32>
    %235 = arith.subf %231, %234 : vector<17x17xf32>
    %236 = math.exp %235 : vector<17x17xf32>
    %cst_89 = arith.constant dense<0.000000e+00> : vector<17xf32>
    %237 = vector.multi_reduction <add>, %236, %cst_89 [1] : vector<17x17xf32> to vector<17xf32>
    %238 = vector.shape_cast %237 : vector<17xf32> to vector<17x1xf32>
    %239 = tpu.reciprocal %238 {approx = true} : vector<17x1xf32> -> vector<17x1xf32>
    %240 = vector.broadcast %239 : vector<17x1xf32> to vector<17x17xf32>
    %241 = arith.mulf %236, %240 : vector<17x17xf32>
    %242 = arith.truncf %241 : vector<17x17xf32> to vector<17x17xbf16>
    %cst_90 = arith.constant dense<0.000000e+00> : vector<17x8xf32>
    %243 = tpu.matmul %242, %230, %cst_90 {dimension_numbers = #tpu.dot_dimension_numbers<[1], [0], [0], [1], [0, 0, 1, 1], [], []>} : vector<17x17xbf16>, vector<17x8xbf16>, vector<17x8xf32> -> vector<17x8xf32>
    %244 = vector.extract_strided_slice %224 {offsets = [0, 8], sizes = [17, 8], strides = [1, 1]} : vector<17x96xf32> to vector<17x8xf32>
    %245 = arith.truncf %244 : vector<17x8xf32> to vector<17x8xbf16>
    %246 = vector.extract_strided_slice %224 {offsets = [0, 40], sizes = [17, 8], strides = [1, 1]} : vector<17x96xf32> to vector<17x8xf32>
    %247 = arith.truncf %246 : vector<17x8xf32> to vector<17x8xbf16>
    %248 = vector.extract_strided_slice %224 {offsets = [0, 72], sizes = [17, 8], strides = [1, 1]} : vector<17x96xf32> to vector<17x8xf32>
    %249 = arith.truncf %248 : vector<17x8xf32> to vector<17x8xbf16>
    %cst_91 = arith.constant dense<0.000000e+00> : vector<17x17xf32>
    %250 = tpu.matmul %245, %247, %cst_91 {dimension_numbers = #tpu.dot_dimension_numbers<[1], [1], [0], [0], [0, 0, 1, 0], [], []>} : vector<17x8xbf16>, vector<17x8xbf16>, vector<17x17xf32> -> vector<17x17xf32>
    %cst_92 = arith.constant dense<0xFF800000> : vector<17xf32>
    %251 = vector.multi_reduction <maximumf>, %250, %cst_92 [1] : vector<17x17xf32> to vector<17xf32>
    %252 = vector.shape_cast %251 : vector<17xf32> to vector<17x1xf32>
    %253 = vector.broadcast %252 : vector<17x1xf32> to vector<17x17xf32>
    %254 = arith.subf %250, %253 : vector<17x17xf32>
    %255 = math.exp %254 : vector<17x17xf32>
    %cst_93 = arith.constant dense<0.000000e+00> : vector<17xf32>
    %256 = vector.multi_reduction <add>, %255, %cst_93 [1] : vector<17x17xf32> to vector<17xf32>
    %257 = vector.shape_cast %256 : vector<17xf32> to vector<17x1xf32>
    %258 = tpu.reciprocal %257 {approx = true} : vector<17x1xf32> -> vector<17x1xf32>
    %259 = vector.broadcast %258 : vector<17x1xf32> to vector<17x17xf32>
    %260 = arith.mulf %255, %259 : vector<17x17xf32>
    %261 = arith.truncf %260 : vector<17x17xf32> to vector<17x17xbf16>
    %cst_94 = arith.constant dense<0.000000e+00> : vector<17x8xf32>
    %262 = tpu.matmul %261, %249, %cst_94 {dimension_numbers = #tpu.dot_dimension_numbers<[1], [0], [0], [1], [0, 0, 1, 1], [], []>} : vector<17x17xbf16>, vector<17x8xbf16>, vector<17x8xf32> -> vector<17x8xf32>
    %263 = vector.extract_strided_slice %224 {offsets = [0, 16], sizes = [17, 8], strides = [1, 1]} : vector<17x96xf32> to vector<17x8xf32>
    %264 = arith.truncf %263 : vector<17x8xf32> to vector<17x8xbf16>
    %265 = vector.extract_strided_slice %224 {offsets = [0, 48], sizes = [17, 8], strides = [1, 1]} : vector<17x96xf32> to vector<17x8xf32>
    %266 = arith.truncf %265 : vector<17x8xf32> to vector<17x8xbf16>
    %267 = vector.extract_strided_slice %224 {offsets = [0, 80], sizes = [17, 8], strides = [1, 1]} : vector<17x96xf32> to vector<17x8xf32>
    %268 = arith.truncf %267 : vector<17x8xf32> to vector<17x8xbf16>
    %cst_95 = arith.constant dense<0.000000e+00> : vector<17x17xf32>
    %269 = tpu.matmul %264, %266, %cst_95 {dimension_numbers = #tpu.dot_dimension_numbers<[1], [1], [0], [0], [0, 0, 1, 0], [], []>} : vector<17x8xbf16>, vector<17x8xbf16>, vector<17x17xf32> -> vector<17x17xf32>
    %cst_96 = arith.constant dense<0xFF800000> : vector<17xf32>
    %270 = vector.multi_reduction <maximumf>, %269, %cst_96 [1] : vector<17x17xf32> to vector<17xf32>
    %271 = vector.shape_cast %270 : vector<17xf32> to vector<17x1xf32>
    %272 = vector.broadcast %271 : vector<17x1xf32> to vector<17x17xf32>
    %273 = arith.subf %269, %272 : vector<17x17xf32>
    %274 = math.exp %273 : vector<17x17xf32>
    %cst_97 = arith.constant dense<0.000000e+00> : vector<17xf32>
    %275 = vector.multi_reduction <add>, %274, %cst_97 [1] : vector<17x17xf32> to vector<17xf32>
    %276 = vector.shape_cast %275 : vector<17xf32> to vector<17x1xf32>
    %277 = tpu.reciprocal %276 {approx = true} : vector<17x1xf32> -> vector<17x1xf32>
    %278 = vector.broadcast %277 : vector<17x1xf32> to vector<17x17xf32>
    %279 = arith.mulf %274, %278 : vector<17x17xf32>
    %280 = arith.truncf %279 : vector<17x17xf32> to vector<17x17xbf16>
    %cst_98 = arith.constant dense<0.000000e+00> : vector<17x8xf32>
    %281 = tpu.matmul %280, %268, %cst_98 {dimension_numbers = #tpu.dot_dimension_numbers<[1], [0], [0], [1], [0, 0, 1, 1], [], []>} : vector<17x17xbf16>, vector<17x8xbf16>, vector<17x8xf32> -> vector<17x8xf32>
    %282 = vector.extract_strided_slice %224 {offsets = [0, 24], sizes = [17, 8], strides = [1, 1]} : vector<17x96xf32> to vector<17x8xf32>
    %283 = arith.truncf %282 : vector<17x8xf32> to vector<17x8xbf16>
    %284 = vector.extract_strided_slice %224 {offsets = [0, 56], sizes = [17, 8], strides = [1, 1]} : vector<17x96xf32> to vector<17x8xf32>
    %285 = arith.truncf %284 : vector<17x8xf32> to vector<17x8xbf16>
    %286 = vector.extract_strided_slice %224 {offsets = [0, 88], sizes = [17, 8], strides = [1, 1]} : vector<17x96xf32> to vector<17x8xf32>
    %287 = arith.truncf %286 : vector<17x8xf32> to vector<17x8xbf16>
    %cst_99 = arith.constant dense<0.000000e+00> : vector<17x17xf32>
    %288 = tpu.matmul %283, %285, %cst_99 {dimension_numbers = #tpu.dot_dimension_numbers<[1], [1], [0], [0], [0, 0, 1, 0], [], []>} : vector<17x8xbf16>, vector<17x8xbf16>, vector<17x17xf32> -> vector<17x17xf32>
    %cst_100 = arith.constant dense<0xFF800000> : vector<17xf32>
    %289 = vector.multi_reduction <maximumf>, %288, %cst_100 [1] : vector<17x17xf32> to vector<17xf32>
    %290 = vector.shape_cast %289 : vector<17xf32> to vector<17x1xf32>
    %291 = vector.broadcast %290 : vector<17x1xf32> to vector<17x17xf32>
    %292 = arith.subf %288, %291 : vector<17x17xf32>
    %293 = math.exp %292 : vector<17x17xf32>
    %cst_101 = arith.constant dense<0.000000e+00> : vector<17xf32>
    %294 = vector.multi_reduction <add>, %293, %cst_101 [1] : vector<17x17xf32> to vector<17xf32>
    %295 = vector.shape_cast %294 : vector<17xf32> to vector<17x1xf32>
    %296 = tpu.reciprocal %295 {approx = true} : vector<17x1xf32> -> vector<17x1xf32>
    %297 = vector.broadcast %296 : vector<17x1xf32> to vector<17x17xf32>
    %298 = arith.mulf %293, %297 : vector<17x17xf32>
    %299 = arith.truncf %298 : vector<17x17xf32> to vector<17x17xbf16>
    %cst_102 = arith.constant dense<0.000000e+00> : vector<17x8xf32>
    %300 = tpu.matmul %299, %287, %cst_102 {dimension_numbers = #tpu.dot_dimension_numbers<[1], [0], [0], [1], [0, 0, 1, 1], [], []>} : vector<17x17xbf16>, vector<17x8xbf16>, vector<17x8xf32> -> vector<17x8xf32>
    %301 = tpu.concatenate %243, %262, %281, %300 in 1 : vector<17x8xf32>, vector<17x8xf32>, vector<17x8xf32>, vector<17x8xf32> -> vector<17x32xf32>
    %302 = arith.truncf %301 : vector<17x32xf32> to vector<17x32xbf16>
    %c32_103 = arith.constant 32 : index
    %c0_104 = arith.constant 0 : index
    %303 = vector.load %arg10[%c32_103, %c0_104] : memref<64x32xbf16, #tpu.memory_space<vmem>>, vector<32x32xbf16>
    %cst_105 = arith.constant dense<0.000000e+00> : vector<17x32xf32>
    %304 = tpu.matmul %302, %303, %cst_105 {dimension_numbers = #tpu.dot_dimension_numbers<[1], [0], [0], [1], [0, 0, 1, 1], [], []>} : vector<17x32xbf16>, vector<32x32xbf16>, vector<17x32xf32> -> vector<17x32xf32>
    %c1_106 = arith.constant 1 : index
    %c0_107 = arith.constant 0 : index
    %305 = vector.load %arg11[%c1_106, %c0_107] : memref<2x32xf32, #tpu.memory_space<vmem>>, vector<1x32xf32>
    %306 = vector.broadcast %305 : vector<1x32xf32> to vector<17x32xf32>
    %307 = arith.addf %304, %306 : vector<17x32xf32>
    %308 = arith.addf %194, %307 : vector<17x32xf32>
    %c1_108 = arith.constant 1 : index
    %c0_109 = arith.constant 0 : index
    %309 = vector.load %arg14[%c1_108, %c0_109] : memref<2x32xf32, #tpu.memory_space<vmem>>, vector<1x32xf32>
    %c1_110 = arith.constant 1 : index
    %c0_111 = arith.constant 0 : index
    %310 = vector.load %arg15[%c1_110, %c0_111] : memref<2x32xf32, #tpu.memory_space<vmem>>, vector<1x32xf32>
    %cst_112 = arith.constant dense<0.000000e+00> : vector<17xf32>
    %311 = vector.multi_reduction <add>, %308, %cst_112 [1] : vector<17x32xf32> to vector<17xf32>
    %312 = vector.shape_cast %311 : vector<17xf32> to vector<17x1xf32>
    %cst_113 = arith.constant 3.200000e+01 : f32
    %313 = vector.broadcast %cst_113 : f32 to vector<17x1xf32>
    %314 = arith.divf %312, %313 : vector<17x1xf32>
    %315 = vector.broadcast %314 : vector<17x1xf32> to vector<17x32xf32>
    %316 = arith.subf %308, %315 : vector<17x32xf32>
    %317 = arith.mulf %316, %316 : vector<17x32xf32>
    %cst_114 = arith.constant dense<0.000000e+00> : vector<17xf32>
    %318 = vector.multi_reduction <add>, %317, %cst_114 [1] : vector<17x32xf32> to vector<17xf32>
    %319 = vector.shape_cast %318 : vector<17xf32> to vector<17x1xf32>
    %cst_115 = arith.constant 3.200000e+01 : f32
    %320 = vector.broadcast %cst_115 : f32 to vector<17x1xf32>
    %321 = arith.divf %319, %320 : vector<17x1xf32>
    %322 = vector.broadcast %314 : vector<17x1xf32> to vector<17x32xf32>
    %323 = arith.subf %308, %322 : vector<17x32xf32>
    %cst_116 = arith.constant 9.99999974E-6 : f32
    %324 = vector.broadcast %cst_116 : f32 to vector<17x1xf32>
    %325 = arith.addf %321, %324 : vector<17x1xf32>
    %326 = math.rsqrt %325 : vector<17x1xf32>
    %327 = vector.broadcast %326 : vector<17x1xf32> to vector<17x32xf32>
    %328 = arith.mulf %323, %327 : vector<17x32xf32>
    %329 = vector.broadcast %309 : vector<1x32xf32> to vector<17x32xf32>
    %330 = arith.mulf %328, %329 : vector<17x32xf32>
    %331 = vector.broadcast %310 : vector<1x32xf32> to vector<17x32xf32>
    %332 = arith.addf %330, %331 : vector<17x32xf32>
    %333 = arith.truncf %332 : vector<17x32xf32> to vector<17x32xbf16>
    %c32_117 = arith.constant 32 : index
    %c0_118 = arith.constant 0 : index
    %334 = vector.load %arg16[%c32_117, %c0_118] : memref<64x64xbf16, #tpu.memory_space<vmem>>, vector<32x64xbf16>
    %cst_119 = arith.constant dense<0.000000e+00> : vector<17x64xf32>
    %335 = tpu.matmul %333, %334, %cst_119 {dimension_numbers = #tpu.dot_dimension_numbers<[1], [0], [0], [1], [0, 0, 1, 1], [], []>} : vector<17x32xbf16>, vector<32x64xbf16>, vector<17x64xf32> -> vector<17x64xf32>
    %c1_120 = arith.constant 1 : index
    %c0_121 = arith.constant 0 : index
    %336 = vector.load %arg17[%c1_120, %c0_121] : memref<2x64xf32, #tpu.memory_space<vmem>>, vector<1x64xf32>
    %337 = vector.broadcast %336 : vector<1x64xf32> to vector<17x64xf32>
    %338 = arith.addf %335, %337 : vector<17x64xf32>
    %cst_122 = arith.constant 1.702000e+00 : f32
    %339 = vector.broadcast %cst_122 : f32 to vector<17x64xf32>
    %340 = arith.mulf %339, %338 : vector<17x64xf32>
    %341 = arith.negf %340 : vector<17x64xf32>
    %342 = math.exp %341 : vector<17x64xf32>
    %cst_123 = arith.constant 1.000000e+00 : f32
    %343 = vector.broadcast %cst_123 : f32 to vector<17x64xf32>
    %344 = arith.addf %343, %342 : vector<17x64xf32>
    %345 = arith.divf %343, %344 : vector<17x64xf32>
    %346 = arith.mulf %338, %345 : vector<17x64xf32>
    %347 = arith.truncf %346 : vector<17x64xf32> to vector<17x64xbf16>
    %c64 = arith.constant 64 : index
    %c0_124 = arith.constant 0 : index
    %348 = vector.load %arg18[%c64, %c0_124] : memref<128x32xbf16, #tpu.memory_space<vmem>>, vector<64x32xbf16>
    %cst_125 = arith.constant dense<0.000000e+00> : vector<17x32xf32>
    %349 = tpu.matmul %347, %348, %cst_125 {dimension_numbers = #tpu.dot_dimension_numbers<[1], [0], [0], [1], [0, 0, 1, 1], [], []>} : vector<17x64xbf16>, vector<64x32xbf16>, vector<17x32xf32> -> vector<17x32xf32>
    %c1_126 = arith.constant 1 : index
    %c0_127 = arith.constant 0 : index
    %350 = vector.load %arg19[%c1_126, %c0_127] : memref<2x32xf32, #tpu.memory_space<vmem>>, vector<1x32xf32>
    %351 = vector.broadcast %350 : vector<1x32xf32> to vector<17x32xf32>
    %352 = arith.addf %349, %351 : vector<17x32xf32>
    %353 = arith.addf %308, %352 : vector<17x32xf32>
    %354 = vector.extract_strided_slice %353 {offsets = [0, 0], sizes = [1, 32], strides = [1, 1]} : vector<17x32xf32> to vector<1x32xf32>
    %c0_128 = arith.constant 0 : index
    %c0_129 = arith.constant 0 : index
    %355 = vector.load %arg20[%c0_128, %c0_129] : memref<1x32xf32, #tpu.memory_space<vmem>>, vector<1x32xf32>
    %c0_130 = arith.constant 0 : index
    %c0_131 = arith.constant 0 : index
    %356 = vector.load %arg21[%c0_130, %c0_131] : memref<1x32xf32, #tpu.memory_space<vmem>>, vector<1x32xf32>
    %cst_132 = arith.constant dense<0.000000e+00> : vector<1xf32>
    %357 = vector.multi_reduction <add>, %354, %cst_132 [1] : vector<1x32xf32> to vector<1xf32>
    %358 = vector.shape_cast %357 : vector<1xf32> to vector<1x1xf32>
    %cst_133 = arith.constant 3.200000e+01 : f32
    %359 = vector.broadcast %cst_133 : f32 to vector<1x1xf32>
    %360 = arith.divf %358, %359 : vector<1x1xf32>
    %361 = vector.broadcast %360 : vector<1x1xf32> to vector<1x32xf32>
    %362 = arith.subf %354, %361 : vector<1x32xf32>
    %363 = arith.mulf %362, %362 : vector<1x32xf32>
    %cst_134 = arith.constant dense<0.000000e+00> : vector<1xf32>
    %364 = vector.multi_reduction <add>, %363, %cst_134 [1] : vector<1x32xf32> to vector<1xf32>
    %365 = vector.shape_cast %364 : vector<1xf32> to vector<1x1xf32>
    %cst_135 = arith.constant 3.200000e+01 : f32
    %366 = vector.broadcast %cst_135 : f32 to vector<1x1xf32>
    %367 = arith.divf %365, %366 : vector<1x1xf32>
    %368 = vector.broadcast %360 : vector<1x1xf32> to vector<1x32xf32>
    %369 = arith.subf %354, %368 : vector<1x32xf32>
    %cst_136 = arith.constant 9.99999974E-6 : f32
    %370 = vector.broadcast %cst_136 : f32 to vector<1x1xf32>
    %371 = arith.addf %367, %370 : vector<1x1xf32>
    %372 = math.rsqrt %371 : vector<1x1xf32>
    %373 = vector.broadcast %372 : vector<1x1xf32> to vector<1x32xf32>
    %374 = arith.mulf %369, %373 : vector<1x32xf32>
    %375 = arith.mulf %374, %355 : vector<1x32xf32>
    %376 = arith.addf %375, %356 : vector<1x32xf32>
    %c0_137 = arith.constant 0 : index
    %c0_138 = arith.constant 0 : index
    %c0_139 = arith.constant 0 : index
    %377 = vector.load %arg22[%c0_137, %c0_138, %c0_139] : memref<1x1x32xf32, #tpu.memory_space<vmem>>, vector<1x1x32xf32>
    %378 = vector.shape_cast %377 : vector<1x1x32xf32> to vector<1x32xf32>
    %379 = vector.shape_cast %376 : vector<1x32xf32> to vector<1x1x32xf32>
    tpu.vector_store %arg22[%c0_137, %c0_138, %c0_139], %379 {strides = array<i32>} : memref<1x1x32xf32, #tpu.memory_space<vmem>>, vector<1x1x32xf32>,
    return
  }
  func.func @transform_0(%arg0: i32) -> (i32, i32, i32) {
    %c0_i32 = arith.constant 0 : i32
    %c0_i32_0 = arith.constant 0 : i32
    %c0_i32_1 = arith.constant 0 : i32
    return %arg0, %c0_i32, %c0_i32_0 : i32, i32, i32
  }
  func.func @transform_1(%arg0: i32) -> (i32, i32) {
    %c0_i32 = arith.constant 0 : i32
    %c0_i32_0 = arith.constant 0 : i32
    %c0_i32_1 = arith.constant 0 : i32
    return %c0_i32, %c0_i32_0 : i32, i32
  }
  func.func @transform_2(%arg0: i32) -> (i32, i32) {
    %c0_i32 = arith.constant 0 : i32
    %c0_i32_0 = arith.constant 0 : i32
    %c0_i32_1 = arith.constant 0 : i32
    return %c0_i32, %c0_i32_0 : i32, i32
  }
  func.func @transform_3(%arg0: i32) -> (i32, i32) {
    %c0_i32 = arith.constant 0 : i32
    %c0_i32_0 = arith.constant 0 : i32
    %c0_i32_1 = arith.constant 0 : i32
    return %c0_i32, %c0_i32_0 : i32, i32
  }
  func.func @transform_4(%arg0: i32) -> (i32, i32) {
    %c0_i32 = arith.constant 0 : i32
    %c0_i32_0 = arith.constant 0 : i32
    %c0_i32_1 = arith.constant 0 : i32
    return %c0_i32, %c0_i32_0 : i32, i32
  }
  func.func @transform_5(%arg0: i32) -> (i32, i32) {
    %c0_i32 = arith.constant 0 : i32
    %c0_i32_0 = arith.constant 0 : i32
    %c0_i32_1 = arith.constant 0 : i32
    return %c0_i32, %c0_i32_0 : i32, i32
  }
  func.func @transform_6(%arg0: i32) -> (i32, i32) {
    %c0_i32 = arith.constant 0 : i32
    %c0_i32_0 = arith.constant 0 : i32
    %c0_i32_1 = arith.constant 0 : i32
    return %c0_i32, %c0_i32_0 : i32, i32
  }
  func.func @transform_7(%arg0: i32) -> (i32, i32) {
    %c0_i32 = arith.constant 0 : i32
    %c0_i32_0 = arith.constant 0 : i32
    %c0_i32_1 = arith.constant 0 : i32
    return %c0_i32, %c0_i32_0 : i32, i32
  }
  func.func @transform_8(%arg0: i32) -> (i32, i32) {
    %c0_i32 = arith.constant 0 : i32
    %c0_i32_0 = arith.constant 0 : i32
    %c0_i32_1 = arith.constant 0 : i32
    return %c0_i32, %c0_i32_0 : i32, i32
  }
  func.func @transform_9(%arg0: i32) -> (i32, i32) {
    %c0_i32 = arith.constant 0 : i32
    %c0_i32_0 = arith.constant 0 : i32
    %c0_i32_1 = arith.constant 0 : i32
    return %c0_i32, %c0_i32_0 : i32, i32
  }
  func.func @transform_10(%arg0: i32) -> (i32, i32) {
    %c0_i32 = arith.constant 0 : i32
    %c0_i32_0 = arith.constant 0 : i32
    %c0_i32_1 = arith.constant 0 : i32
    return %c0_i32, %c0_i32_0 : i32, i32
  }
  func.func @transform_11(%arg0: i32) -> (i32, i32) {
    %c0_i32 = arith.constant 0 : i32
    %c0_i32_0 = arith.constant 0 : i32
    %c0_i32_1 = arith.constant 0 : i32
    return %c0_i32, %c0_i32_0 : i32, i32
  }
  func.func @transform_12(%arg0: i32) -> (i32, i32) {
    %c0_i32 = arith.constant 0 : i32
    %c0_i32_0 = arith.constant 0 : i32
    %c0_i32_1 = arith.constant 0 : i32
    return %c0_i32, %c0_i32_0 : i32, i32
  }
  func.func @transform_13(%arg0: i32) -> (i32, i32) {
    %c0_i32 = arith.constant 0 : i32
    %c0_i32_0 = arith.constant 0 : i32
    %c0_i32_1 = arith.constant 0 : i32
    return %c0_i32, %c0_i32_0 : i32, i32
  }
  func.func @transform_14(%arg0: i32) -> (i32, i32) {
    %c0_i32 = arith.constant 0 : i32
    %c0_i32_0 = arith.constant 0 : i32
    %c0_i32_1 = arith.constant 0 : i32
    return %c0_i32, %c0_i32_0 : i32, i32
  }
  func.func @transform_15(%arg0: i32) -> (i32, i32) {
    %c0_i32 = arith.constant 0 : i32
    %c0_i32_0 = arith.constant 0 : i32
    %c0_i32_1 = arith.constant 0 : i32
    return %c0_i32, %c0_i32_0 : i32, i32
  }
  func.func @transform_16(%arg0: i32) -> (i32, i32) {
    %c0_i32 = arith.constant 0 : i32
    %c0_i32_0 = arith.constant 0 : i32
    %c0_i32_1 = arith.constant 0 : i32
    return %c0_i32, %c0_i32_0 : i32, i32
  }
  func.func @transform_17(%arg0: i32) -> (i32, i32) {
    %c0_i32 = arith.constant 0 : i32
    %c0_i32_0 = arith.constant 0 : i32
    %c0_i32_1 = arith.constant 0 : i32
    return %c0_i32, %c0_i32_0 : i32, i32
  }
  func.func @transform_18(%arg0: i32) -> (i32, i32) {
    %c0_i32 = arith.constant 0 : i32
    %c0_i32_0 = arith.constant 0 : i32
    %c0_i32_1 = arith.constant 0 : i32
    return %c0_i32, %c0_i32_0 : i32, i32
  }
  func.func @transform_19(%arg0: i32) -> (i32, i32) {
    %c0_i32 = arith.constant 0 : i32
    %c0_i32_0 = arith.constant 0 : i32
    %c0_i32_1 = arith.constant 0 : i32
    return %c0_i32, %c0_i32_0 : i32, i32
  }
  func.func @transform_20(%arg0: i32) -> (i32, i32) {
    %c0_i32 = arith.constant 0 : i32
    %c0_i32_0 = arith.constant 0 : i32
    %c0_i32_1 = arith.constant 0 : i32
    return %c0_i32, %c0_i32_0 : i32, i32
  }
  func.func @transform_21(%arg0: i32) -> (i32, i32, i32) {
    %c0_i32 = arith.constant 0 : i32
    %c0_i32_0 = arith.constant 0 : i32
    %c0_i32_1 = arith.constant 0 : i32
    return %arg0, %c0_i32, %c0_i32_0 : i32, i32, i32
  }
}

</mosaic_0001>

<llo_original>
// kernel: semantic_network_forward.1
$region0: #{semantic_network_forward.1}
  #allocation0 [shape = 'u32[]', space=smem, size = 0x4, offset = 0x4, fixed_abs, tag = 'smem constant byte address 0x4 - core index']
  #allocation1 [shape = 'u32[144,128]{1,0:T(1,128)}', space=vmem, size = 0x12000, scoped, tag = 'internal scratch']
  %s0 = inlined_call_operand.vmem [shape: f32[2,16,192], index: 0, kind: input, shape index: {}]
  %s1 = inlined_call_operand.vmem [shape: bf16[192,32], index: 1, kind: input, shape index: {}]
  %s2 = inlined_call_operand.vmem [shape: f32[1,32], index: 2, kind: input, shape index: {}]
  %s3 = inlined_call_operand.vmem [shape: f32[1,32], index: 3, kind: input, shape index: {}]
  %s4 = inlined_call_operand.vmem [shape: f32[16,32], index: 4, kind: input, shape index: {}]
  %s5 = inlined_call_operand.vmem [shape: f32[1,32], index: 5, kind: input, shape index: {}]
  %s6 = inlined_call_operand.vmem [shape: f32[1,32], index: 6, kind: input, shape index: {}]
  %s7 = inlined_call_operand.vmem [shape: bf16[64,96], index: 7, kind: input, shape index: {}]
  %s8 = inlined_call_operand.vmem [shape: f32[2,96], index: 8, kind: input, shape index: {}]
  %s9 = inlined_call_operand.vmem [shape: bf16[64,32], index: 9, kind: input, shape index: {}]
  %s10 = inlined_call_operand.vmem [shape: f32[2,32], index: 10, kind: input, shape index: {}]
  %s11 = inlined_call_operand.vmem [shape: f32[2,32], index: 11, kind: input, shape index: {}]
  %s12 = inlined_call_operand.vmem [shape: f32[2,32], index: 12, kind: input, shape index: {}]
  %s13 = inlined_call_operand.vmem [shape: f32[2,32], index: 13, kind: input, shape index: {}]
  %s14 = inlined_call_operand.vmem [shape: f32[2,32], index: 14, kind: input, shape index: {}]
  %s15 = inlined_call_operand.vmem [shape: bf16[64,64], index: 15, kind: input, shape index: {}]
  %s16 = inlined_call_operand.vmem [shape: f32[2,64], index: 16, kind: input, shape index: {}]
  %s17 = inlined_call_operand.vmem [shape: bf16[128,32], index: 17, kind: input, shape index: {}]
  %s18 = inlined_call_operand.vmem [shape: f32[2,32], index: 18, kind: input, shape index: {}]
  %s19 = inlined_call_operand.vmem [shape: f32[1,32], index: 19, kind: input, shape index: {}]
  %s20 = inlined_call_operand.vmem [shape: f32[1,32], index: 20, kind: input, shape index: {}]
  %s21 = inlined_call_operand.hbm [shape: f32[2,1,32], index: 21, kind: output, shape index: {}]
  %s22 = sld [smem:[#allocation0]]
  $region117: #{semantic_network_forward.1} parent=0
    _
  %s24 = ssub.s32 1, %s22
  %s25 = scalar_select 0, %s24, %s22
  $region1: #{semantic_network_forward.1} parent=0
    #allocation2 [shape = 'u8[1024]{0}', space=vmem, size = 0x400, scoped, tag = 'output window, operand 0']
    #allocation3 [shape = 's32[2]{0}', space=sflag, size = 0x8, scoped, tag = 'scoped memory for semantic_network_forward.1']
    %26 = vsyncpa [#allocation3], 0
    %s27 = scalar_lea.sflag [#allocation3], 1
    %28 = vsyncpa %s27, 0
    loop: start=0, step=1, limit=4
    $region2: #{semantic_network_forward.1} parent=1 // loop_pre_header
      _
    $region3: #{semantic_network_forward.1} parent=1 // loop_header
      %s30 = sphi 0, %s34
      %p31 = scmp.ge.s32.totalorder %s30, 4
      %s40 = sphi 0, %s42
      %s43 = sphi 0, %s40
      %s44 = sphi 0, %s43
      %s60 = sphi 0, %s44
      %s64 = sphi 0, %s64
      %s66 = sphi 0, %s64
      %s67 = sphi 0, %s66
      %s81 = sphi 0, %s67
      %s85 = sphi 0, %s85
      %s87 = sphi 0, %s85
      %s88 = sphi 0, %s87
      %s102 = sphi 0, %s88
      %s106 = sphi 0, %s106
      %s108 = sphi 0, %s106
      %s109 = sphi 0, %s108
      %s123 = sphi 0, %s109
      %s127 = sphi 0, %s127
      %s129 = sphi 0, %s127
      %s130 = sphi 0, %s129
      %s144 = sphi 0, %s130
      %s148 = sphi 0, %s148
      %s150 = sphi 0, %s148
      %s151 = sphi 0, %s150
      %s165 = sphi 0, %s151
      %s169 = sphi 0, %s169
      %s171 = sphi 0, %s169
      %s172 = sphi 0, %s171
      %s186 = sphi 0, %s172
      %s190 = sphi 0, %s190
      %s192 = sphi 0, %s190
      %s193 = sphi 0, %s192
      %s207 = sphi 0, %s193
      %s211 = sphi 0, %s211
      %s213 = sphi 0, %s211
      %s214 = sphi 0, %s213
      %s228 = sphi 0, %s214
      %s232 = sphi 0, %s232
      %s234 = sphi 0, %s232
      %s235 = sphi 0, %s234
      %s249 = sphi 0, %s235
      %s253 = sphi 0, %s253
      %s255 = sphi 0, %s253
      %s256 = sphi 0, %s255
      %s270 = sphi 0, %s256
      %s274 = sphi 0, %s274
      %s276 = sphi 0, %s274
      %s277 = sphi 0, %s276
      %s291 = sphi 0, %s277
      %s295 = sphi 0, %s295
      %s297 = sphi 0, %s295
      %s298 = sphi 0, %s297
      %s312 = sphi 0, %s298
      %s316 = sphi 0, %s316
      %s318 = sphi 0, %s316
      %s319 = sphi 0, %s318
      %s333 = sphi 0, %s319
      %s337 = sphi 0, %s337
      %s339 = sphi 0, %s337
      %s340 = sphi 0, %s339
      %s354 = sphi 0, %s340
      %s358 = sphi 0, %s358
      %s360 = sphi 0, %s358
      %s361 = sphi 0, %s360
      %s375 = sphi 0, %s361
      %s379 = sphi 0, %s379
      %s381 = sphi 0, %s379
      %s382 = sphi 0, %s381
      %s396 = sphi 0, %s382
      %s400 = sphi 0, %s400
      %s402 = sphi 0, %s400
      %s403 = sphi 0, %s402
      %s417 = sphi 0, %s403
      %s421 = sphi 0, %s421
      %s423 = sphi 0, %s421
      %s424 = sphi 0, %s423
      %s438 = sphi 0, %s424
      %s442 = sphi 0, %s442
      %s444 = sphi 0, %s442
      %s445 = sphi 0, %s444
      %s459 = sphi 0, %s445
      %s463 = sphi 0, %s463
      %s465 = sphi 0, %s463
      %s466 = sphi 0, %s465
      %s480 = sphi 0, %s466
      %s486 = sphi 0, %s488
      %s489 = sphi 0, %s486
      %s490 = sphi 0, %s489
      %s506 = sphi 0, %s490
    $region4: #{semantic_network_forward.1} parent=1 // loop_header_branch
      %33 = sbr.rel (%p31) target = $region8
    $region5: #{semantic_network_forward.1} parent=1 // loop_body
      %s35 = ssub.s32 %s30, 1
      %s36 = ssub.s32 %s30, 2
      %s37 = sadd.s32 %s30, 1
      %s38 = ssub.s32 %s30, %s37
      %p39 = scmp.eq.s32.totalorder %s38, 0
      %s41 = sadd.s32 %s40, 1
      %s42 = scalar_select %p39, %s40, %s41
      %p45 = pneg %p39
      %p46 = scmp.eq.s32.totalorder %s30, 1
      %p47 = por %p45, %p46
      %p48 = scmp.ne.s32.totalorder %s40, %s43
      %p49 = scmp.eq.s32.totalorder %s30, 0
      %p50 = por %p48, %p49
      %p51 = scmp.ne.s32.totalorder %s40, %s43
      %p52 = scmp.eq.s32.totalorder %s35, 1
      %p53 = por %p51, %p52
      %p54 = scmp.ne.s32.totalorder %s43, %s44
      %p55 = scmp.eq.s32.totalorder %s35, 0
      %p56 = por %p54, %p55
      %p57 = scmp.ne.s32.totalorder %s43, %s44
      %p58 = scmp.eq.s32.totalorder %s36, 1
      %p59 = por %p57, %p58
      %p61 = scmp.ne.s32.totalorder %s44, %s60
      %p62 = scmp.eq.s32.totalorder %s36, 0
      %p63 = por %p61, %p62
      %s65 = sadd.s32 %s64, 1
      %p68 = scmp.eq.s32.totalorder %s30, 1
      %p69 = scmp.ne.s32.totalorder %s64, %s66
      %p70 = scmp.eq.s32.totalorder %s30, 0
      %p71 = por %p69, %p70
      %p72 = scmp.ne.s32.totalorder %s64, %s66
      %p73 = scmp.eq.s32.totalorder %s35, 1
      %p74 = por %p72, %p73
      %p75 = scmp.ne.s32.totalorder %s66, %s67
      %p76 = scmp.eq.s32.totalorder %s35, 0
      %p77 = por %p75, %p76
      %p78 = scmp.ne.s32.totalorder %s66, %s67
      %p79 = scmp.eq.s32.totalorder %s36, 1
      %p80 = por %p78, %p79
      %p82 = scmp.ne.s32.totalorder %s67, %s81
      %p83 = scmp.eq.s32.totalorder %s36, 0
      %p84 = por %p82, %p83
      %s86 = sadd.s32 %s85, 1
      %p89 = scmp.eq.s32.totalorder %s30, 1
      %p90 = scmp.ne.s32.totalorder %s85, %s87
      %p91 = scmp.eq.s32.totalorder %s30, 0
      %p92 = por %p90, %p91
      %p93 = scmp.ne.s32.totalorder %s85, %s87
      %p94 = scmp.eq.s32.totalorder %s35, 1
      %p95 = por %p93, %p94
      %p96 = scmp.ne.s32.totalorder %s87, %s88
      %p97 = scmp.eq.s32.totalorder %s35, 0
      %p98 = por %p96, %p97
      %p99 = scmp.ne.s32.totalorder %s87, %s88
      %p100 = scmp.eq.s32.totalorder %s36, 1
      %p101 = por %p99, %p100
      %p103 = scmp.ne.s32.totalorder %s88, %s102
      %p104 = scmp.eq.s32.totalorder %s36, 0
      %p105 = por %p103, %p104
      %s107 = sadd.s32 %s106, 1
      %p110 = scmp.eq.s32.totalorder %s30, 1
      %p111 = scmp.ne.s32.totalorder %s106, %s108
      %p112 = scmp.eq.s32.totalorder %s30, 0
      %p113 = por %p111, %p112
      %p114 = scmp.ne.s32.totalorder %s106, %s108
      %p115 = scmp.eq.s32.totalorder %s35, 1
      %p116 = por %p114, %p115
      %p117 = scmp.ne.s32.totalorder %s108, %s109
      %p118 = scmp.eq.s32.totalorder %s35, 0
      %p119 = por %p117, %p118
      %p120 = scmp.ne.s32.totalorder %s108, %s109
      %p121 = scmp.eq.s32.totalorder %s36, 1
      %p122 = por %p120, %p121
      %p124 = scmp.ne.s32.totalorder %s109, %s123
      %p125 = scmp.eq.s32.totalorder %s36, 0
      %p126 = por %p124, %p125
      %s128 = sadd.s32 %s127, 1
      %p131 = scmp.eq.s32.totalorder %s30, 1
      %p132 = scmp.ne.s32.totalorder %s127, %s129
      %p133 = scmp.eq.s32.totalorder %s30, 0
      %p134 = por %p132, %p133
      %p135 = scmp.ne.s32.totalorder %s127, %s129
      %p136 = scmp.eq.s32.totalorder %s35, 1
      %p137 = por %p135, %p136
      %p138 = scmp.ne.s32.totalorder %s129, %s130
      %p139 = scmp.eq.s32.totalorder %s35, 0
      %p140 = por %p138, %p139
      %p141 = scmp.ne.s32.totalorder %s129, %s130
      %p142 = scmp.eq.s32.totalorder %s36, 1
      %p143 = por %p141, %p142
      %p145 = scmp.ne.s32.totalorder %s130, %s144
      %p146 = scmp.eq.s32.totalorder %s36, 0
      %p147 = por %p145, %p146
      %s149 = sadd.s32 %s148, 1
      %p152 = scmp.eq.s32.totalorder %s30, 1
      %p153 = scmp.ne.s32.totalorder %s148, %s150
      %p154 = scmp.eq.s32.totalorder %s30, 0
      %p155 = por %p153, %p154
      %p156 = scmp.ne.s32.totalorder %s148, %s150
      %p157 = scmp.eq.s32.totalorder %s35, 1
      %p158 = por %p156, %p157
      %p159 = scmp.ne.s32.totalorder %s150, %s151
      %p160 = scmp.eq.s32.totalorder %s35, 0
      %p161 = por %p159, %p160
      %p162 = scmp.ne.s32.totalorder %s150, %s151
      %p163 = scmp.eq.s32.totalorder %s36, 1
      %p164 = por %p162, %p163
      %p166 = scmp.ne.s32.totalorder %s151, %s165
      %p167 = scmp.eq.s32.totalorder %s36, 0
      %p168 = por %p166, %p167
      %s170 = sadd.s32 %s169, 1
      %p173 = scmp.eq.s32.totalorder %s30, 1
      %p174 = scmp.ne.s32.totalorder %s169, %s171
      %p175 = scmp.eq.s32.totalorder %s30, 0
      %p176 = por %p174, %p175
      %p177 = scmp.ne.s32.totalorder %s169, %s171
      %p178 = scmp.eq.s32.totalorder %s35, 1
      %p179 = por %p177, %p178
      %p180 = scmp.ne.s32.totalorder %s171, %s172
      %p181 = scmp.eq.s32.totalorder %s35, 0
      %p182 = por %p180, %p181
      %p183 = scmp.ne.s32.totalorder %s171, %s172
      %p184 = scmp.eq.s32.totalorder %s36, 1
      %p185 = por %p183, %p184
      %p187 = scmp.ne.s32.totalorder %s172, %s186
      %p188 = scmp.eq.s32.totalorder %s36, 0
      %p189 = por %p187, %p188
      %s191 = sadd.s32 %s190, 1
      %p194 = scmp.eq.s32.totalorder %s30, 1
      %p195 = scmp.ne.s32.totalorder %s190, %s192
      %p196 = scmp.eq.s32.totalorder %s30, 0
      %p197 = por %p195, %p196
      %p198 = scmp.ne.s32.totalorder %s190, %s192
      %p199 = scmp.eq.s32.totalorder %s35, 1
      %p200 = por %p198, %p199
      %p201 = scmp.ne.s32.totalorder %s192, %s193
      %p202 = scmp.eq.s32.totalorder %s35, 0
      %p203 = por %p201, %p202
      %p204 = scmp.ne.s32.totalorder %s192, %s193
      %p205 = scmp.eq.s32.totalorder %s36, 1
      %p206 = por %p204, %p205
      %p208 = scmp.ne.s32.totalorder %s193, %s207
      %p209 = scmp.eq.s32.totalorder %s36, 0
      %p210 = por %p208, %p209
      %s212 = sadd.s32 %s211, 1
      %p215 = scmp.eq.s32.totalorder %s30, 1
      %p216 = scmp.ne.s32.totalorder %s211, %s213
      %p217 = scmp.eq.s32.totalorder %s30, 0
      %p218 = por %p216, %p217
      %p219 = scmp.ne.s32.totalorder %s211, %s213
      %p220 = scmp.eq.s32.totalorder %s35, 1
      %p221 = por %p219, %p220
      %p222 = scmp.ne.s32.totalorder %s213, %s214
      %p223 = scmp.eq.s32.totalorder %s35, 0
      %p224 = por %p222, %p223
      %p225 = scmp.ne.s32.totalorder %s213, %s214
      %p226 = scmp.eq.s32.totalorder %s36, 1
      %p227 = por %p225, %p226
      %p229 = scmp.ne.s32.totalorder %s214, %s228
      %p230 = scmp.eq.s32.totalorder %s36, 0
      %p231 = por %p229, %p230
      %s233 = sadd.s32 %s232, 1
      %p236 = scmp.eq.s32.totalorder %s30, 1
      %p237 = scmp.ne.s32.totalorder %s232, %s234
      %p238 = scmp.eq.s32.totalorder %s30, 0
      %p239 = por %p237, %p238
      %p240 = scmp.ne.s32.totalorder %s232, %s234
      %p241 = scmp.eq.s32.totalorder %s35, 1
      %p242 = por %p240, %p241
      %p243 = scmp.ne.s32.totalorder %s234, %s235
      %p244 = scmp.eq.s32.totalorder %s35, 0
      %p245 = por %p243, %p244
      %p246 = scmp.ne.s32.totalorder %s234, %s235
      %p247 = scmp.eq.s32.totalorder %s36, 1
      %p248 = por %p246, %p247
      %p250 = scmp.ne.s32.totalorder %s235, %s249
      %p251 = scmp.eq.s32.totalorder %s36, 0
      %p252 = por %p250, %p251
      %s254 = sadd.s32 %s253, 1
      %p257 = scmp.eq.s32.totalorder %s30, 1
      %p258 = scmp.ne.s32.totalorder %s253, %s255
      %p259 = scmp.eq.s32.totalorder %s30, 0
      %p260 = por %p258, %p259
      %p261 = scmp.ne.s32.totalorder %s253, %s255
      %p262 = scmp.eq.s32.totalorder %s35, 1
      %p263 = por %p261, %p262
      %p264 = scmp.ne.s32.totalorder %s255, %s256
      %p265 = scmp.eq.s32.totalorder %s35, 0
      %p266 = por %p264, %p265
      %p267 = scmp.ne.s32.totalorder %s255, %s256
      %p268 = scmp.eq.s32.totalorder %s36, 1
      %p269 = por %p267, %p268
      %p271 = scmp.ne.s32.totalorder %s256, %s270
      %p272 = scmp.eq.s32.totalorder %s36, 0
      %p273 = por %p271, %p272
      %s275 = sadd.s32 %s274, 1
      %p278 = scmp.eq.s32.totalorder %s30, 1
      %p279 = scmp.ne.s32.totalorder %s274, %s276
      %p280 = scmp.eq.s32.totalorder %s30, 0
      %p281 = por %p279, %p280
      %p282 = scmp.ne.s32.totalorder %s274, %s276
      %p283 = scmp.eq.s32.totalorder %s35, 1
      %p284 = por %p282, %p283
      %p285 = scmp.ne.s32.totalorder %s276, %s277
      %p286 = scmp.eq.s32.totalorder %s35, 0
      %p287 = por %p285, %p286
      %p288 = scmp.ne.s32.totalorder %s276, %s277
      %p289 = scmp.eq.s32.totalorder %s36, 1
      %p290 = por %p288, %p289
      %p292 = scmp.ne.s32.totalorder %s277, %s291
      %p293 = scmp.eq.s32.totalorder %s36, 0
      %p294 = por %p292, %p293
      %s296 = sadd.s32 %s295, 1
      %p299 = scmp.eq.s32.totalorder %s30, 1
      %p300 = scmp.ne.s32.totalorder %s295, %s297
      %p301 = scmp.eq.s32.totalorder %s30, 0
      %p302 = por %p300, %p301
      %p303 = scmp.ne.s32.totalorder %s295, %s297
      %p304 = scmp.eq.s32.totalorder %s35, 1
      %p305 = por %p303, %p304
      %p306 = scmp.ne.s32.totalorder %s297, %s298
      %p307 = scmp.eq.s32.totalorder %s35, 0
      %p308 = por %p306, %p307
      %p309 = scmp.ne.s32.totalorder %s297, %s298
      %p310 = scmp.eq.s32.totalorder %s36, 1
      %p311 = por %p309, %p310
      %p313 = scmp.ne.s32.totalorder %s298, %s312
      %p314 = scmp.eq.s32.totalorder %s36, 0
      %p315 = por %p313, %p314
      %s317 = sadd.s32 %s316, 1
      %p320 = scmp.eq.s32.totalorder %s30, 1
      %p321 = scmp.ne.s32.totalorder %s316, %s318
      %p322 = scmp.eq.s32.totalorder %s30, 0
      %p323 = por %p321, %p322
      %p324 = scmp.ne.s32.totalorder %s316, %s318
      %p325 = scmp.eq.s32.totalorder %s35, 1
      %p326 = por %p324, %p325
      %p327 = scmp.ne.s32.totalorder %s318, %s319
      %p328 = scmp.eq.s32.totalorder %s35, 0
      %p329 = por %p327, %p328
      %p330 = scmp.ne.s32.totalorder %s318, %s319
      %p331 = scmp.eq.s32.totalorder %s36, 1
      %p332 = por %p330, %p331
      %p334 = scmp.ne.s32.totalorder %s319, %s333
      %p335 = scmp.eq.s32.totalorder %s36, 0
      %p336 = por %p334, %p335
      %s338 = sadd.s32 %s337, 1
      %p341 = scmp.eq.s32.totalorder %s30, 1
      %p342 = scmp.ne.s32.totalorder %s337, %s339
      %p343 = scmp.eq.s32.totalorder %s30, 0
      %p344 = por %p342, %p343
      %p345 = scmp.ne.s32.totalorder %s337, %s339
      %p346 = scmp.eq.s32.totalorder %s35, 1
      %p347 = por %p345, %p346
      %p348 = scmp.ne.s32.totalorder %s339, %s340
      %p349 = scmp.eq.s32.totalorder %s35, 0
      %p350 = por %p348, %p349
      %p351 = scmp.ne.s32.totalorder %s339, %s340
      %p352 = scmp.eq.s32.totalorder %s36, 1
      %p353 = por %p351, %p352
      %p355 = scmp.ne.s32.totalorder %s340, %s354
      %p356 = scmp.eq.s32.totalorder %s36, 0
      %p357 = por %p355, %p356
      %s359 = sadd.s32 %s358, 1
      %p362 = scmp.eq.s32.totalorder %s30, 1
      %p363 = scmp.ne.s32.totalorder %s358, %s360
      %p364 = scmp.eq.s32.totalorder %s30, 0
      %p365 = por %p363, %p364
      %p366 = scmp.ne.s32.totalorder %s358, %s360
      %p367 = scmp.eq.s32.totalorder %s35, 1
      %p368 = por %p366, %p367
      %p369 = scmp.ne.s32.totalorder %s360, %s361
      %p370 = scmp.eq.s32.totalorder %s35, 0
      %p371 = por %p369, %p370
      %p372 = scmp.ne.s32.totalorder %s360, %s361
      %p373 = scmp.eq.s32.totalorder %s36, 1
      %p374 = por %p372, %p373
      %p376 = scmp.ne.s32.totalorder %s361, %s375
      %p377 = scmp.eq.s32.totalorder %s36, 0
      %p378 = por %p376, %p377
      %s380 = sadd.s32 %s379, 1
      %p383 = scmp.eq.s32.totalorder %s30, 1
      %p384 = scmp.ne.s32.totalorder %s379, %s381
      %p385 = scmp.eq.s32.totalorder %s30, 0
      %p386 = por %p384, %p385
      %p387 = scmp.ne.s32.totalorder %s379, %s381
      %p388 = scmp.eq.s32.totalorder %s35, 1
      %p389 = por %p387, %p388
      %p390 = scmp.ne.s32.totalorder %s381, %s382
      %p391 = scmp.eq.s32.totalorder %s35, 0
      %p392 = por %p390, %p391
      %p393 = scmp.ne.s32.totalorder %s381, %s382
      %p394 = scmp.eq.s32.totalorder %s36, 1
      %p395 = por %p393, %p394
      %p397 = scmp.ne.s32.totalorder %s382, %s396
      %p398 = scmp.eq.s32.totalorder %s36, 0
      %p399 = por %p397, %p398
      %s401 = sadd.s32 %s400, 1
      %p404 = scmp.eq.s32.totalorder %s30, 1
      %p405 = scmp.ne.s32.totalorder %s400, %s402
      %p406 = scmp.eq.s32.totalorder %s30, 0
      %p407 = por %p405, %p406
      %p408 = scmp.ne.s32.totalorder %s400, %s402
      %p409 = scmp.eq.s32.totalorder %s35, 1
      %p410 = por %p408, %p409
      %p411 = scmp.ne.s32.totalorder %s402, %s403
      %p412 = scmp.eq.s32.totalorder %s35, 0
      %p413 = por %p411, %p412
      %p414 = scmp.ne.s32.totalorder %s402, %s403
      %p415 = scmp.eq.s32.totalorder %s36, 1
      %p416 = por %p414, %p415
      %p418 = scmp.ne.s32.totalorder %s403, %s417
      %p419 = scmp.eq.s32.totalorder %s36, 0
      %p420 = por %p418, %p419
      %s422 = sadd.s32 %s421, 1
      %p425 = scmp.eq.s32.totalorder %s30, 1
      %p426 = scmp.ne.s32.totalorder %s421, %s423
      %p427 = scmp.eq.s32.totalorder %s30, 0
      %p428 = por %p426, %p427
      %p429 = scmp.ne.s32.totalorder %s421, %s423
      %p430 = scmp.eq.s32.totalorder %s35, 1
      %p431 = por %p429, %p430
      %p432 = scmp.ne.s32.totalorder %s423, %s424
      %p433 = scmp.eq.s32.totalorder %s35, 0
      %p434 = por %p432, %p433
      %p435 = scmp.ne.s32.totalorder %s423, %s424
      %p436 = scmp.eq.s32.totalorder %s36, 1
      %p437 = por %p435, %p436
      %p439 = scmp.ne.s32.totalorder %s424, %s438
      %p440 = scmp.eq.s32.totalorder %s36, 0
      %p441 = por %p439, %p440
      %s443 = sadd.s32 %s442, 1
      %p446 = scmp.eq.s32.totalorder %s30, 1
      %p447 = scmp.ne.s32.totalorder %s442, %s444
      %p448 = scmp.eq.s32.totalorder %s30, 0
      %p449 = por %p447, %p448
      %p450 = scmp.ne.s32.totalorder %s442, %s444
      %p451 = scmp.eq.s32.totalorder %s35, 1
      %p452 = por %p450, %p451
      %p453 = scmp.ne.s32.totalorder %s444, %s445
      %p454 = scmp.eq.s32.totalorder %s35, 0
      %p455 = por %p453, %p454
      %p456 = scmp.ne.s32.totalorder %s444, %s445
      %p457 = scmp.eq.s32.totalorder %s36, 1
      %p458 = por %p456, %p457
      %p460 = scmp.ne.s32.totalorder %s445, %s459
      %p461 = scmp.eq.s32.totalorder %s36, 0
      %p462 = por %p460, %p461
      %s464 = sadd.s32 %s463, 1
      %p467 = scmp.eq.s32.totalorder %s30, 1
      %p468 = scmp.ne.s32.totalorder %s463, %s465
      %p469 = scmp.eq.s32.totalorder %s30, 0
      %p470 = por %p468, %p469
      %p471 = scmp.ne.s32.totalorder %s463, %s465
      %p472 = scmp.eq.s32.totalorder %s35, 1
      %p473 = por %p471, %p472
      %p474 = scmp.ne.s32.totalorder %s465, %s466
      %p475 = scmp.eq.s32.totalorder %s35, 0
      %p476 = por %p474, %p475
      %p477 = scmp.ne.s32.totalorder %s465, %s466
      %p478 = scmp.eq.s32.totalorder %s36, 1
      %p479 = por %p477, %p478
      %p481 = scmp.ne.s32.totalorder %s466, %s480
      %p482 = scmp.eq.s32.totalorder %s36, 0
      %p483 = por %p481, %p482
      %s484 = ssub.s32 %s30, %s37
      %p485 = scmp.eq.s32.totalorder %s484, 0
      %s487 = sadd.s32 %s486, 1
      %s488 = scalar_select %p485, %s486, %s487
      %p491 = pneg %p485
      %p492 = scmp.eq.s32.totalorder %s30, 1
      %p493 = por %p491, %p492
      %p494 = scmp.ne.s32.totalorder %s486, %s489
      %p495 = scmp.eq.s32.totalorder %s30, 0
      %p496 = por %p494, %p495
      %p497 = scmp.ne.s32.totalorder %s486, %s489
      %p498 = scmp.eq.s32.totalorder %s35, 1
      %p499 = por %p497, %p498
      %p500 = scmp.ne.s32.totalorder %s489, %s490
      %p501 = scmp.eq.s32.totalorder %s35, 0
      %p502 = por %p500, %p501
      %p503 = scmp.ne.s32.totalorder %s489, %s490
      %p504 = scmp.eq.s32.totalorder %s36, 1
      %p505 = por %p503, %p504
      %p507 = scmp.ne.s32.totalorder %s490, %s506
      %p508 = scmp.eq.s32.totalorder %s36, 0
      %p509 = por %p507, %p508
      %p510 = scmp.le.s32.totalorder 1, %s30
      %p511 = scmp.lt.s32.totalorder %s30, 3
      %p512 = pnand %p510, %p511
      %p513 = pneg %p512
      // Predicated region
      $region9: #{semantic_network_forward.1} parent=5 // pred_check
        _
      $region10: #{semantic_network_forward.1} parent=5 // pred_check_branch
        %515 = sbr.rel (%p512) target = $region12
      $region11: #{semantic_network_forward.1} parent=5 // pred_region
        %s516 = ssub.s32 %s30, 1
        // Predicated region
        $region13: #{semantic_network_forward.1} parent=11 // pred_check
          %p517 = pneg %p77
        $region14: #{semantic_network_forward.1} parent=11 // pred_check_branch
          %519 = sbr.rel (%p517) target = $region16
        $region15: #{semantic_network_forward.1} parent=11 // pred_region
          _
        $region16: #{semantic_network_forward.1} parent=11 // pred_fallthru
          _
        // Predicated region
        $region17: #{semantic_network_forward.1} parent=11 // pred_check
          %p520 = pneg %p98
        $region18: #{semantic_network_forward.1} parent=11 // pred_check_branch
          %522 = sbr.rel (%p520) target = $region20
        $region19: #{semantic_network_forward.1} parent=11 // pred_region
          _
        $region20: #{semantic_network_forward.1} parent=11 // pred_fallthru
          _
        // Predicated region
        $region21: #{semantic_network_forward.1} parent=11 // pred_check
          %p523 = pneg %p119
        $region22: #{semantic_network_forward.1} parent=11 // pred_check_branch
          %525 = sbr.rel (%p523) target = $region24
        $region23: #{semantic_network_forward.1} parent=11 // pred_region
          _
        $region24: #{semantic_network_forward.1} parent=11 // pred_fallthru
          _
        // Predicated region
        $region25: #{semantic_network_forward.1} parent=11 // pred_check
          %p526 = pneg %p140
        $region26: #{semantic_network_forward.1} parent=11 // pred_check_branch
          %528 = sbr.rel (%p526) target = $region28
        $region27: #{semantic_network_forward.1} parent=11 // pred_region
          _
        $region28: #{semantic_network_forward.1} parent=11 // pred_fallthru
          _
        // Predicated region
        $region29: #{semantic_network_forward.1} parent=11 // pred_check
          %p529 = pneg %p161
        $region30: #{semantic_network_forward.1} parent=11 // pred_check_branch
          %531 = sbr.rel (%p529) target = $region32
        $region31: #{semantic_network_forward.1} parent=11 // pred_region
          _
        $region32: #{semantic_network_forward.1} parent=11 // pred_fallthru
          _
        // Predicated region
        $region33: #{semantic_network_forward.1} parent=11 // pred_check
          %p532 = pneg %p182
        $region34: #{semantic_network_forward.1} parent=11 // pred_check_branch
          %534 = sbr.rel (%p532) target = $region36
        $region35: #{semantic_network_forward.1} parent=11 // pred_region
          _
        $region36: #{semantic_network_forward.1} parent=11 // pred_fallthru
          _
        // Predicated region
        $region37: #{semantic_network_forward.1} parent=11 // pred_check
          %p535 = pneg %p203
        $region38: #{semantic_network_forward.1} parent=11 // pred_check_branch
          %537 = sbr.rel (%p535) target = $region40
        $region39: #{semantic_network_forward.1} parent=11 // pred_region
          _
        $region40: #{semantic_network_forward.1} parent=11 // pred_fallthru
          _
        // Predicated region
        $region41: #{semantic_network_forward.1} parent=11 // pred_check
          %p538 = pneg %p224
        $region42: #{semantic_network_forward.1} parent=11 // pred_check_branch
          %540 = sbr.rel (%p538) target = $region44
        $region43: #{semantic_network_forward.1} parent=11 // pred_region
          _
        $region44: #{semantic_network_forward.1} parent=11 // pred_fallthru
          _
        // Predicated region
        $region45: #{semantic_network_forward.1} parent=11 // pred_check
          %p541 = pneg %p245
        $region46: #{semantic_network_forward.1} parent=11 // pred_check_branch
          %543 = sbr.rel (%p541) target = $region48
        $region47: #{semantic_network_forward.1} parent=11 // pred_region
          _
        $region48: #{semantic_network_forward.1} parent=11 // pred_fallthru
          _
        // Predicated region
        $region49: #{semantic_network_forward.1} parent=11 // pred_check
          %p544 = pneg %p266
        $region50: #{semantic_network_forward.1} parent=11 // pred_check_branch
          %546 = sbr.rel (%p544) target = $region52
        $region51: #{semantic_network_forward.1} parent=11 // pred_region
          _
        $region52: #{semantic_network_forward.1} parent=11 // pred_fallthru
          _
        // Predicated region
        $region53: #{semantic_network_forward.1} parent=11 // pred_check
          %p547 = pneg %p287
        $region54: #{semantic_network_forward.1} parent=11 // pred_check_branch
          %549 = sbr.rel (%p547) target = $region56
        $region55: #{semantic_network_forward.1} parent=11 // pred_region
          _
        $region56: #{semantic_network_forward.1} parent=11 // pred_fallthru
          _
        // Predicated region
        $region57: #{semantic_network_forward.1} parent=11 // pred_check
          %p550 = pneg %p308
        $region58: #{semantic_network_forward.1} parent=11 // pred_check_branch
          %552 = sbr.rel (%p550) target = $region60
        $region59: #{semantic_network_forward.1} parent=11 // pred_region
          _
        $region60: #{semantic_network_forward.1} parent=11 // pred_fallthru
          _
        // Predicated region
        $region61: #{semantic_network_forward.1} parent=11 // pred_check
          %p553 = pneg %p329
        $region62: #{semantic_network_forward.1} parent=11 // pred_check_branch
          %555 = sbr.rel (%p553) target = $region64
        $region63: #{semantic_network_forward.1} parent=11 // pred_region
          _
        $region64: #{semantic_network_forward.1} parent=11 // pred_fallthru
          _
        // Predicated region
        $region65: #{semantic_network_forward.1} parent=11 // pred_check
          %p556 = pneg %p350
        $region66: #{semantic_network_forward.1} parent=11 // pred_check_branch
          %558 = sbr.rel (%p556) target = $region68
        $region67: #{semantic_network_forward.1} parent=11 // pred_region
          _
        $region68: #{semantic_network_forward.1} parent=11 // pred_fallthru
          _
        // Predicated region
        $region69: #{semantic_network_forward.1} parent=11 // pred_check
          %p559 = pneg %p371
        $region70: #{semantic_network_forward.1} parent=11 // pred_check_branch
          %561 = sbr.rel (%p559) target = $region72
        $region71: #{semantic_network_forward.1} parent=11 // pred_region
          _
        $region72: #{semantic_network_forward.1} parent=11 // pred_fallthru
          _
        // Predicated region
        $region73: #{semantic_network_forward.1} parent=11 // pred_check
          %p562 = pneg %p392
        $region74: #{semantic_network_forward.1} parent=11 // pred_check_branch
          %564 = sbr.rel (%p562) target = $region76
        $region75: #{semantic_network_forward.1} parent=11 // pred_region
          _
        $region76: #{semantic_network_forward.1} parent=11 // pred_fallthru
          _
        // Predicated region
        $region77: #{semantic_network_forward.1} parent=11 // pred_check
          %p565 = pneg %p413
        $region78: #{semantic_network_forward.1} parent=11 // pred_check_branch
          %567 = sbr.rel (%p565) target = $region80
        $region79: #{semantic_network_forward.1} parent=11 // pred_region
          _
        $region80: #{semantic_network_forward.1} parent=11 // pred_fallthru
          _
        // Predicated region
        $region81: #{semantic_network_forward.1} parent=11 // pred_check
          %p568 = pneg %p434
        $region82: #{semantic_network_forward.1} parent=11 // pred_check_branch
          %570 = sbr.rel (%p568) target = $region84
        $region83: #{semantic_network_forward.1} parent=11 // pred_region
          _
        $region84: #{semantic_network_forward.1} parent=11 // pred_fallthru
          _
        // Predicated region
        $region85: #{semantic_network_forward.1} parent=11 // pred_check
          %p571 = pneg %p455
        $region86: #{semantic_network_forward.1} parent=11 // pred_check_branch
          %573 = sbr.rel (%p571) target = $region88
        $region87: #{semantic_network_forward.1} parent=11 // pred_region
          _
        $region88: #{semantic_network_forward.1} parent=11 // pred_fallthru
          _
        // Predicated region
        $region89: #{semantic_network_forward.1} parent=11 // pred_check
          %p574 = pneg %p476
        $region90: #{semantic_network_forward.1} parent=11 // pred_check_branch
          %576 = sbr.rel (%p574) target = $region92
        $region91: #{semantic_network_forward.1} parent=11 // pred_region
          _
        $region92: #{semantic_network_forward.1} parent=11 // pred_fallthru
          _
      $region12: #{semantic_network_forward.1} parent=5 // pred_fallthru
        _
      %p577 = scmp.lt.s32.totalorder %s30, 2
      // Predicated region
      $region93: #{semantic_network_forward.1} parent=5 // pred_check
        %p578 = pneg %p577
      $region94: #{semantic_network_forward.1} parent=5 // pred_check_branch
        %580 = sbr.rel (%p578) target = $region96
      $region95: #{semantic_network_forward.1} parent=5 // pred_region
        // Predicated region
        $region97: #{semantic_network_forward.1} parent=95 // pred_check
          %p581 = pneg %p50
        $region98: #{semantic_network_forward.1} parent=95 // pred_check_branch
          %583 = sbr.rel (%p581) target = $region100
        $region99: #{semantic_network_forward.1} parent=95 // pred_region
          %p584 = scmp.lt.s32.totalorder %s30, 1
          %s585 = scalar_select %p584, %s30, 1
          %s586 = smul.addr %s585, 4
          %s587 = smul.addr %s586, 8
          %s588 = scalar_lea.vmem %s0, %s587
        $region100: #{semantic_network_forward.1} parent=95 // pred_fallthru
          _
      $region96: #{semantic_network_forward.1} parent=5 // pred_fallthru
        _
      %p589 = scmp.le.s32.totalorder 1, %s30
      %p590 = scmp.lt.s32.totalorder %s30, 3
      %p591 = pnand %p589, %p590
      %p592 = pneg %p591
      // Predicated region
      $region101: #{semantic_network_forward.1} parent=5 // pred_check
        _
      $region102: #{semantic_network_forward.1} parent=5 // pred_check_branch
        %594 = sbr.rel (%p591) target = $region104
      $region103: #{semantic_network_forward.1} parent=5 // pred_region
        %s595 = ssub.s32 %s30, 1
        %p596 = scmp.lt.s32.totalorder %s35, 1
        %s597 = scalar_select %p596, %s35, 1
        %s598 = smul.addr %s597, 4
        %s599 = smul.addr %s598, 8
        %s600 = scalar_lea.vmem %s0, %s599
        %p601 = pneg %p56
        %p602 = pneg %p53
        %p603 = pneg %p77
        %p604 = pneg %p74
        %p605 = pneg %p98
        %p606 = pneg %p95
        %p607 = pneg %p119
        %p608 = pneg %p116
        %p609 = pneg %p140
        %p610 = pneg %p137
        %p611 = pneg %p161
        %p612 = pneg %p158
        %p613 = pneg %p182
        %p614 = pneg %p179
        %p615 = pneg %p203
        %p616 = pneg %p200
        %p617 = pneg %p224
        %p618 = pneg %p221
        %p619 = pneg %p245
        %p620 = pneg %p242
        %p621 = pneg %p266
        %p622 = pneg %p263
        %p623 = pneg %p287
        %p624 = pneg %p284
        %p625 = pneg %p308
        %p626 = pneg %p305
        %p627 = pneg %p329
        %p628 = pneg %p326
        %p629 = pneg %p350
        %p630 = pneg %p347
        %p631 = pneg %p371
        %p632 = pneg %p368
        %p633 = pneg %p392
        %p634 = pneg %p389
        %p635 = pneg %p413
        %p636 = pneg %p410
        %p637 = pneg %p434
        %p638 = pneg %p431
        %p639 = pneg %p455
        %p640 = pneg %p452
        %p641 = pneg %p476
        %p642 = pneg %p473
        %p643 = pneg %p502
        %p644 = pneg %p499
        %s645 = sand.u32 %s489, 1
        %s646 = scalar_lea.sflag [#allocation3], %s645
        %s647 = sand.u32 %s489, 1
        %s648 = scalar_lea.vmem [#allocation2], %s647
        %p649 = scmp.lt.s32.totalorder %s35, 1
        %s650 = scalar_select %p649, %s35, 1
        %s651 = smul.addr %s650, 4
        %s652 = smul.addr %s651, 8
        %s653 = scalar_lea.vmem %s0, %s652
        %v655 = vld [vmem:[%s653] sm:$0xff]
        %v656 = vld [vmem:[%s653 + $0x8] sm:$0xff]
        %v657 = vld [vmem:[%s653 + $0x10] sm:$0xff]
        %v658 = vld [vmem:[%s653 + $0x18] sm:$0xff]
        %v659 = vpack.c.bf16 %v657, %v655
        %v660 = vpack.c.bf16 %v658, %v656
        %v661 = vld [vmem:[%s1] sm:$0xf]
        %v662 = vld [vmem:[%s1 + $0x4] sm:$0xf]
        %v663 = vld [vmem:[%s1 + $0x8] sm:$0xf]
        %v664 = vld [vmem:[%s1 + $0xc] sm:$0xf]
        %v665 = vld [vmem:[%s1 + $0x10] sm:$0xf]
        %v666 = vld [vmem:[%s1 + $0x14] sm:$0xf]
        %v667 = vld [vmem:[%s1 + $0x18] sm:$0xf]
        %v668 = vld [vmem:[%s1 + $0x1c] sm:$0xf]
        %v669 = vld [vmem:[%s1 + $0x20] sm:$0xf]
        %v670 = vld [vmem:[%s1 + $0x24] sm:$0xf]
        %v671 = vld [vmem:[%s1 + $0x28] sm:$0xf]
        %v672 = vld [vmem:[%s1 + $0x2c] sm:$0xf]
        %v673 = vld [vmem:[%s1 + $0x30] sm:$0xf]
        %v674 = vld [vmem:[%s1 + $0x34] sm:$0xf]
        %v675 = vld [vmem:[%s1 + $0x38] sm:$0xf]
        %v676 = vld [vmem:[%s1 + $0x3c] sm:$0xf]
        %v677 = vld [vmem:[%s1 + $0x40] sm:$0xf]
        %v678 = vld [vmem:[%s1 + $0x44] sm:$0xf]
        %v679 = vld [vmem:[%s1 + $0x48] sm:$0xf]
        %v680 = vld [vmem:[%s1 + $0x4c] sm:$0xf]
        %v681 = vld [vmem:[%s1 + $0x50] sm:$0xf]
        %v682 = vld [vmem:[%s1 + $0x54] sm:$0xf]
        %v683 = vld [vmem:[%s1 + $0x58] sm:$0xf]
        %v684 = vld [vmem:[%s1 + $0x5c] sm:$0xf]
        %v685 = vld [vmem:[%s2] sm:$0x1]
        %v687 = vlaneseq
        %v688 = vshrl.u32 %v687, 7
        %v689 = vsub.s32 0, %v688
        %v690 = vrot.slane %v685, %v689
        %v716 = vunpack.c.l.b16 %v661
        %v717 = vunpack.c.l.b16 %v662
        %v718 = vunpack.c.l.b16 %v663
        %v719 = vunpack.c.l.b16 %v664
        %v720 = vunpack.c.l.b16 %v665
        %v721 = vunpack.c.l.b16 %v666
        %v722 = vunpack.c.l.b16 %v667
        %v723 = vunpack.c.l.b16 %v668
        %v724 = vunpack.c.l.b16 %v669
        %v725 = vunpack.c.l.b16 %v670
        %v726 = vunpack.c.l.b16 %v671
        %v727 = vunpack.c.l.b16 %v672
        %v728 = vunpack.c.l.b16 %v673
        %v729 = vunpack.c.l.b16 %v674
        %v730 = vunpack.c.l.b16 %v675
        %v731 = vunpack.c.l.b16 %v676
        %v732 = vunpack.c.l.b16 %v677
        %v733 = vunpack.c.l.b16 %v678
        %v734 = vunpack.c.l.b16 %v679
        %v735 = vunpack.c.l.b16 %v680
        %v736 = vunpack.c.l.b16 %v681
        %v737 = vunpack.c.l.b16 %v682
        %v738 = vunpack.c.l.b16 %v683
        %v739 = vunpack.c.l.b16 %v684
        %v740 = vpack.c.b16 %v717, %v716
        %v741 = vpack.c.b16 %v719, %v718
        %v742 = vpack.c.b16 %v721, %v720
        %v743 = vpack.c.b16 %v723, %v722
        %v744 = vpack.c.b16 %v725, %v724
        %v745 = vpack.c.b16 %v727, %v726
        %v746 = vpack.c.b16 %v729, %v728
        %v747 = vpack.c.b16 %v731, %v730
        %v748 = vpack.c.b16 %v733, %v732
        %v749 = vpack.c.b16 %v735, %v734
        %v750 = vpack.c.b16 %v737, %v736
        %v751 = vpack.c.b16 %v739, %v738
        %vm764 = vcmask 523264
        %v766 = vsel %vm764, %v660, 0
        %768 = vmatprep.subr.bf16.mxu0 0
        %769 = vmatpush1.bf16.msra.mxu0 %v740
        %770 = vmatprep.subr.bf16.mxu0 0
        %771 = vmatpush1.bf16.msra.mxu0 %v741
        %772 = vmatprep.subr.bf16.mxu0 0
        %773 = vmatpush1.bf16.msra.mxu0 %v742
        %774 = vmatprep.subr.bf16.mxu0 0
        %775 = vmatpush1.bf16.msra.mxu0 %v743
        %776 = vmatprep.subr.bf16.mxu0 0
        %777 = vmatpush1.bf16.msra.mxu0 %v744
        %778 = vmatprep.subr.bf16.mxu0 0
        %779 = vmatpush1.bf16.msra.mxu0 %v745
        %780 = vmatprep.subr.bf16.mxu0 0
        %781 = vmatpush1.bf16.msra.mxu0 %v746
        %782 = vmatprep.subr.bf16.mxu0 0
        %783 = vmatpush1.bf16.msra.mxu0 %v747
        %784 = vmatprep.subr.bf16.mxu0 0
        %785 = vmatpush1.bf16.msra.mxu0 %v748
        %786 = vmatprep.subr.bf16.mxu0 0
        %787 = vmatpush1.bf16.msra.mxu0 %v749
        %788 = vmatprep.subr.bf16.mxu0 0
        %789 = vmatpush1.bf16.msra.mxu0 %v750
        %790 = vmatprep.subr.bf16.mxu0 0
        %791 = vmatpush1.bf16.msra.mxu0 %v751
        %792 = vmatprep.subr.bf16.mxu0 0
        %793 = vmatpush1.bf16.msra.mxu0 0
        %794 = vmatprep.subr.bf16.mxu0 0
        %795 = vmatpush1.bf16.msra.mxu0 0
        %796 = vmatprep.subr.bf16.mxu0 0
        %797 = vmatpush1.bf16.msra.mxu0 0
        %798 = vmatprep.subr.bf16.mxu0 0
        %799 = vmatpush1.bf16.msra.mxu0 0
        %800 = vmatprep.mubr.bf16.mxu0 %v766
        %801 = vmatmul.mubr.bf16.gmra.mrb[0].mxu0 %v659
        %v802 = vpop.f32.mrb[0].mxu0
        %v803 = vadd.f32 %v690, %v802
        %v804 = vpop.f32.mrb[0].mxu0
        %v805 = vpop.f32.mrb[0].mxu0
        %v806 = vadd.f32 %v690, %v805
        %v807 = vpop.f32.mrb[0].mxu0
        %808 = vdwg.mxu0
        %v809 = vld [vmem:[%s3] sm:$0x1]
        %v810 = vld [vmem:[%s4] sm:$0xff]
        %v811 = vld [vmem:[%s4 + $0x8] sm:$0xff]
        %v812 = vadd.f32 %v803, %v810
        %v813 = vadd.f32 %v806, %v811
        %vm816 = vcmask 1040384
        %v817 = vrot.slane %v812, 7
        %v818 = vrot.slane %v813, 7
        %v819 = vsel %vm816, %v817, %v818
        %v823 = vsel %vm816, %v809, %v817
        %v824 = vld [vmem:[%s5] sm:$0x1]
        %v825 = vld [vmem:[%s6] sm:$0x1]
        %vm826 = vcmask 261120
        %v827 = vsel %vm826, %v823, 0.0
        %828 = vadd.xlane.f32.xlu0 %v827
        %v829 = vpop.xlane.xlu0 %828
        %v830 = vsel %vm826, %v819, 0.0
        %831 = vadd.xlane.f32.xlu0 %v830
        %v832 = vpop.xlane.xlu0 %831
        %vm833 = vcmask 253952
        %v834 = vsel %vm833, %v818, 0.0
        %835 = vadd.xlane.f32.xlu0 %v834
        %v836 = vpop.xlane.xlu0 %835
        %v837 = vrcp.pop 32.0
        %v838 = vmul.f32 %v829, %v837
        %v839 = vmul.f32 %v832, %v837
        %v840 = vmul.f32 %v836, %v837
        %v841 = vsub.f32 %v823, %v838
        %v842 = vsub.f32 %v819, %v839
        %v843 = vsub.f32 %v818, %v840
        %v844 = vmul.f32 %v841, %v841
        %v845 = vmul.f32 %v842, %v842
        %v846 = vmul.f32 %v843, %v843
        %v847 = vsel %vm826, %v844, 0.0
        %848 = vadd.xlane.f32.xlu0 %v847
        %v849 = vpop.xlane.xlu0 %848
        %v850 = vsel %vm826, %v845, 0.0
        %851 = vadd.xlane.f32.xlu0 %v850
        %v852 = vpop.xlane.xlu0 %851
        %v853 = vsel %vm833, %v846, 0.0
        %854 = vadd.xlane.f32.xlu0 %v853
        %v855 = vpop.xlane.xlu0 %854
        %v856 = vmul.f32 %v849, %v837
        %v857 = vmul.f32 %v852, %v837
        %v858 = vmul.f32 %v855, %v837
        %v859 = vadd.f32 %v856, 1e-05
        %v860 = vadd.f32 %v857, 1e-05
        %v861 = vadd.f32 %v858, 1e-05
        %v862 = vrsqrt.pop %v859
        %v863 = vrsqrt.pop %v860
        %v864 = vrsqrt.pop %v861
        %v865 = vmul.f32 %v841, %v862
        %v866 = vmul.f32 %v842, %v863
        %v867 = vmul.f32 %v843, %v864
        %v869 = vlaneseq
        %v870 = vshrl.u32 %v869, 7
        %v871 = vsub.s32 0, %v870
        %v872 = vrot.slane %v824, %v871
        %v874 = vmul.f32 %v865, %v872
        %v875 = vmul.f32 %v866, %v872
        %v876 = vmul.f32 %v867, %v872
        %v878 = vlaneseq
        %v879 = vshrl.u32 %v878, 7
        %v880 = vsub.s32 0, %v879
        %v881 = vrot.slane %v825, %v880
        %v883 = vadd.f32 %v874, %v881
        %v884 = vadd.f32 %v875, %v881
        %v885 = vadd.f32 %v876, %v881
        %v886 = vld [vmem:[%s11] sm:$0x1]
        %v887 = vld [vmem:[%s12] sm:$0x1]
        %v888 = vsel %vm826, %v883, 0.0
        %889 = vadd.xlane.f32.xlu0 %v888
        %v890 = vpop.xlane.xlu0 %889
        %v891 = vsel %vm826, %v884, 0.0
        %892 = vadd.xlane.f32.xlu0 %v891
        %v893 = vpop.xlane.xlu0 %892
        %v894 = vsel %vm833, %v885, 0.0
        %895 = vadd.xlane.f32.xlu0 %v894
        %v896 = vpop.xlane.xlu0 %895
        %v897 = vmul.f32 %v890, %v837
        %v898 = vmul.f32 %v893, %v837
        %v899 = vmul.f32 %v896, %v837
        %v900 = vsub.f32 %v883, %v897
        %v901 = vsub.f32 %v884, %v898
        %v902 = vsub.f32 %v885, %v899
        %v903 = vmul.f32 %v900, %v900
        %v904 = vmul.f32 %v901, %v901
        %v905 = vmul.f32 %v902, %v902
        %v906 = vsel %vm826, %v903, 0.0
        %907 = vadd.xlane.f32.xlu0 %v906
        %v908 = vpop.xlane.xlu0 %907
        %v909 = vsel %vm826, %v904, 0.0
        %910 = vadd.xlane.f32.xlu0 %v909
        %v911 = vpop.xlane.xlu0 %910
        %v912 = vsel %vm833, %v905, 0.0
        %913 = vadd.xlane.f32.xlu0 %v912
        %v914 = vpop.xlane.xlu0 %913
        %v915 = vmul.f32 %v908, %v837
        %v916 = vmul.f32 %v911, %v837
        %v917 = vmul.f32 %v914, %v837
        %v918 = vadd.f32 %v915, 1e-05
        %v919 = vadd.f32 %v916, 1e-05
        %v920 = vadd.f32 %v917, 1e-05
        %v921 = vrsqrt.pop %v918
        %v922 = vrsqrt.pop %v919
        %v923 = vrsqrt.pop %v920
        %v924 = vmul.f32 %v900, %v921
        %v925 = vmul.f32 %v901, %v922
        %v926 = vmul.f32 %v902, %v923
        %v927 = vlaneseq
        %v928 = vshrl.u32 %v927, 7
        %v929 = vsub.s32 0, %v928
        %v930 = vrot.slane %v886, %v929
        %v931 = vmul.f32 %v924, %v930
        %v932 = vmul.f32 %v925, %v930
        %v933 = vmul.f32 %v926, %v930
        %v934 = vlaneseq
        %v935 = vshrl.u32 %v934, 7
        %v936 = vsub.s32 0, %v935
        %v937 = vrot.slane %v887, %v936
        %v938 = vadd.f32 %v931, %v937
        %v939 = vadd.f32 %v932, %v937
        %v940 = vadd.f32 %v933, %v937
        %v941 = vpack.c.bf16 %v939, %v938
        %v942 = vpack.c.bf16 %v940, %v940
        %v943 = vld [vmem:[%s7] sm:$0xf]
        %v944 = vld [vmem:[%s7 + $0x4] sm:$0xf]
        %v945 = vld [vmem:[%s7 + $0x8] sm:$0xf]
        %v946 = vld [vmem:[%s7 + $0xc] sm:$0xf]
        %v947 = vld [vmem:[%s8] sm:$0x1]
        %v948 = vlaneseq
        %v949 = vshrl.u32 %v948, 7
        %v950 = vsub.s32 0, %v949
        %v951 = vrot.slane %v947, %v950
        %v956 = vunpack.c.l.b16 %v943
        %v957 = vunpack.c.l.b16 %v944
        %v958 = vunpack.c.l.b16 %v945
        %v959 = vunpack.c.l.b16 %v946
        %v960 = vpack.c.b16 %v957, %v956
        %v961 = vpack.c.b16 %v959, %v958
        %v965 = vsel %vm826, %v941, 0
        %v968 = vsel %vm826, %v942, 0
        %970 = vmatprep.subr.bf16.mxu0 0
        %971 = vmatpush1.bf16.msra.mxu0 %v960
        %972 = vmatprep.subr.bf16.mxu0 0
        %973 = vmatpush1.bf16.msra.mxu0 %v961
        %974 = vmatprep.subr.bf16.mxu0 0
        %975 = vmatpush1.bf16.msra.mxu0 0
        %976 = vmatprep.subr.bf16.mxu0 0
        %977 = vmatpush1.bf16.msra.mxu0 0
        %978 = vmatprep.subr.bf16.mxu0 0
        %979 = vmatpush1.bf16.msra.mxu0 0
        %980 = vmatprep.subr.bf16.mxu0 0
        %981 = vmatpush1.bf16.msra.mxu0 0
        %982 = vmatprep.subr.bf16.mxu0 0
        %983 = vmatpush1.bf16.msra.mxu0 0
        %984 = vmatprep.subr.bf16.mxu0 0
        %985 = vmatpush1.bf16.msra.mxu0 0
        %986 = vmatprep.subr.bf16.mxu0 0
        %987 = vmatpush1.bf16.msra.mxu0 0
        %988 = vmatprep.subr.bf16.mxu0 0
        %989 = vmatpush1.bf16.msra.mxu0 0
        %990 = vmatprep.subr.bf16.mxu0 0
        %991 = vmatpush1.bf16.msra.mxu0 0
        %992 = vmatprep.subr.bf16.mxu0 0
        %993 = vmatpush1.bf16.msra.mxu0 0
        %994 = vmatprep.subr.bf16.mxu0 0
        %995 = vmatpush1.bf16.msra.mxu0 0
        %996 = vmatprep.subr.bf16.mxu0 0
        %997 = vmatpush1.bf16.msra.mxu0 0
        %998 = vmatprep.subr.bf16.mxu0 0
        %999 = vmatpush1.bf16.msra.mxu0 0
        %1000 = vmatprep.subr.bf16.mxu0 0
        %1001 = vmatpush1.bf16.msra.mxu0 0
        %1002 = vmatprep.mubr.bf16.mxu0 0
        %1003 = vmatmul.mubr.bf16.gmra.mrb[0].mxu0 %v965
        %v1004 = vpop.f32.mrb[0].mxu0
        %v1005 = vadd.f32 %v951, %v1004
        %v1006 = vpop.f32.mrb[0].mxu0
        %v1007 = vpop.f32.mrb[0].mxu0
        %v1008 = vadd.f32 %v951, %v1007
        %v1009 = vpop.f32.mrb[0].mxu0
        %1010 = vmatprep.mubr.bf16.mxu0 0
        %1011 = vmatmul.mubr.bf16.gmra.mrb[0].mxu0 %v968
        %v1012 = vpop.f32.mrb[0].mxu0
        %v1013 = vadd.f32 %v951, %v1012
        %v1014 = vpop.f32.mrb[0].mxu0
        %v1015 = vpop.f32.mrb[0].mxu0
        %v1016 = vpop.f32.mrb[0].mxu0
        %1017 = vdwg.mxu0
        %v1018 = vpack.c.bf16 %v1008, %v1005
        %v1019 = vpack.c.bf16 %v1013, %v1013
        %1022 = vrot.lane.b32.xlu0 %v1018, 96
        %v1023 = vpop.permute.xlu0 %1022
        %1024 = vrot.lane.b32.xlu0 %v1019, 96
        %v1025 = vpop.permute.xlu0 %1024
        %vm1026 = vcmask 64512
        %v1028 = vsel %vm1026, %v1018, 0
        %v1031 = vsel %vm1026, %v1019, 0
        %v1034 = vsel %vm1026, %v1023, 0
        %v1037 = vsel %vm1026, %v1025, 0
        %1039 = vmatprep.subr.bf16.mxu0 0
        %1040 = vmatpush1.bf16.xpose.msra.mxu0 %v1034
        %1041 = vmatprep.subr.bf16.mxu0 0
        %1042 = vmatpush1.bf16.xpose.msra.mxu0 %v1037
        %1043 = vmatprep.subr.bf16.mxu0 0
        %1044 = vmatpush1.bf16.xpose.msra.mxu0 0
        %1045 = vmatprep.subr.bf16.mxu0 0
        %1046 = vmatpush1.bf16.xpose.msra.mxu0 0
        %1047 = vmatprep.subr.bf16.mxu0 0
        %1048 = vmatpush1.bf16.xpose.msra.mxu0 0
        %1049 = vmatprep.subr.bf16.mxu0 0
        %1050 = vmatpush1.bf16.xpose.msra.mxu0 0
        %1051 = vmatprep.subr.bf16.mxu0 0
        %1052 = vmatpush1.bf16.xpose.msra.mxu0 0
        %1053 = vmatprep.subr.bf16.mxu0 0
        %1054 = vmatpush1.bf16.xpose.msra.mxu0 0
        %1055 = vmatprep.subr.bf16.mxu0 0
        %1056 = vmatpush1.bf16.xpose.msra.mxu0 0
        %1057 = vmatprep.subr.bf16.mxu0 0
        %1058 = vmatpush1.bf16.xpose.msra.mxu0 0
        %1059 = vmatprep.subr.bf16.mxu0 0
        %1060 = vmatpush1.bf16.xpose.msra.mxu0 0
        %1061 = vmatprep.subr.bf16.mxu0 0
        %1062 = vmatpush1.bf16.xpose.msra.mxu0 0
        %1063 = vmatprep.subr.bf16.mxu0 0
        %1064 = vmatpush1.bf16.xpose.msra.mxu0 0
        %1065 = vmatprep.subr.bf16.mxu0 0
        %1066 = vmatpush1.bf16.xpose.msra.mxu0 0
        %1067 = vmatprep.subr.bf16.mxu0 0
        %1068 = vmatpush1.bf16.xpose.msra.mxu0 0
        %1069 = vmatprep.subr.bf16.mxu0 0
        %1070 = vmatpush1.bf16.xpose.msra.mxu0 0
        %1071 = vmatprep.mubr.bf16.mxu0 0
        %1072 = vmatmul.mubr.bf16.gmra.mrb[0].mxu0 %v1028
        %v1073 = vpop.f32.mrb[0].mxu0
        %v1074 = vadd.f32 0.0, %v1073
        %v1075 = vpop.f32.mrb[0].mxu0
        %v1076 = vpop.f32.mrb[0].mxu0
        %v1077 = vadd.f32 0.0, %v1076
        %v1078 = vpop.f32.mrb[0].mxu0
        %1079 = vmatprep.mubr.bf16.mxu0 0
        %1080 = vmatmul.mubr.bf16.gmra.mrb[0].mxu0 %v1031
        %v1081 = vpop.f32.mrb[0].mxu0
        %v1082 = vadd.f32 0.0, %v1081
        %v1083 = vpop.f32.mrb[0].mxu0
        %v1084 = vpop.f32.mrb[0].mxu0
        %v1085 = vpop.f32.mrb[0].mxu0
        %1086 = vdwg.mxu0
        %vm1087 = vcmask 138240
        %v1088 = vsel %vm1087, %v1074, -inf
        %1089 = vmax.xlane.f32.xlu0 %v1088
        %v1090 = vpop.xlane.xlu0 %1089
        %v1091 = vsel %vm1087, %v1077, -inf
        %1092 = vmax.xlane.f32.xlu0 %v1091
        %v1093 = vpop.xlane.xlu0 %1092
        %vm1094 = vcmask 131072
        %v1095 = vsel %vm1094, %v1082, -inf
        %1096 = vmax.xlane.f32.xlu0 %v1095
        %v1097 = vpop.xlane.xlu0 %1096
        %v1098 = vsub.f32 %v1074, %v1090
        %v1099 = vsub.f32 %v1077, %v1093
        %v1100 = vsub.f32 %v1082, %v1097
        %v1101 = vmul.f32 %v1098, 1.442695
        %v1102 = vpow.pop %v1101
        %v1103 = vmul.f32 %v1099, 1.442695
        %v1104 = vpow.pop %v1103
        %v1105 = vmul.f32 %v1100, 1.442695
        %v1106 = vpow.pop %v1105
        %v1107 = vsel %vm1087, %v1102, 0.0
        %1108 = vadd.xlane.f32.xlu0 %v1107
        %v1109 = vpop.xlane.xlu0 %1108
        %v1110 = vsel %vm1087, %v1104, 0.0
        %1111 = vadd.xlane.f32.xlu0 %v1110
        %v1112 = vpop.xlane.xlu0 %1111
        %v1113 = vsel %vm1094, %v1106, 0.0
        %1114 = vadd.xlane.f32.xlu0 %v1113
        %v1115 = vpop.xlane.xlu0 %1114
        %v1116 = vrcp.pop %v1109
        %v1117 = vrcp.pop %v1112
        %v1118 = vrcp.pop %v1115
        %v1119 = vmul.f32 %v1102, %v1116
        %v1120 = vmul.f32 %v1104, %v1117
        %v1121 = vmul.f32 %v1106, %v1118
        %v1122 = vpack.c.bf16 %v1120, %v1119
        %v1123 = vpack.c.bf16 %v1121, %v1121
        %1124 = vrot.lane.b32.xlu0 %v1018, 64
        %v1125 = vpop.permute.xlu0 %1124
        %1126 = vrot.lane.b32.xlu0 %v1019, 64
        %v1127 = vpop.permute.xlu0 %1126
        %v1130 = vsel %vm1087, %v1122, 0
        %v1133 = vsel %vm1087, %v1123, 0
        %v1135 = vsel 0, 4294967295, 65535
        %v1136 = vsel %vm816, %v1135, 0
        %v1138 = vand.u32 %v1127, %v1136
        %1140 = vmatprep.subr.bf16.mxu0 0
        %1141 = vmatpush1.bf16.msra.mxu0 %v1125
        %1142 = vmatprep.subr.bf16.mxu0 0
        %1143 = vmatpush1.bf16.msra.mxu0 %v1138
        %1144 = vmatprep.subr.bf16.mxu0 0
        %1145 = vmatpush1.bf16.msra.mxu0 0
        %1146 = vmatprep.subr.bf16.mxu0 0
        %1147 = vmatpush1.bf16.msra.mxu0 0
        %1148 = vmatprep.subr.bf16.mxu0 0
        %1149 = vmatpush1.bf16.msra.mxu0 0
        %1150 = vmatprep.subr.bf16.mxu0 0
        %1151 = vmatpush1.bf16.msra.mxu0 0
        %1152 = vmatprep.subr.bf16.mxu0 0
        %1153 = vmatpush1.bf16.msra.mxu0 0
        %1154 = vmatprep.subr.bf16.mxu0 0
        %1155 = vmatpush1.bf16.msra.mxu0 0
        %1156 = vmatprep.subr.bf16.mxu0 0
        %1157 = vmatpush1.bf16.msra.mxu0 0
        %1158 = vmatprep.subr.bf16.mxu0 0
        %1159 = vmatpush1.bf16.msra.mxu0 0
        %1160 = vmatprep.subr.bf16.mxu0 0
        %1161 = vmatpush1.bf16.msra.mxu0 0
        %1162 = vmatprep.subr.bf16.mxu0 0
        %1163 = vmatpush1.bf16.msra.mxu0 0
        %1164 = vmatprep.subr.bf16.mxu0 0
        %1165 = vmatpush1.bf16.msra.mxu0 0
        %1166 = vmatprep.subr.bf16.mxu0 0
        %1167 = vmatpush1.bf16.msra.mxu0 0
        %1168 = vmatprep.subr.bf16.mxu0 0
        %1169 = vmatpush1.bf16.msra.mxu0 0
        %1170 = vmatprep.subr.bf16.mxu0 0
        %1171 = vmatpush1.bf16.msra.mxu0 0
        %1172 = vmatprep.mubr.bf16.mxu0 0
        %1173 = vmatmul.mubr.bf16.gmra.mrb[0].mxu0 %v1130
        %v1174 = vpop.f32.mrb[0].mxu0
        %v1175 = vadd.f32 0.0, %v1174
        %v1176 = vpop.f32.mrb[0].mxu0
        %v1177 = vpop.f32.mrb[0].mxu0
        %v1178 = vadd.f32 0.0, %v1177
        %v1179 = vpop.f32.mrb[0].mxu0
        %1180 = vmatprep.mubr.bf16.mxu0 0
        %1181 = vmatmul.mubr.bf16.gmra.mrb[0].mxu0 %v1133
        %v1182 = vpop.f32.mrb[0].mxu0
        %v1183 = vadd.f32 0.0, %v1182
        %v1184 = vpop.f32.mrb[0].mxu0
        %v1185 = vpop.f32.mrb[0].mxu0
        %v1186 = vpop.f32.mrb[0].mxu0
        %1187 = vdwg.mxu0
        %1188 = vrot.lane.b32.xlu0 %v1018, 120
        %v1189 = vpop.permute.xlu0 %1188
        %1190 = vrot.lane.b32.xlu0 %v1019, 120
        %v1191 = vpop.permute.xlu0 %1190
        %1192 = vrot.lane.b32.xlu0 %v1018, 88
        %v1193 = vpop.permute.xlu0 %1192
        %1194 = vrot.lane.b32.xlu0 %v1019, 88
        %v1195 = vpop.permute.xlu0 %1194
        %v1197 = vsel %vm1026, %v1189, 0
        %v1200 = vsel %vm1026, %v1191, 0
        %v1203 = vsel %vm1026, %v1193, 0
        %v1206 = vsel %vm1026, %v1195, 0
        %1208 = vmatprep.subr.bf16.mxu0 0
        %1209 = vmatpush1.bf16.xpose.msra.mxu0 %v1203
        %1210 = vmatprep.subr.bf16.mxu0 0
        %1211 = vmatpush1.bf16.xpose.msra.mxu0 %v1206
        %1212 = vmatprep.subr.bf16.mxu0 0
        %1213 = vmatpush1.bf16.xpose.msra.mxu0 0
        %1214 = vmatprep.subr.bf16.mxu0 0
        %1215 = vmatpush1.bf16.xpose.msra.mxu0 0
        %1216 = vmatprep.subr.bf16.mxu0 0
        %1217 = vmatpush1.bf16.xpose.msra.mxu0 0
        %1218 = vmatprep.subr.bf16.mxu0 0
        %1219 = vmatpush1.bf16.xpose.msra.mxu0 0
        %1220 = vmatprep.subr.bf16.mxu0 0
        %1221 = vmatpush1.bf16.xpose.msra.mxu0 0
        %1222 = vmatprep.subr.bf16.mxu0 0
        %1223 = vmatpush1.bf16.xpose.msra.mxu0 0
        %1224 = vmatprep.subr.bf16.mxu0 0
        %1225 = vmatpush1.bf16.xpose.msra.mxu0 0
        %1226 = vmatprep.subr.bf16.mxu0 0
        %1227 = vmatpush1.bf16.xpose.msra.mxu0 0
        %1228 = vmatprep.subr.bf16.mxu0 0
        %1229 = vmatpush1.bf16.xpose.msra.mxu0 0
        %1230 = vmatprep.subr.bf16.mxu0 0
        %1231 = vmatpush1.bf16.xpose.msra.mxu0 0
        %1232 = vmatprep.subr.bf16.mxu0 0
        %1233 = vmatpush1.bf16.xpose.msra.mxu0 0
        %1234 = vmatprep.subr.bf16.mxu0 0
        %1235 = vmatpush1.bf16.xpose.msra.mxu0 0
        %1236 = vmatprep.subr.bf16.mxu0 0
        %1237 = vmatpush1.bf16.xpose.msra.mxu0 0
        %1238 = vmatprep.subr.bf16.mxu0 0
        %1239 = vmatpush1.bf16.xpose.msra.mxu0 0
        %1240 = vmatprep.mubr.bf16.mxu0 0
        %1241 = vmatmul.mubr.bf16.gmra.mrb[0].mxu0 %v1197
        %v1242 = vpop.f32.mrb[0].mxu0
        %v1243 = vadd.f32 0.0, %v1242
        %v1244 = vpop.f32.mrb[0].mxu0
        %v1245 = vpop.f32.mrb[0].mxu0
        %v1246 = vadd.f32 0.0, %v1245
        %v1247 = vpop.f32.mrb[0].mxu0
        %1248 = vmatprep.mubr.bf16.mxu0 0
        %1249 = vmatmul.mubr.bf16.gmra.mrb[0].mxu0 %v1200
        %v1250 = vpop.f32.mrb[0].mxu0
        %v1251 = vadd.f32 0.0, %v1250
        %v1252 = vpop.f32.mrb[0].mxu0
        %v1253 = vpop.f32.mrb[0].mxu0
        %v1254 = vpop.f32.mrb[0].mxu0
        %1255 = vdwg.mxu0
        %v1256 = vsel %vm1087, %v1243, -inf
        %1257 = vmax.xlane.f32.xlu0 %v1256
        %v1258 = vpop.xlane.xlu0 %1257
        %v1259 = vsel %vm1087, %v1246, -inf
        %1260 = vmax.xlane.f32.xlu0 %v1259
        %v1261 = vpop.xlane.xlu0 %1260
        %v1262 = vsel %vm1094, %v1251, -inf
        %1263 = vmax.xlane.f32.xlu0 %v1262
        %v1264 = vpop.xlane.xlu0 %1263
        %v1265 = vsub.f32 %v1243, %v1258
        %v1266 = vsub.f32 %v1246, %v1261
        %v1267 = vsub.f32 %v1251, %v1264
        %v1268 = vmul.f32 %v1265, 1.442695
        %v1269 = vpow.pop %v1268
        %v1270 = vmul.f32 %v1266, 1.442695
        %v1271 = vpow.pop %v1270
        %v1272 = vmul.f32 %v1267, 1.442695
        %v1273 = vpow.pop %v1272
        %v1274 = vsel %vm1087, %v1269, 0.0
        %1275 = vadd.xlane.f32.xlu0 %v1274
        %v1276 = vpop.xlane.xlu0 %1275
        %v1277 = vsel %vm1087, %v1271, 0.0
        %1278 = vadd.xlane.f32.xlu0 %v1277
        %v1279 = vpop.xlane.xlu0 %1278
        %v1280 = vsel %vm1094, %v1273, 0.0
        %1281 = vadd.xlane.f32.xlu0 %v1280
        %v1282 = vpop.xlane.xlu0 %1281
        %v1283 = vrcp.pop %v1276
        %v1284 = vrcp.pop %v1279
        %v1285 = vrcp.pop %v1282
        %v1286 = vmul.f32 %v1269, %v1283
        %v1287 = vmul.f32 %v1271, %v1284
        %v1288 = vmul.f32 %v1273, %v1285
        %v1289 = vpack.c.bf16 %v1287, %v1286
        %v1290 = vpack.c.bf16 %v1288, %v1288
        %1291 = vrot.lane.b32.xlu0 %v1018, 56
        %v1292 = vpop.permute.xlu0 %1291
        %1293 = vrot.lane.b32.xlu0 %v1019, 56
        %v1294 = vpop.permute.xlu0 %1293
        %v1297 = vsel %vm1087, %v1289, 0
        %v1300 = vsel %vm1087, %v1290, 0
        %v1303 = vand.u32 %v1294, %v1136
        %1305 = vmatprep.subr.bf16.mxu0 0
        %1306 = vmatpush1.bf16.msra.mxu0 %v1292
        %1307 = vmatprep.subr.bf16.mxu0 0
        %1308 = vmatpush1.bf16.msra.mxu0 %v1303
        %1309 = vmatprep.subr.bf16.mxu0 0
        %1310 = vmatpush1.bf16.msra.mxu0 0
        %1311 = vmatprep.subr.bf16.mxu0 0
        %1312 = vmatpush1.bf16.msra.mxu0 0
        %1313 = vmatprep.subr.bf16.mxu0 0
        %1314 = vmatpush1.bf16.msra.mxu0 0
        %1315 = vmatprep.subr.bf16.mxu0 0
        %1316 = vmatpush1.bf16.msra.mxu0 0
        %1317 = vmatprep.subr.bf16.mxu0 0
        %1318 = vmatpush1.bf16.msra.mxu0 0
        %1319 = vmatprep.subr.bf16.mxu0 0
        %1320 = vmatpush1.bf16.msra.mxu0 0
        %1321 = vmatprep.subr.bf16.mxu0 0
        %1322 = vmatpush1.bf16.msra.mxu0 0
        %1323 = vmatprep.subr.bf16.mxu0 0
        %1324 = vmatpush1.bf16.msra.mxu0 0
        %1325 = vmatprep.subr.bf16.mxu0 0
        %1326 = vmatpush1.bf16.msra.mxu0 0
        %1327 = vmatprep.subr.bf16.mxu0 0
        %1328 = vmatpush1.bf16.msra.mxu0 0
        %1329 = vmatprep.subr.bf16.mxu0 0
        %1330 = vmatpush1.bf16.msra.mxu0 0
        %1331 = vmatprep.subr.bf16.mxu0 0
        %1332 = vmatpush1.bf16.msra.mxu0 0
        %1333 = vmatprep.subr.bf16.mxu0 0
        %1334 = vmatpush1.bf16.msra.mxu0 0
        %1335 = vmatprep.subr.bf16.mxu0 0
        %1336 = vmatpush1.bf16.msra.mxu0 0
        %1337 = vmatprep.mubr.bf16.mxu0 0
        %1338 = vmatmul.mubr.bf16.gmra.mrb[0].mxu0 %v1297
        %v1339 = vpop.f32.mrb[0].mxu0
        %v1340 = vadd.f32 0.0, %v1339
        %v1341 = vpop.f32.mrb[0].mxu0
        %v1342 = vpop.f32.mrb[0].mxu0
        %v1343 = vadd.f32 0.0, %v1342
        %v1344 = vpop.f32.mrb[0].mxu0
        %1345 = vmatprep.mubr.bf16.mxu0 0
        %1346 = vmatmul.mubr.bf16.gmra.mrb[0].mxu0 %v1300
        %v1347 = vpop.f32.mrb[0].mxu0
        %v1348 = vadd.f32 0.0, %v1347
        %v1349 = vpop.f32.mrb[0].mxu0
        %v1350 = vpop.f32.mrb[0].mxu0
        %v1351 = vpop.f32.mrb[0].mxu0
        %1352 = vdwg.mxu0
        %1353 = vrot.lane.b32.xlu0 %v1018, 112
        %v1354 = vpop.permute.xlu0 %1353
        %1355 = vrot.lane.b32.xlu0 %v1019, 112
        %v1356 = vpop.permute.xlu0 %1355
        %1357 = vrot.lane.b32.xlu0 %v1018, 80
        %v1358 = vpop.permute.xlu0 %1357
        %1359 = vrot.lane.b32.xlu0 %v1019, 80
        %v1360 = vpop.permute.xlu0 %1359
        %v1362 = vsel %vm1026, %v1354, 0
        %v1365 = vsel %vm1026, %v1356, 0
        %v1368 = vsel %vm1026, %v1358, 0
        %v1371 = vsel %vm1026, %v1360, 0
        %1373 = vmatprep.subr.bf16.mxu0 0
        %1374 = vmatpush1.bf16.xpose.msra.mxu0 %v1368
        %1375 = vmatprep.subr.bf16.mxu0 0
        %1376 = vmatpush1.bf16.xpose.msra.mxu0 %v1371
        %1377 = vmatprep.subr.bf16.mxu0 0
        %1378 = vmatpush1.bf16.xpose.msra.mxu0 0
        %1379 = vmatprep.subr.bf16.mxu0 0
        %1380 = vmatpush1.bf16.xpose.msra.mxu0 0
        %1381 = vmatprep.subr.bf16.mxu0 0
        %1382 = vmatpush1.bf16.xpose.msra.mxu0 0
        %1383 = vmatprep.subr.bf16.mxu0 0
        %1384 = vmatpush1.bf16.xpose.msra.mxu0 0
        %1385 = vmatprep.subr.bf16.mxu0 0
        %1386 = vmatpush1.bf16.xpose.msra.mxu0 0
        %1387 = vmatprep.subr.bf16.mxu0 0
        %1388 = vmatpush1.bf16.xpose.msra.mxu0 0
        %1389 = vmatprep.subr.bf16.mxu0 0
        %1390 = vmatpush1.bf16.xpose.msra.mxu0 0
        %1391 = vmatprep.subr.bf16.mxu0 0
        %1392 = vmatpush1.bf16.xpose.msra.mxu0 0
        %1393 = vmatprep.subr.bf16.mxu0 0
        %1394 = vmatpush1.bf16.xpose.msra.mxu0 0
        %1395 = vmatprep.subr.bf16.mxu0 0
        %1396 = vmatpush1.bf16.xpose.msra.mxu0 0
        %1397 = vmatprep.subr.bf16.mxu0 0
        %1398 = vmatpush1.bf16.xpose.msra.mxu0 0
        %1399 = vmatprep.subr.bf16.mxu0 0
        %1400 = vmatpush1.bf16.xpose.msra.mxu0 0
        %1401 = vmatprep.subr.bf16.mxu0 0
        %1402 = vmatpush1.bf16.xpose.msra.mxu0 0
        %1403 = vmatprep.subr.bf16.mxu0 0
        %1404 = vmatpush1.bf16.xpose.msra.mxu0 0
        %1405 = vmatprep.mubr.bf16.mxu0 0
        %1406 = vmatmul.mubr.bf16.gmra.mrb[0].mxu0 %v1362
        %v1407 = vpop.f32.mrb[0].mxu0
        %v1408 = vadd.f32 0.0, %v1407
        %v1409 = vpop.f32.mrb[0].mxu0
        %v1410 = vpop.f32.mrb[0].mxu0
        %v1411 = vadd.f32 0.0, %v1410
        %v1412 = vpop.f32.mrb[0].mxu0
        %1413 = vmatprep.mubr.bf16.mxu0 0
        %1414 = vmatmul.mubr.bf16.gmra.mrb[0].mxu0 %v1365
        %v1415 = vpop.f32.mrb[0].mxu0
        %v1416 = vadd.f32 0.0, %v1415
        %v1417 = vpop.f32.mrb[0].mxu0
        %v1418 = vpop.f32.mrb[0].mxu0
        %v1419 = vpop.f32.mrb[0].mxu0
        %1420 = vdwg.mxu0
        %v1421 = vsel %vm1087, %v1408, -inf
        %1422 = vmax.xlane.f32.xlu0 %v1421
        %v1423 = vpop.xlane.xlu0 %1422
        %v1424 = vsel %vm1087, %v1411, -inf
        %1425 = vmax.xlane.f32.xlu0 %v1424
        %v1426 = vpop.xlane.xlu0 %1425
        %v1427 = vsel %vm1094, %v1416, -inf
        %1428 = vmax.xlane.f32.xlu0 %v1427
        %v1429 = vpop.xlane.xlu0 %1428
        %v1430 = vsub.f32 %v1408, %v1423
        %v1431 = vsub.f32 %v1411, %v1426
        %v1432 = vsub.f32 %v1416, %v1429
        %v1433 = vmul.f32 %v1430, 1.442695
        %v1434 = vpow.pop %v1433
        %v1435 = vmul.f32 %v1431, 1.442695
        %v1436 = vpow.pop %v1435
        %v1437 = vmul.f32 %v1432, 1.442695
        %v1438 = vpow.pop %v1437
        %v1439 = vsel %vm1087, %v1434, 0.0
        %1440 = vadd.xlane.f32.xlu0 %v1439
        %v1441 = vpop.xlane.xlu0 %1440
        %v1442 = vsel %vm1087, %v1436, 0.0
        %1443 = vadd.xlane.f32.xlu0 %v1442
        %v1444 = vpop.xlane.xlu0 %1443
        %v1445 = vsel %vm1094, %v1438, 0.0
        %1446 = vadd.xlane.f32.xlu0 %v1445
        %v1447 = vpop.xlane.xlu0 %1446
        %v1448 = vrcp.pop %v1441
        %v1449 = vrcp.pop %v1444
        %v1450 = vrcp.pop %v1447
        %v1451 = vmul.f32 %v1434, %v1448
        %v1452 = vmul.f32 %v1436, %v1449
        %v1453 = vmul.f32 %v1438, %v1450
        %v1454 = vpack.c.bf16 %v1452, %v1451
        %v1455 = vpack.c.bf16 %v1453, %v1453
        %1456 = vrot.lane.b32.xlu0 %v1018, 48
        %v1457 = vpop.permute.xlu0 %1456
        %1458 = vrot.lane.b32.xlu0 %v1019, 48
        %v1459 = vpop.permute.xlu0 %1458
        %v1462 = vsel %vm1087, %v1454, 0
        %v1465 = vsel %vm1087, %v1455, 0
        %v1468 = vand.u32 %v1459, %v1136
        %1470 = vmatprep.subr.bf16.mxu0 0
        %1471 = vmatpush1.bf16.msra.mxu0 %v1457
        %1472 = vmatprep.subr.bf16.mxu0 0
        %1473 = vmatpush1.bf16.msra.mxu0 %v1468
        %1474 = vmatprep.subr.bf16.mxu0 0
        %1475 = vmatpush1.bf16.msra.mxu0 0
        %1476 = vmatprep.subr.bf16.mxu0 0
        %1477 = vmatpush1.bf16.msra.mxu0 0
        %1478 = vmatprep.subr.bf16.mxu0 0
        %1479 = vmatpush1.bf16.msra.mxu0 0
        %1480 = vmatprep.subr.bf16.mxu0 0
        %1481 = vmatpush1.bf16.msra.mxu0 0
        %1482 = vmatprep.subr.bf16.mxu0 0
        %1483 = vmatpush1.bf16.msra.mxu0 0
        %1484 = vmatprep.subr.bf16.mxu0 0
        %1485 = vmatpush1.bf16.msra.mxu0 0
        %1486 = vmatprep.subr.bf16.mxu0 0
        %1487 = vmatpush1.bf16.msra.mxu0 0
        %1488 = vmatprep.subr.bf16.mxu0 0
        %1489 = vmatpush1.bf16.msra.mxu0 0
        %1490 = vmatprep.subr.bf16.mxu0 0
        %1491 = vmatpush1.bf16.msra.mxu0 0
        %1492 = vmatprep.subr.bf16.mxu0 0
        %1493 = vmatpush1.bf16.msra.mxu0 0
        %1494 = vmatprep.subr.bf16.mxu0 0
        %1495 = vmatpush1.bf16.msra.mxu0 0
        %1496 = vmatprep.subr.bf16.mxu0 0
        %1497 = vmatpush1.bf16.msra.mxu0 0
        %1498 = vmatprep.subr.bf16.mxu0 0
        %1499 = vmatpush1.bf16.msra.mxu0 0
        %1500 = vmatprep.subr.bf16.mxu0 0
        %1501 = vmatpush1.bf16.msra.mxu0 0
        %1502 = vmatprep.mubr.bf16.mxu0 0
        %1503 = vmatmul.mubr.bf16.gmra.mrb[0].mxu0 %v1462
        %v1504 = vpop.f32.mrb[0].mxu0
        %v1505 = vadd.f32 0.0, %v1504
        %v1506 = vpop.f32.mrb[0].mxu0
        %v1507 = vpop.f32.mrb[0].mxu0
        %v1508 = vadd.f32 0.0, %v1507
        %v1509 = vpop.f32.mrb[0].mxu0
        %1510 = vmatprep.mubr.bf16.mxu0 0
        %1511 = vmatmul.mubr.bf16.gmra.mrb[0].mxu0 %v1465
        %v1512 = vpop.f32.mrb[0].mxu0
        %v1513 = vadd.f32 0.0, %v1512
        %v1514 = vpop.f32.mrb[0].mxu0
        %v1515 = vpop.f32.mrb[0].mxu0
        %v1516 = vpop.f32.mrb[0].mxu0
        %1517 = vdwg.mxu0
        %1518 = vrot.lane.b32.xlu0 %v1018, 104
        %v1519 = vpop.permute.xlu0 %1518
        %1520 = vrot.lane.b32.xlu0 %v1019, 104
        %v1521 = vpop.permute.xlu0 %1520
        %1522 = vrot.lane.b32.xlu0 %v1018, 72
        %v1523 = vpop.permute.xlu0 %1522
        %1524 = vrot.lane.b32.xlu0 %v1019, 72
        %v1525 = vpop.permute.xlu0 %1524
        %v1527 = vsel %vm1026, %v1519, 0
        %v1530 = vsel %vm1026, %v1521, 0
        %v1533 = vsel %vm1026, %v1523, 0
        %v1536 = vsel %vm1026, %v1525, 0
        %1538 = vmatprep.subr.bf16.mxu0 0
        %1539 = vmatpush1.bf16.xpose.msra.mxu0 %v1533
        %1540 = vmatprep.subr.bf16.mxu0 0
        %1541 = vmatpush1.bf16.xpose.msra.mxu0 %v1536
        %1542 = vmatprep.subr.bf16.mxu0 0
        %1543 = vmatpush1.bf16.xpose.msra.mxu0 0
        %1544 = vmatprep.subr.bf16.mxu0 0
        %1545 = vmatpush1.bf16.xpose.msra.mxu0 0
        %1546 = vmatprep.subr.bf16.mxu0 0
        %1547 = vmatpush1.bf16.xpose.msra.mxu0 0
        %1548 = vmatprep.subr.bf16.mxu0 0
        %1549 = vmatpush1.bf16.xpose.msra.mxu0 0
        %1550 = vmatprep.subr.bf16.mxu0 0
        %1551 = vmatpush1.bf16.xpose.msra.mxu0 0
        %1552 = vmatprep.subr.bf16.mxu0 0
        %1553 = vmatpush1.bf16.xpose.msra.mxu0 0
        %1554 = vmatprep.subr.bf16.mxu0 0
        %1555 = vmatpush1.bf16.xpose.msra.mxu0 0
        %1556 = vmatprep.subr.bf16.mxu0 0
        %1557 = vmatpush1.bf16.xpose.msra.mxu0 0
        %1558 = vmatprep.subr.bf16.mxu0 0
        %1559 = vmatpush1.bf16.xpose.msra.mxu0 0
        %1560 = vmatprep.subr.bf16.mxu0 0
        %1561 = vmatpush1.bf16.xpose.msra.mxu0 0
        %1562 = vmatprep.subr.bf16.mxu0 0
        %1563 = vmatpush1.bf16.xpose.msra.mxu0 0
        %1564 = vmatprep.subr.bf16.mxu0 0
        %1565 = vmatpush1.bf16.xpose.msra.mxu0 0
        %1566 = vmatprep.subr.bf16.mxu0 0
        %1567 = vmatpush1.bf16.xpose.msra.mxu0 0
        %1568 = vmatprep.subr.bf16.mxu0 0
        %1569 = vmatpush1.bf16.xpose.msra.mxu0 0
        %1570 = vmatprep.mubr.bf16.mxu0 0
        %1571 = vmatmul.mubr.bf16.gmra.mrb[0].mxu0 %v1527
        %v1572 = vpop.f32.mrb[0].mxu0
        %v1573 = vadd.f32 0.0, %v1572
        %v1574 = vpop.f32.mrb[0].mxu0
        %v1575 = vpop.f32.mrb[0].mxu0
        %v1576 = vadd.f32 0.0, %v1575
        %v1577 = vpop.f32.mrb[0].mxu0
        %1578 = vmatprep.mubr.bf16.mxu0 0
        %1579 = vmatmul.mubr.bf16.gmra.mrb[0].mxu0 %v1530
        %v1580 = vpop.f32.mrb[0].mxu0
        %v1581 = vadd.f32 0.0, %v1580
        %v1582 = vpop.f32.mrb[0].mxu0
        %v1583 = vpop.f32.mrb[0].mxu0
        %v1584 = vpop.f32.mrb[0].mxu0
        %1585 = vdwg.mxu0
        %v1586 = vsel %vm1087, %v1573, -inf
        %1587 = vmax.xlane.f32.xlu0 %v1586
        %v1588 = vpop.xlane.xlu0 %1587
        %v1589 = vsel %vm1087, %v1576, -inf
        %1590 = vmax.xlane.f32.xlu0 %v1589
        %v1591 = vpop.xlane.xlu0 %1590
        %v1592 = vsel %vm1094, %v1581, -inf
        %1593 = vmax.xlane.f32.xlu0 %v1592
        %v1594 = vpop.xlane.xlu0 %1593
        %v1595 = vsub.f32 %v1573, %v1588
        %v1596 = vsub.f32 %v1576, %v1591
        %v1597 = vsub.f32 %v1581, %v1594
        %v1598 = vmul.f32 %v1595, 1.442695
        %v1599 = vpow.pop %v1598
        %v1600 = vmul.f32 %v1596, 1.442695
        %v1601 = vpow.pop %v1600
        %v1602 = vmul.f32 %v1597, 1.442695
        %v1603 = vpow.pop %v1602
        %v1604 = vsel %vm1087, %v1599, 0.0
        %1605 = vadd.xlane.f32.xlu0 %v1604
        %v1606 = vpop.xlane.xlu0 %1605
        %v1607 = vsel %vm1087, %v1601, 0.0
        %1608 = vadd.xlane.f32.xlu0 %v1607
        %v1609 = vpop.xlane.xlu0 %1608
        %v1610 = vsel %vm1094, %v1603, 0.0
        %1611 = vadd.xlane.f32.xlu0 %v1610
        %v1612 = vpop.xlane.xlu0 %1611
        %v1613 = vrcp.pop %v1606
        %v1614 = vrcp.pop %v1609
        %v1615 = vrcp.pop %v1612
        %v1616 = vmul.f32 %v1599, %v1613
        %v1617 = vmul.f32 %v1601, %v1614
        %v1618 = vmul.f32 %v1603, %v1615
        %v1619 = vpack.c.bf16 %v1617, %v1616
        %v1620 = vpack.c.bf16 %v1618, %v1618
        %1621 = vrot.lane.b32.xlu0 %v1018, 40
        %v1622 = vpop.permute.xlu0 %1621
        %1623 = vrot.lane.b32.xlu0 %v1019, 40
        %v1624 = vpop.permute.xlu0 %1623
        %v1627 = vsel %vm1087, %v1619, 0
        %v1630 = vsel %vm1087, %v1620, 0
        %v1633 = vand.u32 %v1624, %v1136
        %1635 = vmatprep.subr.bf16.mxu0 0
        %1636 = vmatpush1.bf16.msra.mxu0 %v1622
        %1637 = vmatprep.subr.bf16.mxu0 0
        %1638 = vmatpush1.bf16.msra.mxu0 %v1633
        %1639 = vmatprep.subr.bf16.mxu0 0
        %1640 = vmatpush1.bf16.msra.mxu0 0
        %1641 = vmatprep.subr.bf16.mxu0 0
        %1642 = vmatpush1.bf16.msra.mxu0 0
        %1643 = vmatprep.subr.bf16.mxu0 0
        %1644 = vmatpush1.bf16.msra.mxu0 0
        %1645 = vmatprep.subr.bf16.mxu0 0
        %1646 = vmatpush1.bf16.msra.mxu0 0
        %1647 = vmatprep.subr.bf16.mxu0 0
        %1648 = vmatpush1.bf16.msra.mxu0 0
        %1649 = vmatprep.subr.bf16.mxu0 0
        %1650 = vmatpush1.bf16.msra.mxu0 0
        %1651 = vmatprep.subr.bf16.mxu0 0
        %1652 = vmatpush1.bf16.msra.mxu0 0
        %1653 = vmatprep.subr.bf16.mxu0 0
        %1654 = vmatpush1.bf16.msra.mxu0 0
        %1655 = vmatprep.subr.bf16.mxu0 0
        %1656 = vmatpush1.bf16.msra.mxu0 0
        %1657 = vmatprep.subr.bf16.mxu0 0
        %1658 = vmatpush1.bf16.msra.mxu0 0
        %1659 = vmatprep.subr.bf16.mxu0 0
        %1660 = vmatpush1.bf16.msra.mxu0 0
        %1661 = vmatprep.subr.bf16.mxu0 0
        %1662 = vmatpush1.bf16.msra.mxu0 0
        %1663 = vmatprep.subr.bf16.mxu0 0
        %1664 = vmatpush1.bf16.msra.mxu0 0
        %1665 = vmatprep.subr.bf16.mxu0 0
        %1666 = vmatpush1.bf16.msra.mxu0 0
        %1667 = vmatprep.mubr.bf16.mxu0 0
        %1668 = vmatmul.mubr.bf16.gmra.mrb[0].mxu0 %v1627
        %v1669 = vpop.f32.mrb[0].mxu0
        %v1670 = vadd.f32 0.0, %v1669
        %v1671 = vpop.f32.mrb[0].mxu0
        %v1672 = vpop.f32.mrb[0].mxu0
        %v1673 = vadd.f32 0.0, %v1672
        %v1674 = vpop.f32.mrb[0].mxu0
        %1675 = vmatprep.mubr.bf16.mxu0 0
        %1676 = vmatmul.mubr.bf16.gmra.mrb[0].mxu0 %v1630
        %v1677 = vpop.f32.mrb[0].mxu0
        %v1678 = vadd.f32 0.0, %v1677
        %v1679 = vpop.f32.mrb[0].mxu0
        %v1680 = vpop.f32.mrb[0].mxu0
        %v1681 = vpop.f32.mrb[0].mxu0
        %1682 = vdwg.mxu0
        %1686 = vrot.lane.b32.xlu0 %v1340, 8
        %v1687 = vpop.permute.xlu0 %1686
        %1688 = vrot.lane.b32.xlu0 %v1343, 8
        %v1689 = vpop.permute.xlu0 %1688
        %1690 = vrot.lane.b32.xlu0 %v1348, 8
        %v1691 = vpop.permute.xlu0 %1690
        %1698 = vrot.lane.b32.xlu0 %v1505, 16
        %v1699 = vpop.permute.xlu0 %1698
        %1700 = vrot.lane.b32.xlu0 %v1508, 16
        %v1701 = vpop.permute.xlu0 %1700
        %1702 = vrot.lane.b32.xlu0 %v1513, 16
        %v1703 = vpop.permute.xlu0 %1702
        %1710 = vrot.lane.b32.xlu0 %v1670, 24
        %v1711 = vpop.permute.xlu0 %1710
        %1712 = vrot.lane.b32.xlu0 %v1673, 24
        %v1713 = vpop.permute.xlu0 %1712
        %1714 = vrot.lane.b32.xlu0 %v1678, 24
        %v1715 = vpop.permute.xlu0 %1714
        %v1719 = vsel %vm1026, %v1175, %v1687
        %v1720 = vsel %vm1026, %v1178, %v1689
        %v1721 = vsel %vm1026, %v1183, %v1691
        %vm1722 = vcmask 130048
        %v1723 = vsel %vm1722, %v1719, %v1699
        %v1724 = vsel %vm1722, %v1720, %v1701
        %v1725 = vsel %vm1722, %v1721, %v1703
        %vm1726 = vcmask 195584
        %v1727 = vsel %vm1726, %v1723, %v1711
        %v1728 = vsel %vm1726, %v1724, %v1713
        %v1729 = vsel %vm1726, %v1725, %v1715
        %v1730 = vpack.c.bf16 %v1728, %v1727
        %v1731 = vpack.c.bf16 %v1729, %v1729
        %v1732 = vld [vmem:[%s9] sm:$0xf]
        %v1733 = vld [vmem:[%s9 + $0x4] sm:$0xf]
        %v1734 = vld [vmem:[%s9 + $0x8] sm:$0xf]
        %v1735 = vld [vmem:[%s9 + $0xc] sm:$0xf]
        %v1736 = vld [vmem:[%s10] sm:$0x1]
        %v1737 = vlaneseq
        %v1738 = vshrl.u32 %v1737, 7
        %v1739 = vsub.s32 0, %v1738
        %v1740 = vrot.slane %v1736, %v1739
        %v1745 = vunpack.c.l.b16 %v1732
        %v1746 = vunpack.c.l.b16 %v1733
        %v1747 = vunpack.c.l.b16 %v1734
        %v1748 = vunpack.c.l.b16 %v1735
        %v1749 = vpack.c.b16 %v1746, %v1745
        %v1750 = vpack.c.b16 %v1748, %v1747
        %v1754 = vsel %vm826, %v1730, 0
        %v1757 = vsel %vm826, %v1731, 0
        %1759 = vmatprep.subr.bf16.mxu0 0
        %1760 = vmatpush1.bf16.msra.mxu0 %v1749
        %1761 = vmatprep.subr.bf16.mxu0 0
        %1762 = vmatpush1.bf16.msra.mxu0 %v1750
        %1763 = vmatprep.subr.bf16.mxu0 0
        %1764 = vmatpush1.bf16.msra.mxu0 0
        %1765 = vmatprep.subr.bf16.mxu0 0
        %1766 = vmatpush1.bf16.msra.mxu0 0
        %1767 = vmatprep.subr.bf16.mxu0 0
        %1768 = vmatpush1.bf16.msra.mxu0 0
        %1769 = vmatprep.subr.bf16.mxu0 0
        %1770 = vmatpush1.bf16.msra.mxu0 0
        %1771 = vmatprep.subr.bf16.mxu0 0
        %1772 = vmatpush1.bf16.msra.mxu0 0
        %1773 = vmatprep.subr.bf16.mxu0 0
        %1774 = vmatpush1.bf16.msra.mxu0 0
        %1775 = vmatprep.subr.bf16.mxu0 0
        %1776 = vmatpush1.bf16.msra.mxu0 0
        %1777 = vmatprep.subr.bf16.mxu0 0
        %1778 = vmatpush1.bf16.msra.mxu0 0
        %1779 = vmatprep.subr.bf16.mxu0 0
        %1780 = vmatpush1.bf16.msra.mxu0 0
        %1781 = vmatprep.subr.bf16.mxu0 0
        %1782 = vmatpush1.bf16.msra.mxu0 0
        %1783 = vmatprep.subr.bf16.mxu0 0
        %1784 = vmatpush1.bf16.msra.mxu0 0
        %1785 = vmatprep.subr.bf16.mxu0 0
        %1786 = vmatpush1.bf16.msra.mxu0 0
        %1787 = vmatprep.subr.bf16.mxu0 0
        %1788 = vmatpush1.bf16.msra.mxu0 0
        %1789 = vmatprep.subr.bf16.mxu0 0
        %1790 = vmatpush1.bf16.msra.mxu0 0
        %1791 = vmatprep.mubr.bf16.mxu0 0
        %1792 = vmatmul.mubr.bf16.gmra.mrb[0].mxu0 %v1754
        %v1793 = vpop.f32.mrb[0].mxu0
        %v1794 = vadd.f32 %v1740, %v1793
        %v1795 = vpop.f32.mrb[0].mxu0
        %v1796 = vpop.f32.mrb[0].mxu0
        %v1797 = vadd.f32 %v1740, %v1796
        %v1798 = vpop.f32.mrb[0].mxu0
        %1799 = vmatprep.mubr.bf16.mxu0 0
        %1800 = vmatmul.mubr.bf16.gmra.mrb[0].mxu0 %v1757
        %v1801 = vpop.f32.mrb[0].mxu0
        %v1802 = vadd.f32 %v1740, %v1801
        %v1803 = vpop.f32.mrb[0].mxu0
        %v1804 = vpop.f32.mrb[0].mxu0
        %v1805 = vpop.f32.mrb[0].mxu0
        %1806 = vdwg.mxu0
        %v1807 = vadd.f32 %v883, %v1794
        %v1808 = vadd.f32 %v884, %v1797
        %v1809 = vadd.f32 %v885, %v1802
        %v1810 = vld [vmem:[%s13] sm:$0x1]
        %v1811 = vld [vmem:[%s14] sm:$0x1]
        %v1812 = vsel %vm826, %v1807, 0.0
        %1813 = vadd.xlane.f32.xlu0 %v1812
        %v1814 = vpop.xlane.xlu0 %1813
        %v1815 = vsel %vm826, %v1808, 0.0
        %1816 = vadd.xlane.f32.xlu0 %v1815
        %v1817 = vpop.xlane.xlu0 %1816
        %v1818 = vsel %vm833, %v1809, 0.0
        %1819 = vadd.xlane.f32.xlu0 %v1818
        %v1820 = vpop.xlane.xlu0 %1819
        %v1821 = vmul.f32 %v1814, %v837
        %v1822 = vmul.f32 %v1817, %v837
        %v1823 = vmul.f32 %v1820, %v837
        %v1824 = vsub.f32 %v1807, %v1821
        %v1825 = vsub.f32 %v1808, %v1822
        %v1826 = vsub.f32 %v1809, %v1823
        %v1827 = vmul.f32 %v1824, %v1824
        %v1828 = vmul.f32 %v1825, %v1825
        %v1829 = vmul.f32 %v1826, %v1826
        %v1830 = vsel %vm826, %v1827, 0.0
        %1831 = vadd.xlane.f32.xlu0 %v1830
        %v1832 = vpop.xlane.xlu0 %1831
        %v1833 = vsel %vm826, %v1828, 0.0
        %1834 = vadd.xlane.f32.xlu0 %v1833
        %v1835 = vpop.xlane.xlu0 %1834
        %v1836 = vsel %vm833, %v1829, 0.0
        %1837 = vadd.xlane.f32.xlu0 %v1836
        %v1838 = vpop.xlane.xlu0 %1837
        %v1839 = vmul.f32 %v1832, %v837
        %v1840 = vmul.f32 %v1835, %v837
        %v1841 = vmul.f32 %v1838, %v837
        %v1842 = vadd.f32 %v1839, 1e-05
        %v1843 = vadd.f32 %v1840, 1e-05
        %v1844 = vadd.f32 %v1841, 1e-05
        %v1845 = vrsqrt.pop %v1842
        %v1846 = vrsqrt.pop %v1843
        %v1847 = vrsqrt.pop %v1844
        %v1848 = vmul.f32 %v1824, %v1845
        %v1849 = vmul.f32 %v1825, %v1846
        %v1850 = vmul.f32 %v1826, %v1847
        %v1851 = vlaneseq
        %v1852 = vshrl.u32 %v1851, 7
        %v1853 = vsub.s32 0, %v1852
        %v1854 = vrot.slane %v1810, %v1853
        %v1855 = vmul.f32 %v1848, %v1854
        %v1856 = vmul.f32 %v1849, %v1854
        %v1857 = vmul.f32 %v1850, %v1854
        %v1858 = vlaneseq
        %v1859 = vshrl.u32 %v1858, 7
        %v1860 = vsub.s32 0, %v1859
        %v1861 = vrot.slane %v1811, %v1860
        %v1862 = vadd.f32 %v1855, %v1861
        %v1863 = vadd.f32 %v1856, %v1861
        %v1864 = vadd.f32 %v1857, %v1861
        %v1865 = vpack.c.bf16 %v1863, %v1862
        %v1866 = vpack.c.bf16 %v1864, %v1864
        %v1867 = vld [vmem:[%s15] sm:$0xf]
        %v1868 = vld [vmem:[%s15 + $0x4] sm:$0xf]
        %v1869 = vld [vmem:[%s15 + $0x8] sm:$0xf]
        %v1870 = vld [vmem:[%s15 + $0xc] sm:$0xf]
        %v1871 = vld [vmem:[%s16] sm:$0x1]
        %v1872 = vlaneseq
        %v1873 = vshrl.u32 %v1872, 7
        %v1874 = vsub.s32 0, %v1873
        %v1875 = vrot.slane %v1871, %v1874
        %v1880 = vunpack.c.l.b16 %v1867
        %v1881 = vunpack.c.l.b16 %v1868
        %v1882 = vunpack.c.l.b16 %v1869
        %v1883 = vunpack.c.l.b16 %v1870
        %v1884 = vpack.c.b16 %v1881, %v1880
        %v1885 = vpack.c.b16 %v1883, %v1882
        %v1889 = vsel %vm826, %v1865, 0
        %v1892 = vsel %vm826, %v1866, 0
        %1894 = vmatprep.subr.bf16.mxu0 0
        %1895 = vmatpush1.bf16.msra.mxu0 %v1884
        %1896 = vmatprep.subr.bf16.mxu0 0
        %1897 = vmatpush1.bf16.msra.mxu0 %v1885
        %1898 = vmatprep.subr.bf16.mxu0 0
        %1899 = vmatpush1.bf16.msra.mxu0 0
        %1900 = vmatprep.subr.bf16.mxu0 0
        %1901 = vmatpush1.bf16.msra.mxu0 0
        %1902 = vmatprep.subr.bf16.mxu0 0
        %1903 = vmatpush1.bf16.msra.mxu0 0
        %1904 = vmatprep.subr.bf16.mxu0 0
        %1905 = vmatpush1.bf16.msra.mxu0 0
        %1906 = vmatprep.subr.bf16.mxu0 0
        %1907 = vmatpush1.bf16.msra.mxu0 0
        %1908 = vmatprep.subr.bf16.mxu0 0
        %1909 = vmatpush1.bf16.msra.mxu0 0
        %1910 = vmatprep.subr.bf16.mxu0 0
        %1911 = vmatpush1.bf16.msra.mxu0 0
        %1912 = vmatprep.subr.bf16.mxu0 0
        %1913 = vmatpush1.bf16.msra.mxu0 0
        %1914 = vmatprep.subr.bf16.mxu0 0
        %1915 = vmatpush1.bf16.msra.mxu0 0
        %1916 = vmatprep.subr.bf16.mxu0 0
        %1917 = vmatpush1.bf16.msra.mxu0 0
        %1918 = vmatprep.subr.bf16.mxu0 0
        %1919 = vmatpush1.bf16.msra.mxu0 0
        %1920 = vmatprep.subr.bf16.mxu0 0
        %1921 = vmatpush1.bf16.msra.mxu0 0
        %1922 = vmatprep.subr.bf16.mxu0 0
        %1923 = vmatpush1.bf16.msra.mxu0 0
        %1924 = vmatprep.subr.bf16.mxu0 0
        %1925 = vmatpush1.bf16.msra.mxu0 0
        %1926 = vmatprep.mubr.bf16.mxu0 0
        %1927 = vmatmul.mubr.bf16.gmra.mrb[0].mxu0 %v1889
        %v1928 = vpop.f32.mrb[0].mxu0
        %v1929 = vadd.f32 %v1875, %v1928
        %v1930 = vpop.f32.mrb[0].mxu0
        %v1931 = vpop.f32.mrb[0].mxu0
        %v1932 = vadd.f32 %v1875, %v1931
        %v1933 = vpop.f32.mrb[0].mxu0
        %1934 = vmatprep.mubr.bf16.mxu0 0
        %1935 = vmatmul.mubr.bf16.gmra.mrb[0].mxu0 %v1892
        %v1936 = vpop.f32.mrb[0].mxu0
        %v1937 = vadd.f32 %v1875, %v1936
        %v1938 = vpop.f32.mrb[0].mxu0
        %v1939 = vpop.f32.mrb[0].mxu0
        %v1940 = vpop.f32.mrb[0].mxu0
        %1941 = vdwg.mxu0
        %v1942 = vmul.f32 %v1929, 1.702
        %v1943 = vmul.f32 %v1932, 1.702
        %v1944 = vmul.f32 %v1937, 1.702
        %v1945 = vxor.u32 %v1942, 2147483648
        %v1946 = vxor.u32 %v1943, 2147483648
        %v1947 = vxor.u32 %v1944, 2147483648
        %v1948 = vmul.f32 %v1945, 1.442695
        %v1949 = vpow.pop %v1948
        %v1950 = vmul.f32 %v1946, 1.442695
        %v1951 = vpow.pop %v1950
        %v1952 = vmul.f32 %v1947, 1.442695
        %v1953 = vpow.pop %v1952
        %v1954 = vadd.f32 %v1949, 1.0
        %v1955 = vadd.f32 %v1951, 1.0
        %v1956 = vadd.f32 %v1953, 1.0
        %v1957 = vrcp.pop %v1954
        %v1958 = vmul.f32 1.0, %v1957
        %v1959 = vrcp.pop %v1955
        %v1960 = vmul.f32 1.0, %v1959
        %v1961 = vrcp.pop %v1956
        %v1962 = vmul.f32 1.0, %v1961
        %v1963 = vmul.f32 %v1929, %v1958
        %v1964 = vmul.f32 %v1932, %v1960
        %v1965 = vmul.f32 %v1937, %v1962
        %v1966 = vpack.c.bf16 %v1964, %v1963
        %v1967 = vpack.c.bf16 %v1965, %v1965
        %v1968 = vld [vmem:[%s17] sm:$0xf]
        %v1969 = vld [vmem:[%s17 + $0x4] sm:$0xf]
        %v1970 = vld [vmem:[%s17 + $0x8] sm:$0xf]
        %v1971 = vld [vmem:[%s17 + $0xc] sm:$0xf]
        %v1972 = vld [vmem:[%s17 + $0x10] sm:$0xf]
        %v1973 = vld [vmem:[%s17 + $0x14] sm:$0xf]
        %v1974 = vld [vmem:[%s17 + $0x18] sm:$0xf]
        %v1975 = vld [vmem:[%s17 + $0x1c] sm:$0xf]
        %v1976 = vld [vmem:[%s18] sm:$0x1]
        %v1977 = vlaneseq
        %v1978 = vshrl.u32 %v1977, 7
        %v1979 = vsub.s32 0, %v1978
        %v1980 = vrot.slane %v1976, %v1979
        %v1989 = vunpack.c.l.b16 %v1968
        %v1990 = vunpack.c.l.b16 %v1969
        %v1991 = vunpack.c.l.b16 %v1970
        %v1992 = vunpack.c.l.b16 %v1971
        %v1993 = vunpack.c.l.b16 %v1972
        %v1994 = vunpack.c.l.b16 %v1973
        %v1995 = vunpack.c.l.b16 %v1974
        %v1996 = vunpack.c.l.b16 %v1975
        %v1997 = vpack.c.b16 %v1990, %v1989
        %v1998 = vpack.c.b16 %v1992, %v1991
        %v1999 = vpack.c.b16 %v1994, %v1993
        %v2000 = vpack.c.b16 %v1996, %v1995
        %v2006 = vsel %vm764, %v1966, 0
        %v2009 = vsel %vm764, %v1967, 0
        %2011 = vmatprep.subr.bf16.mxu0 0
        %2012 = vmatpush1.bf16.msra.mxu0 %v1997
        %2013 = vmatprep.subr.bf16.mxu0 0
        %2014 = vmatpush1.bf16.msra.mxu0 %v1998
        %2015 = vmatprep.subr.bf16.mxu0 0
        %2016 = vmatpush1.bf16.msra.mxu0 %v1999
        %2017 = vmatprep.subr.bf16.mxu0 0
        %2018 = vmatpush1.bf16.msra.mxu0 %v2000
        %2019 = vmatprep.subr.bf16.mxu0 0
        %2020 = vmatpush1.bf16.msra.mxu0 0
        %2021 = vmatprep.subr.bf16.mxu0 0
        %2022 = vmatpush1.bf16.msra.mxu0 0
        %2023 = vmatprep.subr.bf16.mxu0 0
        %2024 = vmatpush1.bf16.msra.mxu0 0
        %2025 = vmatprep.subr.bf16.mxu0 0
        %2026 = vmatpush1.bf16.msra.mxu0 0
        %2027 = vmatprep.subr.bf16.mxu0 0
        %2028 = vmatpush1.bf16.msra.mxu0 0
        %2029 = vmatprep.subr.bf16.mxu0 0
        %2030 = vmatpush1.bf16.msra.mxu0 0
        %2031 = vmatprep.subr.bf16.mxu0 0
        %2032 = vmatpush1.bf16.msra.mxu0 0
        %2033 = vmatprep.subr.bf16.mxu0 0
        %2034 = vmatpush1.bf16.msra.mxu0 0
        %2035 = vmatprep.subr.bf16.mxu0 0
        %2036 = vmatpush1.bf16.msra.mxu0 0
        %2037 = vmatprep.subr.bf16.mxu0 0
        %2038 = vmatpush1.bf16.msra.mxu0 0
        %2039 = vmatprep.subr.bf16.mxu0 0
        %2040 = vmatpush1.bf16.msra.mxu0 0
        %2041 = vmatprep.subr.bf16.mxu0 0
        %2042 = vmatpush1.bf16.msra.mxu0 0
        %2043 = vmatprep.mubr.bf16.mxu0 0
        %2044 = vmatmul.mubr.bf16.gmra.mrb[0].mxu0 %v2006
        %v2045 = vpop.f32.mrb[0].mxu0
        %v2046 = vadd.f32 %v1980, %v2045
        %v2047 = vpop.f32.mrb[0].mxu0
        %v2048 = vpop.f32.mrb[0].mxu0
        %v2049 = vadd.f32 %v1980, %v2048
        %v2050 = vpop.f32.mrb[0].mxu0
        %2051 = vmatprep.mubr.bf16.mxu0 0
        %2052 = vmatmul.mubr.bf16.gmra.mrb[0].mxu0 %v2009
        %v2053 = vpop.f32.mrb[0].mxu0
        %v2054 = vadd.f32 %v1980, %v2053
        %v2055 = vpop.f32.mrb[0].mxu0
        %v2056 = vpop.f32.mrb[0].mxu0
        %v2057 = vpop.f32.mrb[0].mxu0
        %2058 = vdwg.mxu0
        %v2059 = vadd.f32 %v1807, %v2046
        %v2060 = vadd.f32 %v1808, %v2049
        %v2061 = vadd.f32 %v1809, %v2054
        %v2062 = vld [vmem:[%s11 + $0x1] sm:$0x1]
        %v2063 = vld [vmem:[%s12 + $0x1] sm:$0x1]
        %v2064 = vsel %vm826, %v2059, 0.0
        %2065 = vadd.xlane.f32.xlu0 %v2064
        %v2066 = vpop.xlane.xlu0 %2065
        %v2067 = vsel %vm826, %v2060, 0.0
        %2068 = vadd.xlane.f32.xlu0 %v2067
        %v2069 = vpop.xlane.xlu0 %2068
        %v2070 = vsel %vm833, %v2061, 0.0
        %2071 = vadd.xlane.f32.xlu0 %v2070
        %v2072 = vpop.xlane.xlu0 %2071
        %v2073 = vmul.f32 %v2066, %v837
        %v2074 = vmul.f32 %v2069, %v837
        %v2075 = vmul.f32 %v2072, %v837
        %v2076 = vsub.f32 %v2059, %v2073
        %v2077 = vsub.f32 %v2060, %v2074
        %v2078 = vsub.f32 %v2061, %v2075
        %v2079 = vmul.f32 %v2076, %v2076
        %v2080 = vmul.f32 %v2077, %v2077
        %v2081 = vmul.f32 %v2078, %v2078
        %v2082 = vsel %vm826, %v2079, 0.0
        %2083 = vadd.xlane.f32.xlu0 %v2082
        %v2084 = vpop.xlane.xlu0 %2083
        %v2085 = vsel %vm826, %v2080, 0.0
        %2086 = vadd.xlane.f32.xlu0 %v2085
        %v2087 = vpop.xlane.xlu0 %2086
        %v2088 = vsel %vm833, %v2081, 0.0
        %2089 = vadd.xlane.f32.xlu0 %v2088
        %v2090 = vpop.xlane.xlu0 %2089
        %v2091 = vmul.f32 %v2084, %v837
        %v2092 = vmul.f32 %v2087, %v837
        %v2093 = vmul.f32 %v2090, %v837
        %v2094 = vadd.f32 %v2091, 1e-05
        %v2095 = vadd.f32 %v2092, 1e-05
        %v2096 = vadd.f32 %v2093, 1e-05
        %v2097 = vrsqrt.pop %v2094
        %v2098 = vrsqrt.pop %v2095
        %v2099 = vrsqrt.pop %v2096
        %v2100 = vmul.f32 %v2076, %v2097
        %v2101 = vmul.f32 %v2077, %v2098
        %v2102 = vmul.f32 %v2078, %v2099
        %v2103 = vlaneseq
        %v2104 = vshrl.u32 %v2103, 7
        %v2105 = vsub.s32 0, %v2104
        %v2106 = vrot.slane %v2062, %v2105
        %v2107 = vmul.f32 %v2100, %v2106
        %v2108 = vmul.f32 %v2101, %v2106
        %v2109 = vmul.f32 %v2102, %v2106
        %v2110 = vlaneseq
        %v2111 = vshrl.u32 %v2110, 7
        %v2112 = vsub.s32 0, %v2111
        %v2113 = vrot.slane %v2063, %v2112
        %v2114 = vadd.f32 %v2107, %v2113
        %v2115 = vadd.f32 %v2108, %v2113
        %v2116 = vadd.f32 %v2109, %v2113
        %v2117 = vpack.c.bf16 %v2115, %v2114
        %v2118 = vpack.c.bf16 %v2116, %v2116
        %v2119 = vld [vmem:[%s7 + $0x10] sm:$0xf]
        %v2120 = vld [vmem:[%s7 + $0x14] sm:$0xf]
        %v2121 = vld [vmem:[%s7 + $0x18] sm:$0xf]
        %v2122 = vld [vmem:[%s7 + $0x1c] sm:$0xf]
        %v2123 = vld [vmem:[%s8 + $0x1] sm:$0x1]
        %v2124 = vlaneseq
        %v2125 = vshrl.u32 %v2124, 7
        %v2126 = vsub.s32 0, %v2125
        %v2127 = vrot.slane %v2123, %v2126
        %v2132 = vunpack.c.l.b16 %v2119
        %v2133 = vunpack.c.l.b16 %v2120
        %v2134 = vunpack.c.l.b16 %v2121
        %v2135 = vunpack.c.l.b16 %v2122
        %v2136 = vpack.c.b16 %v2133, %v2132
        %v2137 = vpack.c.b16 %v2135, %v2134
        %v2141 = vsel %vm826, %v2117, 0
        %v2144 = vsel %vm826, %v2118, 0
        %2146 = vmatprep.subr.bf16.mxu0 0
        %2147 = vmatpush1.bf16.msra.mxu0 %v2136
        %2148 = vmatprep.subr.bf16.mxu0 0
        %2149 = vmatpush1.bf16.msra.mxu0 %v2137
        %2150 = vmatprep.subr.bf16.mxu0 0
        %2151 = vmatpush1.bf16.msra.mxu0 0
        %2152 = vmatprep.subr.bf16.mxu0 0
        %2153 = vmatpush1.bf16.msra.mxu0 0
        %2154 = vmatprep.subr.bf16.mxu0 0
        %2155 = vmatpush1.bf16.msra.mxu0 0
        %2156 = vmatprep.subr.bf16.mxu0 0
        %2157 = vmatpush1.bf16.msra.mxu0 0
        %2158 = vmatprep.subr.bf16.mxu0 0
        %2159 = vmatpush1.bf16.msra.mxu0 0
        %2160 = vmatprep.subr.bf16.mxu0 0
        %2161 = vmatpush1.bf16.msra.mxu0 0
        %2162 = vmatprep.subr.bf16.mxu0 0
        %2163 = vmatpush1.bf16.msra.mxu0 0
        %2164 = vmatprep.subr.bf16.mxu0 0
        %2165 = vmatpush1.bf16.msra.mxu0 0
        %2166 = vmatprep.subr.bf16.mxu0 0
        %2167 = vmatpush1.bf16.msra.mxu0 0
        %2168 = vmatprep.subr.bf16.mxu0 0
        %2169 = vmatpush1.bf16.msra.mxu0 0
        %2170 = vmatprep.subr.bf16.mxu0 0
        %2171 = vmatpush1.bf16.msra.mxu0 0
        %2172 = vmatprep.subr.bf16.mxu0 0
        %2173 = vmatpush1.bf16.msra.mxu0 0
        %2174 = vmatprep.subr.bf16.mxu0 0
        %2175 = vmatpush1.bf16.msra.mxu0 0
        %2176 = vmatprep.subr.bf16.mxu0 0
        %2177 = vmatpush1.bf16.msra.mxu0 0
        %2178 = vmatprep.mubr.bf16.mxu0 0
        %2179 = vmatmul.mubr.bf16.gmra.mrb[0].mxu0 %v2141
        %v2180 = vpop.f32.mrb[0].mxu0
        %v2181 = vadd.f32 %v2127, %v2180
        %v2182 = vpop.f32.mrb[0].mxu0
        %v2183 = vpop.f32.mrb[0].mxu0
        %v2184 = vadd.f32 %v2127, %v2183
        %v2185 = vpop.f32.mrb[0].mxu0
        %2186 = vmatprep.mubr.bf16.mxu0 0
        %2187 = vmatmul.mubr.bf16.gmra.mrb[0].mxu0 %v2144
        %v2188 = vpop.f32.mrb[0].mxu0
        %v2189 = vadd.f32 %v2127, %v2188
        %v2190 = vpop.f32.mrb[0].mxu0
        %v2191 = vpop.f32.mrb[0].mxu0
        %v2192 = vpop.f32.mrb[0].mxu0
        %2193 = vdwg.mxu0
        %v2194 = vpack.c.bf16 %v2184, %v2181
        %v2195 = vpack.c.bf16 %v2189, %v2189
        %2198 = vrot.lane.b32.xlu0 %v2194, 96
        %v2199 = vpop.permute.xlu0 %2198
        %2200 = vrot.lane.b32.xlu0 %v2195, 96
        %v2201 = vpop.permute.xlu0 %2200
        %v2203 = vsel %vm1026, %v2194, 0
        %v2206 = vsel %vm1026, %v2195, 0
        %v2209 = vsel %vm1026, %v2199, 0
        %v2212 = vsel %vm1026, %v2201, 0
        %2214 = vmatprep.subr.bf16.mxu0 0
        %2215 = vmatpush1.bf16.xpose.msra.mxu0 %v2209
        %2216 = vmatprep.subr.bf16.mxu0 0
        %2217 = vmatpush1.bf16.xpose.msra.mxu0 %v2212
        %2218 = vmatprep.subr.bf16.mxu0 0
        %2219 = vmatpush1.bf16.xpose.msra.mxu0 0
        %2220 = vmatprep.subr.bf16.mxu0 0
        %2221 = vmatpush1.bf16.xpose.msra.mxu0 0
        %2222 = vmatprep.subr.bf16.mxu0 0
        %2223 = vmatpush1.bf16.xpose.msra.mxu0 0
        %2224 = vmatprep.subr.bf16.mxu0 0
        %2225 = vmatpush1.bf16.xpose.msra.mxu0 0
        %2226 = vmatprep.subr.bf16.mxu0 0
        %2227 = vmatpush1.bf16.xpose.msra.mxu0 0
        %2228 = vmatprep.subr.bf16.mxu0 0
        %2229 = vmatpush1.bf16.xpose.msra.mxu0 0
        %2230 = vmatprep.subr.bf16.mxu0 0
        %2231 = vmatpush1.bf16.xpose.msra.mxu0 0
        %2232 = vmatprep.subr.bf16.mxu0 0
        %2233 = vmatpush1.bf16.xpose.msra.mxu0 0
        %2234 = vmatprep.subr.bf16.mxu0 0
        %2235 = vmatpush1.bf16.xpose.msra.mxu0 0
        %2236 = vmatprep.subr.bf16.mxu0 0
        %2237 = vmatpush1.bf16.xpose.msra.mxu0 0
        %2238 = vmatprep.subr.bf16.mxu0 0
        %2239 = vmatpush1.bf16.xpose.msra.mxu0 0
        %2240 = vmatprep.subr.bf16.mxu0 0
        %2241 = vmatpush1.bf16.xpose.msra.mxu0 0
        %2242 = vmatprep.subr.bf16.mxu0 0
        %2243 = vmatpush1.bf16.xpose.msra.mxu0 0
        %2244 = vmatprep.subr.bf16.mxu0 0
        %2245 = vmatpush1.bf16.xpose.msra.mxu0 0
        %2246 = vmatprep.mubr.bf16.mxu0 0
        %2247 = vmatmul.mubr.bf16.gmra.mrb[0].mxu0 %v2203
        %v2248 = vpop.f32.mrb[0].mxu0
        %v2249 = vadd.f32 0.0, %v2248
        %v2250 = vpop.f32.mrb[0].mxu0
        %v2251 = vpop.f32.mrb[0].mxu0
        %v2252 = vadd.f32 0.0, %v2251
        %v2253 = vpop.f32.mrb[0].mxu0
        %2254 = vmatprep.mubr.bf16.mxu0 0
        %2255 = vmatmul.mubr.bf16.gmra.mrb[0].mxu0 %v2206
        %v2256 = vpop.f32.mrb[0].mxu0
        %v2257 = vadd.f32 0.0, %v2256
        %v2258 = vpop.f32.mrb[0].mxu0
        %v2259 = vpop.f32.mrb[0].mxu0
        %v2260 = vpop.f32.mrb[0].mxu0
        %2261 = vdwg.mxu0
        %v2262 = vsel %vm1087, %v2249, -inf
        %2263 = vmax.xlane.f32.xlu0 %v2262
        %v2264 = vpop.xlane.xlu0 %2263
        %v2265 = vsel %vm1087, %v2252, -inf
        %2266 = vmax.xlane.f32.xlu0 %v2265
        %v2267 = vpop.xlane.xlu0 %2266
        %v2268 = vsel %vm1094, %v2257, -inf
        %2269 = vmax.xlane.f32.xlu0 %v2268
        %v2270 = vpop.xlane.xlu0 %2269
        %v2271 = vsub.f32 %v2249, %v2264
        %v2272 = vsub.f32 %v2252, %v2267
        %v2273 = vsub.f32 %v2257, %v2270
        %v2274 = vmul.f32 %v2271, 1.442695
        %v2275 = vpow.pop %v2274
        %v2276 = vmul.f32 %v2272, 1.442695
        %v2277 = vpow.pop %v2276
        %v2278 = vmul.f32 %v2273, 1.442695
        %v2279 = vpow.pop %v2278
        %v2280 = vsel %vm1087, %v2275, 0.0
        %2281 = vadd.xlane.f32.xlu0 %v2280
        %v2282 = vpop.xlane.xlu0 %2281
        %v2283 = vsel %vm1087, %v2277, 0.0
        %2284 = vadd.xlane.f32.xlu0 %v2283
        %v2285 = vpop.xlane.xlu0 %2284
        %v2286 = vsel %vm1094, %v2279, 0.0
        %2287 = vadd.xlane.f32.xlu0 %v2286
        %v2288 = vpop.xlane.xlu0 %2287
        %v2289 = vrcp.pop %v2282
        %v2290 = vrcp.pop %v2285
        %v2291 = vrcp.pop %v2288
        %v2292 = vmul.f32 %v2275, %v2289
        %v2293 = vmul.f32 %v2277, %v2290
        %v2294 = vmul.f32 %v2279, %v2291
        %v2295 = vpack.c.bf16 %v2293, %v2292
        %v2296 = vpack.c.bf16 %v2294, %v2294
        %2297 = vrot.lane.b32.xlu0 %v2194, 64
        %v2298 = vpop.permute.xlu0 %2297
        %2299 = vrot.lane.b32.xlu0 %v2195, 64
        %v2300 = vpop.permute.xlu0 %2299
        %v2303 = vsel %vm1087, %v2295, 0
        %v2306 = vsel %vm1087, %v2296, 0
        %v2309 = vand.u32 %v2300, %v1136
        %2311 = vmatprep.subr.bf16.mxu0 0
        %2312 = vmatpush1.bf16.msra.mxu0 %v2298
        %2313 = vmatprep.subr.bf16.mxu0 0
        %2314 = vmatpush1.bf16.msra.mxu0 %v2309
        %2315 = vmatprep.subr.bf16.mxu0 0
        %2316 = vmatpush1.bf16.msra.mxu0 0
        %2317 = vmatprep.subr.bf16.mxu0 0
        %2318 = vmatpush1.bf16.msra.mxu0 0
        %2319 = vmatprep.subr.bf16.mxu0 0
        %2320 = vmatpush1.bf16.msra.mxu0 0
        %2321 = vmatprep.subr.bf16.mxu0 0
        %2322 = vmatpush1.bf16.msra.mxu0 0
        %2323 = vmatprep.subr.bf16.mxu0 0
        %2324 = vmatpush1.bf16.msra.mxu0 0
        %2325 = vmatprep.subr.bf16.mxu0 0
        %2326 = vmatpush1.bf16.msra.mxu0 0
        %2327 = vmatprep.subr.bf16.mxu0 0
        %2328 = vmatpush1.bf16.msra.mxu0 0
        %2329 = vmatprep.subr.bf16.mxu0 0
        %2330 = vmatpush1.bf16.msra.mxu0 0
        %2331 = vmatprep.subr.bf16.mxu0 0
        %2332 = vmatpush1.bf16.msra.mxu0 0
        %2333 = vmatprep.subr.bf16.mxu0 0
        %2334 = vmatpush1.bf16.msra.mxu0 0
        %2335 = vmatprep.subr.bf16.mxu0 0
        %2336 = vmatpush1.bf16.msra.mxu0 0
        %2337 = vmatprep.subr.bf16.mxu0 0
        %2338 = vmatpush1.bf16.msra.mxu0 0
        %2339 = vmatprep.subr.bf16.mxu0 0
        %2340 = vmatpush1.bf16.msra.mxu0 0
        %2341 = vmatprep.subr.bf16.mxu0 0
        %2342 = vmatpush1.bf16.msra.mxu0 0
        %2343 = vmatprep.mubr.bf16.mxu0 0
        %2344 = vmatmul.mubr.bf16.gmra.mrb[0].mxu0 %v2303
        %v2345 = vpop.f32.mrb[0].mxu0
        %v2346 = vadd.f32 0.0, %v2345
        %v2347 = vpop.f32.mrb[0].mxu0
        %v2348 = vpop.f32.mrb[0].mxu0
        %v2349 = vadd.f32 0.0, %v2348
        %v2350 = vpop.f32.mrb[0].mxu0
        %2351 = vmatprep.mubr.bf16.mxu0 0
        %2352 = vmatmul.mubr.bf16.gmra.mrb[0].mxu0 %v2306
        %v2353 = vpop.f32.mrb[0].mxu0
        %v2354 = vadd.f32 0.0, %v2353
        %v2355 = vpop.f32.mrb[0].mxu0
        %v2356 = vpop.f32.mrb[0].mxu0
        %v2357 = vpop.f32.mrb[0].mxu0
        %2358 = vdwg.mxu0
        %2359 = vrot.lane.b32.xlu0 %v2194, 120
        %v2360 = vpop.permute.xlu0 %2359
        %2361 = vrot.lane.b32.xlu0 %v2195, 120
        %v2362 = vpop.permute.xlu0 %2361
        %2363 = vrot.lane.b32.xlu0 %v2194, 88
        %v2364 = vpop.permute.xlu0 %2363
        %2365 = vrot.lane.b32.xlu0 %v2195, 88
        %v2366 = vpop.permute.xlu0 %2365
        %v2368 = vsel %vm1026, %v2360, 0
        %v2371 = vsel %vm1026, %v2362, 0
        %v2374 = vsel %vm1026, %v2364, 0
        %v2377 = vsel %vm1026, %v2366, 0
        %2379 = vmatprep.subr.bf16.mxu0 0
        %2380 = vmatpush1.bf16.xpose.msra.mxu0 %v2374
        %2381 = vmatprep.subr.bf16.mxu0 0
        %2382 = vmatpush1.bf16.xpose.msra.mxu0 %v2377
        %2383 = vmatprep.subr.bf16.mxu0 0
        %2384 = vmatpush1.bf16.xpose.msra.mxu0 0
        %2385 = vmatprep.subr.bf16.mxu0 0
        %2386 = vmatpush1.bf16.xpose.msra.mxu0 0
        %2387 = vmatprep.subr.bf16.mxu0 0
        %2388 = vmatpush1.bf16.xpose.msra.mxu0 0
        %2389 = vmatprep.subr.bf16.mxu0 0
        %2390 = vmatpush1.bf16.xpose.msra.mxu0 0
        %2391 = vmatprep.subr.bf16.mxu0 0
        %2392 = vmatpush1.bf16.xpose.msra.mxu0 0
        %2393 = vmatprep.subr.bf16.mxu0 0
        %2394 = vmatpush1.bf16.xpose.msra.mxu0 0
        %2395 = vmatprep.subr.bf16.mxu0 0
        %2396 = vmatpush1.bf16.xpose.msra.mxu0 0
        %2397 = vmatprep.subr.bf16.mxu0 0
        %2398 = vmatpush1.bf16.xpose.msra.mxu0 0
        %2399 = vmatprep.subr.bf16.mxu0 0
        %2400 = vmatpush1.bf16.xpose.msra.mxu0 0
        %2401 = vmatprep.subr.bf16.mxu0 0
        %2402 = vmatpush1.bf16.xpose.msra.mxu0 0
        %2403 = vmatprep.subr.bf16.mxu0 0
        %2404 = vmatpush1.bf16.xpose.msra.mxu0 0
        %2405 = vmatprep.subr.bf16.mxu0 0
        %2406 = vmatpush1.bf16.xpose.msra.mxu0 0
        %2407 = vmatprep.subr.bf16.mxu0 0
        %2408 = vmatpush1.bf16.xpose.msra.mxu0 0
        %2409 = vmatprep.subr.bf16.mxu0 0
        %2410 = vmatpush1.bf16.xpose.msra.mxu0 0
        %2411 = vmatprep.mubr.bf16.mxu0 0
        %2412 = vmatmul.mubr.bf16.gmra.mrb[0].mxu0 %v2368
        %v2413 = vpop.f32.mrb[0].mxu0
        %v2414 = vadd.f32 0.0, %v2413
        %v2415 = vpop.f32.mrb[0].mxu0
        %v2416 = vpop.f32.mrb[0].mxu0
        %v2417 = vadd.f32 0.0, %v2416
        %v2418 = vpop.f32.mrb[0].mxu0
        %2419 = vmatprep.mubr.bf16.mxu0 0
        %2420 = vmatmul.mubr.bf16.gmra.mrb[0].mxu0 %v2371
        %v2421 = vpop.f32.mrb[0].mxu0
        %v2422 = vadd.f32 0.0, %v2421
        %v2423 = vpop.f32.mrb[0].mxu0
        %v2424 = vpop.f32.mrb[0].mxu0
        %v2425 = vpop.f32.mrb[0].mxu0
        %2426 = vdwg.mxu0
        %v2427 = vsel %vm1087, %v2414, -inf
        %2428 = vmax.xlane.f32.xlu0 %v2427
        %v2429 = vpop.xlane.xlu0 %2428
        %v2430 = vsel %vm1087, %v2417, -inf
        %2431 = vmax.xlane.f32.xlu0 %v2430
        %v2432 = vpop.xlane.xlu0 %2431
        %v2433 = vsel %vm1094, %v2422, -inf
        %2434 = vmax.xlane.f32.xlu0 %v2433
        %v2435 = vpop.xlane.xlu0 %2434
        %v2436 = vsub.f32 %v2414, %v2429
        %v2437 = vsub.f32 %v2417, %v2432
        %v2438 = vsub.f32 %v2422, %v2435
        %v2439 = vmul.f32 %v2436, 1.442695
        %v2440 = vpow.pop %v2439
        %v2441 = vmul.f32 %v2437, 1.442695
        %v2442 = vpow.pop %v2441
        %v2443 = vmul.f32 %v2438, 1.442695
        %v2444 = vpow.pop %v2443
        %v2445 = vsel %vm1087, %v2440, 0.0
        %2446 = vadd.xlane.f32.xlu0 %v2445
        %v2447 = vpop.xlane.xlu0 %2446
        %v2448 = vsel %vm1087, %v2442, 0.0
        %2449 = vadd.xlane.f32.xlu0 %v2448
        %v2450 = vpop.xlane.xlu0 %2449
        %v2451 = vsel %vm1094, %v2444, 0.0
        %2452 = vadd.xlane.f32.xlu0 %v2451
        %v2453 = vpop.xlane.xlu0 %2452
        %v2454 = vrcp.pop %v2447
        %v2455 = vrcp.pop %v2450
        %v2456 = vrcp.pop %v2453
        %v2457 = vmul.f32 %v2440, %v2454
        %v2458 = vmul.f32 %v2442, %v2455
        %v2459 = vmul.f32 %v2444, %v2456
        %v2460 = vpack.c.bf16 %v2458, %v2457
        %v2461 = vpack.c.bf16 %v2459, %v2459
        %2462 = vrot.lane.b32.xlu0 %v2194, 56
        %v2463 = vpop.permute.xlu0 %2462
        %2464 = vrot.lane.b32.xlu0 %v2195, 56
        %v2465 = vpop.permute.xlu0 %2464
        %v2468 = vsel %vm1087, %v2460, 0
        %v2471 = vsel %vm1087, %v2461, 0
        %v2474 = vand.u32 %v2465, %v1136
        %2476 = vmatprep.subr.bf16.mxu0 0
        %2477 = vmatpush1.bf16.msra.mxu0 %v2463
        %2478 = vmatprep.subr.bf16.mxu0 0
        %2479 = vmatpush1.bf16.msra.mxu0 %v2474
        %2480 = vmatprep.subr.bf16.mxu0 0
        %2481 = vmatpush1.bf16.msra.mxu0 0
        %2482 = vmatprep.subr.bf16.mxu0 0
        %2483 = vmatpush1.bf16.msra.mxu0 0
        %2484 = vmatprep.subr.bf16.mxu0 0
        %2485 = vmatpush1.bf16.msra.mxu0 0
        %2486 = vmatprep.subr.bf16.mxu0 0
        %2487 = vmatpush1.bf16.msra.mxu0 0
        %2488 = vmatprep.subr.bf16.mxu0 0
        %2489 = vmatpush1.bf16.msra.mxu0 0
        %2490 = vmatprep.subr.bf16.mxu0 0
        %2491 = vmatpush1.bf16.msra.mxu0 0
        %2492 = vmatprep.subr.bf16.mxu0 0
        %2493 = vmatpush1.bf16.msra.mxu0 0
        %2494 = vmatprep.subr.bf16.mxu0 0
        %2495 = vmatpush1.bf16.msra.mxu0 0
        %2496 = vmatprep.subr.bf16.mxu0 0
        %2497 = vmatpush1.bf16.msra.mxu0 0
        %2498 = vmatprep.subr.bf16.mxu0 0
        %2499 = vmatpush1.bf16.msra.mxu0 0
        %2500 = vmatprep.subr.bf16.mxu0 0
        %2501 = vmatpush1.bf16.msra.mxu0 0
        %2502 = vmatprep.subr.bf16.mxu0 0
        %2503 = vmatpush1.bf16.msra.mxu0 0
        %2504 = vmatprep.subr.bf16.mxu0 0
        %2505 = vmatpush1.bf16.msra.mxu0 0
        %2506 = vmatprep.subr.bf16.mxu0 0
        %2507 = vmatpush1.bf16.msra.mxu0 0
        %2508 = vmatprep.mubr.bf16.mxu0 0
        %2509 = vmatmul.mubr.bf16.gmra.mrb[0].mxu0 %v2468
        %v2510 = vpop.f32.mrb[0].mxu0
        %v2511 = vadd.f32 0.0, %v2510
        %v2512 = vpop.f32.mrb[0].mxu0
        %v2513 = vpop.f32.mrb[0].mxu0
        %v2514 = vadd.f32 0.0, %v2513
        %v2515 = vpop.f32.mrb[0].mxu0
        %2516 = vmatprep.mubr.bf16.mxu0 0
        %2517 = vmatmul.mubr.bf16.gmra.mrb[0].mxu0 %v2471
        %v2518 = vpop.f32.mrb[0].mxu0
        %v2519 = vadd.f32 0.0, %v2518
        %v2520 = vpop.f32.mrb[0].mxu0
        %v2521 = vpop.f32.mrb[0].mxu0
        %v2522 = vpop.f32.mrb[0].mxu0
        %2523 = vdwg.mxu0
        %2524 = vrot.lane.b32.xlu0 %v2194, 112
        %v2525 = vpop.permute.xlu0 %2524
        %2526 = vrot.lane.b32.xlu0 %v2195, 112
        %v2527 = vpop.permute.xlu0 %2526
        %2528 = vrot.lane.b32.xlu0 %v2194, 80
        %v2529 = vpop.permute.xlu0 %2528
        %2530 = vrot.lane.b32.xlu0 %v2195, 80
        %v2531 = vpop.permute.xlu0 %2530
        %v2533 = vsel %vm1026, %v2525, 0
        %v2536 = vsel %vm1026, %v2527, 0
        %v2539 = vsel %vm1026, %v2529, 0
        %v2542 = vsel %vm1026, %v2531, 0
        %2544 = vmatprep.subr.bf16.mxu0 0
        %2545 = vmatpush1.bf16.xpose.msra.mxu0 %v2539
        %2546 = vmatprep.subr.bf16.mxu0 0
        %2547 = vmatpush1.bf16.xpose.msra.mxu0 %v2542
        %2548 = vmatprep.subr.bf16.mxu0 0
        %2549 = vmatpush1.bf16.xpose.msra.mxu0 0
        %2550 = vmatprep.subr.bf16.mxu0 0
        %2551 = vmatpush1.bf16.xpose.msra.mxu0 0
        %2552 = vmatprep.subr.bf16.mxu0 0
        %2553 = vmatpush1.bf16.xpose.msra.mxu0 0
        %2554 = vmatprep.subr.bf16.mxu0 0
        %2555 = vmatpush1.bf16.xpose.msra.mxu0 0
        %2556 = vmatprep.subr.bf16.mxu0 0
        %2557 = vmatpush1.bf16.xpose.msra.mxu0 0
        %2558 = vmatprep.subr.bf16.mxu0 0
        %2559 = vmatpush1.bf16.xpose.msra.mxu0 0
        %2560 = vmatprep.subr.bf16.mxu0 0
        %2561 = vmatpush1.bf16.xpose.msra.mxu0 0
        %2562 = vmatprep.subr.bf16.mxu0 0
        %2563 = vmatpush1.bf16.xpose.msra.mxu0 0
        %2564 = vmatprep.subr.bf16.mxu0 0
        %2565 = vmatpush1.bf16.xpose.msra.mxu0 0
        %2566 = vmatprep.subr.bf16.mxu0 0
        %2567 = vmatpush1.bf16.xpose.msra.mxu0 0
        %2568 = vmatprep.subr.bf16.mxu0 0
        %2569 = vmatpush1.bf16.xpose.msra.mxu0 0
        %2570 = vmatprep.subr.bf16.mxu0 0
        %2571 = vmatpush1.bf16.xpose.msra.mxu0 0
        %2572 = vmatprep.subr.bf16.mxu0 0
        %2573 = vmatpush1.bf16.xpose.msra.mxu0 0
        %2574 = vmatprep.subr.bf16.mxu0 0
        %2575 = vmatpush1.bf16.xpose.msra.mxu0 0
        %2576 = vmatprep.mubr.bf16.mxu0 0
        %2577 = vmatmul.mubr.bf16.gmra.mrb[0].mxu0 %v2533
        %v2578 = vpop.f32.mrb[0].mxu0
        %v2579 = vadd.f32 0.0, %v2578
        %v2580 = vpop.f32.mrb[0].mxu0
        %v2581 = vpop.f32.mrb[0].mxu0
        %v2582 = vadd.f32 0.0, %v2581
        %v2583 = vpop.f32.mrb[0].mxu0
        %2584 = vmatprep.mubr.bf16.mxu0 0
        %2585 = vmatmul.mubr.bf16.gmra.mrb[0].mxu0 %v2536
        %v2586 = vpop.f32.mrb[0].mxu0
        %v2587 = vadd.f32 0.0, %v2586
        %v2588 = vpop.f32.mrb[0].mxu0
        %v2589 = vpop.f32.mrb[0].mxu0
        %v2590 = vpop.f32.mrb[0].mxu0
        %2591 = vdwg.mxu0
        %v2592 = vsel %vm1087, %v2579, -inf
        %2593 = vmax.xlane.f32.xlu0 %v2592
        %v2594 = vpop.xlane.xlu0 %2593
        %v2595 = vsel %vm1087, %v2582, -inf
        %2596 = vmax.xlane.f32.xlu0 %v2595
        %v2597 = vpop.xlane.xlu0 %2596
        %v2598 = vsel %vm1094, %v2587, -inf
        %2599 = vmax.xlane.f32.xlu0 %v2598
        %v2600 = vpop.xlane.xlu0 %2599
        %v2601 = vsub.f32 %v2579, %v2594
        %v2602 = vsub.f32 %v2582, %v2597
        %v2603 = vsub.f32 %v2587, %v2600
        %v2604 = vmul.f32 %v2601, 1.442695
        %v2605 = vpow.pop %v2604
        %v2606 = vmul.f32 %v2602, 1.442695
        %v2607 = vpow.pop %v2606
        %v2608 = vmul.f32 %v2603, 1.442695
        %v2609 = vpow.pop %v2608
        %v2610 = vsel %vm1087, %v2605, 0.0
        %2611 = vadd.xlane.f32.xlu0 %v2610
        %v2612 = vpop.xlane.xlu0 %2611
        %v2613 = vsel %vm1087, %v2607, 0.0
        %2614 = vadd.xlane.f32.xlu0 %v2613
        %v2615 = vpop.xlane.xlu0 %2614
        %v2616 = vsel %vm1094, %v2609, 0.0
        %2617 = vadd.xlane.f32.xlu0 %v2616
        %v2618 = vpop.xlane.xlu0 %2617
        %v2619 = vrcp.pop %v2612
        %v2620 = vrcp.pop %v2615
        %v2621 = vrcp.pop %v2618
        %v2622 = vmul.f32 %v2605, %v2619
        %v2623 = vmul.f32 %v2607, %v2620
        %v2624 = vmul.f32 %v2609, %v2621
        %v2625 = vpack.c.bf16 %v2623, %v2622
        %v2626 = vpack.c.bf16 %v2624, %v2624
        %2627 = vrot.lane.b32.xlu0 %v2194, 48
        %v2628 = vpop.permute.xlu0 %2627
        %2629 = vrot.lane.b32.xlu0 %v2195, 48
        %v2630 = vpop.permute.xlu0 %2629
        %v2633 = vsel %vm1087, %v2625, 0
        %v2636 = vsel %vm1087, %v2626, 0
        %v2639 = vand.u32 %v2630, %v1136
        %2641 = vmatprep.subr.bf16.mxu0 0
        %2642 = vmatpush1.bf16.msra.mxu0 %v2628
        %2643 = vmatprep.subr.bf16.mxu0 0
        %2644 = vmatpush1.bf16.msra.mxu0 %v2639
        %2645 = vmatprep.subr.bf16.mxu0 0
        %2646 = vmatpush1.bf16.msra.mxu0 0
        %2647 = vmatprep.subr.bf16.mxu0 0
        %2648 = vmatpush1.bf16.msra.mxu0 0
        %2649 = vmatprep.subr.bf16.mxu0 0
        %2650 = vmatpush1.bf16.msra.mxu0 0
        %2651 = vmatprep.subr.bf16.mxu0 0
        %2652 = vmatpush1.bf16.msra.mxu0 0
        %2653 = vmatprep.subr.bf16.mxu0 0
        %2654 = vmatpush1.bf16.msra.mxu0 0
        %2655 = vmatprep.subr.bf16.mxu0 0
        %2656 = vmatpush1.bf16.msra.mxu0 0
        %2657 = vmatprep.subr.bf16.mxu0 0
        %2658 = vmatpush1.bf16.msra.mxu0 0
        %2659 = vmatprep.subr.bf16.mxu0 0
        %2660 = vmatpush1.bf16.msra.mxu0 0
        %2661 = vmatprep.subr.bf16.mxu0 0
        %2662 = vmatpush1.bf16.msra.mxu0 0
        %2663 = vmatprep.subr.bf16.mxu0 0
        %2664 = vmatpush1.bf16.msra.mxu0 0
        %2665 = vmatprep.subr.bf16.mxu0 0
        %2666 = vmatpush1.bf16.msra.mxu0 0
        %2667 = vmatprep.subr.bf16.mxu0 0
        %2668 = vmatpush1.bf16.msra.mxu0 0
        %2669 = vmatprep.subr.bf16.mxu0 0
        %2670 = vmatpush1.bf16.msra.mxu0 0
        %2671 = vmatprep.subr.bf16.mxu0 0
        %2672 = vmatpush1.bf16.msra.mxu0 0
        %2673 = vmatprep.mubr.bf16.mxu0 0
        %2674 = vmatmul.mubr.bf16.gmra.mrb[0].mxu0 %v2633
        %v2675 = vpop.f32.mrb[0].mxu0
        %v2676 = vadd.f32 0.0, %v2675
        %v2677 = vpop.f32.mrb[0].mxu0
        %v2678 = vpop.f32.mrb[0].mxu0
        %v2679 = vadd.f32 0.0, %v2678
        %v2680 = vpop.f32.mrb[0].mxu0
        %2681 = vmatprep.mubr.bf16.mxu0 0
        %2682 = vmatmul.mubr.bf16.gmra.mrb[0].mxu0 %v2636
        %v2683 = vpop.f32.mrb[0].mxu0
        %v2684 = vadd.f32 0.0, %v2683
        %v2685 = vpop.f32.mrb[0].mxu0
        %v2686 = vpop.f32.mrb[0].mxu0
        %v2687 = vpop.f32.mrb[0].mxu0
        %2688 = vdwg.mxu0
        %2689 = vrot.lane.b32.xlu0 %v2194, 104
        %v2690 = vpop.permute.xlu0 %2689
        %2691 = vrot.lane.b32.xlu0 %v2195, 104
        %v2692 = vpop.permute.xlu0 %2691
        %2693 = vrot.lane.b32.xlu0 %v2194, 72
        %v2694 = vpop.permute.xlu0 %2693
        %2695 = vrot.lane.b32.xlu0 %v2195, 72
        %v2696 = vpop.permute.xlu0 %2695
        %v2698 = vsel %vm1026, %v2690, 0
        %v2701 = vsel %vm1026, %v2692, 0
        %v2704 = vsel %vm1026, %v2694, 0
        %v2707 = vsel %vm1026, %v2696, 0
        %2709 = vmatprep.subr.bf16.mxu0 0
        %2710 = vmatpush1.bf16.xpose.msra.mxu0 %v2704
        %2711 = vmatprep.subr.bf16.mxu0 0
        %2712 = vmatpush1.bf16.xpose.msra.mxu0 %v2707
        %2713 = vmatprep.subr.bf16.mxu0 0
        %2714 = vmatpush1.bf16.xpose.msra.mxu0 0
        %2715 = vmatprep.subr.bf16.mxu0 0
        %2716 = vmatpush1.bf16.xpose.msra.mxu0 0
        %2717 = vmatprep.subr.bf16.mxu0 0
        %2718 = vmatpush1.bf16.xpose.msra.mxu0 0
        %2719 = vmatprep.subr.bf16.mxu0 0
        %2720 = vmatpush1.bf16.xpose.msra.mxu0 0
        %2721 = vmatprep.subr.bf16.mxu0 0
        %2722 = vmatpush1.bf16.xpose.msra.mxu0 0
        %2723 = vmatprep.subr.bf16.mxu0 0
        %2724 = vmatpush1.bf16.xpose.msra.mxu0 0
        %2725 = vmatprep.subr.bf16.mxu0 0
        %2726 = vmatpush1.bf16.xpose.msra.mxu0 0
        %2727 = vmatprep.subr.bf16.mxu0 0
        %2728 = vmatpush1.bf16.xpose.msra.mxu0 0
        %2729 = vmatprep.subr.bf16.mxu0 0
        %2730 = vmatpush1.bf16.xpose.msra.mxu0 0
        %2731 = vmatprep.subr.bf16.mxu0 0
        %2732 = vmatpush1.bf16.xpose.msra.mxu0 0
        %2733 = vmatprep.subr.bf16.mxu0 0
        %2734 = vmatpush1.bf16.xpose.msra.mxu0 0
        %2735 = vmatprep.subr.bf16.mxu0 0
        %2736 = vmatpush1.bf16.xpose.msra.mxu0 0
        %2737 = vmatprep.subr.bf16.mxu0 0
        %2738 = vmatpush1.bf16.xpose.msra.mxu0 0
        %2739 = vmatprep.subr.bf16.mxu0 0
        %2740 = vmatpush1.bf16.xpose.msra.mxu0 0
        %2741 = vmatprep.mubr.bf16.mxu0 0
        %2742 = vmatmul.mubr.bf16.gmra.mrb[0].mxu0 %v2698
        %v2743 = vpop.f32.mrb[0].mxu0
        %v2744 = vadd.f32 0.0, %v2743
        %v2745 = vpop.f32.mrb[0].mxu0
        %v2746 = vpop.f32.mrb[0].mxu0
        %v2747 = vadd.f32 0.0, %v2746
        %v2748 = vpop.f32.mrb[0].mxu0
        %2749 = vmatprep.mubr.bf16.mxu0 0
        %2750 = vmatmul.mubr.bf16.gmra.mrb[0].mxu0 %v2701
        %v2751 = vpop.f32.mrb[0].mxu0
        %v2752 = vadd.f32 0.0, %v2751
        %v2753 = vpop.f32.mrb[0].mxu0
        %v2754 = vpop.f32.mrb[0].mxu0
        %v2755 = vpop.f32.mrb[0].mxu0
        %2756 = vdwg.mxu0
        %v2757 = vsel %vm1087, %v2744, -inf
        %2758 = vmax.xlane.f32.xlu0 %v2757
        %v2759 = vpop.xlane.xlu0 %2758
        %v2760 = vsel %vm1087, %v2747, -inf
        %2761 = vmax.xlane.f32.xlu0 %v2760
        %v2762 = vpop.xlane.xlu0 %2761
        %v2763 = vsel %vm1094, %v2752, -inf
        %2764 = vmax.xlane.f32.xlu0 %v2763
        %v2765 = vpop.xlane.xlu0 %2764
        %v2766 = vsub.f32 %v2744, %v2759
        %v2767 = vsub.f32 %v2747, %v2762
        %v2768 = vsub.f32 %v2752, %v2765
        %v2769 = vmul.f32 %v2766, 1.442695
        %v2770 = vpow.pop %v2769
        %v2771 = vmul.f32 %v2767, 1.442695
        %v2772 = vpow.pop %v2771
        %v2773 = vmul.f32 %v2768, 1.442695
        %v2774 = vpow.pop %v2773
        %v2775 = vsel %vm1087, %v2770, 0.0
        %2776 = vadd.xlane.f32.xlu0 %v2775
        %v2777 = vpop.xlane.xlu0 %2776
        %v2778 = vsel %vm1087, %v2772, 0.0
        %2779 = vadd.xlane.f32.xlu0 %v2778
        %v2780 = vpop.xlane.xlu0 %2779
        %v2781 = vsel %vm1094, %v2774, 0.0
        %2782 = vadd.xlane.f32.xlu0 %v2781
        %v2783 = vpop.xlane.xlu0 %2782
        %v2784 = vrcp.pop %v2777
        %v2785 = vrcp.pop %v2780
        %v2786 = vrcp.pop %v2783
        %v2787 = vmul.f32 %v2770, %v2784
        %v2788 = vmul.f32 %v2772, %v2785
        %v2789 = vmul.f32 %v2774, %v2786
        %v2790 = vpack.c.bf16 %v2788, %v2787
        %v2791 = vpack.c.bf16 %v2789, %v2789
        %2792 = vrot.lane.b32.xlu0 %v2194, 40
        %v2793 = vpop.permute.xlu0 %2792
        %2794 = vrot.lane.b32.xlu0 %v2195, 40
        %v2795 = vpop.permute.xlu0 %2794
        %v2798 = vsel %vm1087, %v2790, 0
        %v2801 = vsel %vm1087, %v2791, 0
        %v2804 = vand.u32 %v2795, %v1136
        %2806 = vmatprep.subr.bf16.mxu0 0
        %2807 = vmatpush1.bf16.msra.mxu0 %v2793
        %2808 = vmatprep.subr.bf16.mxu0 0
        %2809 = vmatpush1.bf16.msra.mxu0 %v2804
        %2810 = vmatprep.subr.bf16.mxu0 0
        %2811 = vmatpush1.bf16.msra.mxu0 0
        %2812 = vmatprep.subr.bf16.mxu0 0
        %2813 = vmatpush1.bf16.msra.mxu0 0
        %2814 = vmatprep.subr.bf16.mxu0 0
        %2815 = vmatpush1.bf16.msra.mxu0 0
        %2816 = vmatprep.subr.bf16.mxu0 0
        %2817 = vmatpush1.bf16.msra.mxu0 0
        %2818 = vmatprep.subr.bf16.mxu0 0
        %2819 = vmatpush1.bf16.msra.mxu0 0
        %2820 = vmatprep.subr.bf16.mxu0 0
        %2821 = vmatpush1.bf16.msra.mxu0 0
        %2822 = vmatprep.subr.bf16.mxu0 0
        %2823 = vmatpush1.bf16.msra.mxu0 0
        %2824 = vmatprep.subr.bf16.mxu0 0
        %2825 = vmatpush1.bf16.msra.mxu0 0
        %2826 = vmatprep.subr.bf16.mxu0 0
        %2827 = vmatpush1.bf16.msra.mxu0 0
        %2828 = vmatprep.subr.bf16.mxu0 0
        %2829 = vmatpush1.bf16.msra.mxu0 0
        %2830 = vmatprep.subr.bf16.mxu0 0
        %2831 = vmatpush1.bf16.msra.mxu0 0
        %2832 = vmatprep.subr.bf16.mxu0 0
        %2833 = vmatpush1.bf16.msra.mxu0 0
        %2834 = vmatprep.subr.bf16.mxu0 0
        %2835 = vmatpush1.bf16.msra.mxu0 0
        %2836 = vmatprep.subr.bf16.mxu0 0
        %2837 = vmatpush1.bf16.msra.mxu0 0
        %2838 = vmatprep.mubr.bf16.mxu0 0
        %2839 = vmatmul.mubr.bf16.gmra.mrb[0].mxu0 %v2798
        %v2840 = vpop.f32.mrb[0].mxu0
        %v2841 = vadd.f32 0.0, %v2840
        %v2842 = vpop.f32.mrb[0].mxu0
        %v2843 = vpop.f32.mrb[0].mxu0
        %v2844 = vadd.f32 0.0, %v2843
        %v2845 = vpop.f32.mrb[0].mxu0
        %2846 = vmatprep.mubr.bf16.mxu0 0
        %2847 = vmatmul.mubr.bf16.gmra.mrb[0].mxu0 %v2801
        %v2848 = vpop.f32.mrb[0].mxu0
        %v2849 = vadd.f32 0.0, %v2848
        %v2850 = vpop.f32.mrb[0].mxu0
        %v2851 = vpop.f32.mrb[0].mxu0
        %v2852 = vpop.f32.mrb[0].mxu0
        %2853 = vdwg.mxu0
        %2857 = vrot.lane.b32.xlu0 %v2511, 8
        %v2858 = vpop.permute.xlu0 %2857
        %2859 = vrot.lane.b32.xlu0 %v2514, 8
        %v2860 = vpop.permute.xlu0 %2859
        %2861 = vrot.lane.b32.xlu0 %v2519, 8
        %v2862 = vpop.permute.xlu0 %2861
        %2869 = vrot.lane.b32.xlu0 %v2676, 16
        %v2870 = vpop.permute.xlu0 %2869
        %2871 = vrot.lane.b32.xlu0 %v2679, 16
        %v2872 = vpop.permute.xlu0 %2871
        %2873 = vrot.lane.b32.xlu0 %v2684, 16
        %v2874 = vpop.permute.xlu0 %2873
        %2881 = vrot.lane.b32.xlu0 %v2841, 24
        %v2882 = vpop.permute.xlu0 %2881
        %2883 = vrot.lane.b32.xlu0 %v2844, 24
        %v2884 = vpop.permute.xlu0 %2883
        %2885 = vrot.lane.b32.xlu0 %v2849, 24
        %v2886 = vpop.permute.xlu0 %2885
        %v2890 = vsel %vm1026, %v2346, %v2858
        %v2891 = vsel %vm1026, %v2349, %v2860
        %v2892 = vsel %vm1026, %v2354, %v2862
        %v2893 = vsel %vm1722, %v2890, %v2870
        %v2894 = vsel %vm1722, %v2891, %v2872
        %v2895 = vsel %vm1722, %v2892, %v2874
        %v2896 = vsel %vm1726, %v2893, %v2882
        %v2897 = vsel %vm1726, %v2894, %v2884
        %v2898 = vsel %vm1726, %v2895, %v2886
        %v2899 = vpack.c.bf16 %v2897, %v2896
        %v2900 = vpack.c.bf16 %v2898, %v2898
        %v2901 = vld [vmem:[%s9 + $0x10] sm:$0xf]
        %v2902 = vld [vmem:[%s9 + $0x14] sm:$0xf]
        %v2903 = vld [vmem:[%s9 + $0x18] sm:$0xf]
        %v2904 = vld [vmem:[%s9 + $0x1c] sm:$0xf]
        %v2905 = vld [vmem:[%s10 + $0x1] sm:$0x1]
        %v2906 = vlaneseq
        %v2907 = vshrl.u32 %v2906, 7
        %v2908 = vsub.s32 0, %v2907
        %v2909 = vrot.slane %v2905, %v2908
        %v2914 = vunpack.c.l.b16 %v2901
        %v2915 = vunpack.c.l.b16 %v2902
        %v2916 = vunpack.c.l.b16 %v2903
        %v2917 = vunpack.c.l.b16 %v2904
        %v2918 = vpack.c.b16 %v2915, %v2914
        %v2919 = vpack.c.b16 %v2917, %v2916
        %v2923 = vsel %vm826, %v2899, 0
        %v2926 = vsel %vm826, %v2900, 0
        %2928 = vmatprep.subr.bf16.mxu0 0
        %2929 = vmatpush1.bf16.msra.mxu0 %v2918
        %2930 = vmatprep.subr.bf16.mxu0 0
        %2931 = vmatpush1.bf16.msra.mxu0 %v2919
        %2932 = vmatprep.subr.bf16.mxu0 0
        %2933 = vmatpush1.bf16.msra.mxu0 0
        %2934 = vmatprep.subr.bf16.mxu0 0
        %2935 = vmatpush1.bf16.msra.mxu0 0
        %2936 = vmatprep.subr.bf16.mxu0 0
        %2937 = vmatpush1.bf16.msra.mxu0 0
        %2938 = vmatprep.subr.bf16.mxu0 0
        %2939 = vmatpush1.bf16.msra.mxu0 0
        %2940 = vmatprep.subr.bf16.mxu0 0
        %2941 = vmatpush1.bf16.msra.mxu0 0
        %2942 = vmatprep.subr.bf16.mxu0 0
        %2943 = vmatpush1.bf16.msra.mxu0 0
        %2944 = vmatprep.subr.bf16.mxu0 0
        %2945 = vmatpush1.bf16.msra.mxu0 0
        %2946 = vmatprep.subr.bf16.mxu0 0
        %2947 = vmatpush1.bf16.msra.mxu0 0
        %2948 = vmatprep.subr.bf16.mxu0 0
        %2949 = vmatpush1.bf16.msra.mxu0 0
        %2950 = vmatprep.subr.bf16.mxu0 0
        %2951 = vmatpush1.bf16.msra.mxu0 0
        %2952 = vmatprep.subr.bf16.mxu0 0
        %2953 = vmatpush1.bf16.msra.mxu0 0
        %2954 = vmatprep.subr.bf16.mxu0 0
        %2955 = vmatpush1.bf16.msra.mxu0 0
        %2956 = vmatprep.subr.bf16.mxu0 0
        %2957 = vmatpush1.bf16.msra.mxu0 0
        %2958 = vmatprep.subr.bf16.mxu0 0
        %2959 = vmatpush1.bf16.msra.mxu0 0
        %2960 = vmatprep.mubr.bf16.mxu0 0
        %2961 = vmatmul.mubr.bf16.gmra.mrb[0].mxu0 %v2923
        %v2962 = vpop.f32.mrb[0].mxu0
        %v2963 = vadd.f32 %v2909, %v2962
        %v2964 = vpop.f32.mrb[0].mxu0
        %v2965 = vpop.f32.mrb[0].mxu0
        %v2966 = vadd.f32 %v2909, %v2965
        %v2967 = vpop.f32.mrb[0].mxu0
        %2968 = vmatprep.mubr.bf16.mxu0 0
        %2969 = vmatmul.mubr.bf16.gmra.mrb[0].mxu0 %v2926
        %v2970 = vpop.f32.mrb[0].mxu0
        %v2971 = vadd.f32 %v2909, %v2970
        %v2972 = vpop.f32.mrb[0].mxu0
        %v2973 = vpop.f32.mrb[0].mxu0
        %v2974 = vpop.f32.mrb[0].mxu0
        %2975 = vdwg.mxu0
        %v2976 = vadd.f32 %v2059, %v2963
        %v2977 = vadd.f32 %v2060, %v2966
        %v2978 = vadd.f32 %v2061, %v2971
        %v2979 = vld [vmem:[%s13 + $0x1] sm:$0x1]
        %v2980 = vld [vmem:[%s14 + $0x1] sm:$0x1]
        %v2981 = vsel %vm826, %v2976, 0.0
        %2982 = vadd.xlane.f32.xlu0 %v2981
        %v2983 = vpop.xlane.xlu0 %2982
        %v2984 = vsel %vm826, %v2977, 0.0
        %2985 = vadd.xlane.f32.xlu0 %v2984
        %v2986 = vpop.xlane.xlu0 %2985
        %v2987 = vsel %vm833, %v2978, 0.0
        %2988 = vadd.xlane.f32.xlu0 %v2987
        %v2989 = vpop.xlane.xlu0 %2988
        %v2990 = vmul.f32 %v2983, %v837
        %v2991 = vmul.f32 %v2986, %v837
        %v2992 = vmul.f32 %v2989, %v837
        %v2993 = vsub.f32 %v2976, %v2990
        %v2994 = vsub.f32 %v2977, %v2991
        %v2995 = vsub.f32 %v2978, %v2992
        %v2996 = vmul.f32 %v2993, %v2993
        %v2997 = vmul.f32 %v2994, %v2994
        %v2998 = vmul.f32 %v2995, %v2995
        %v2999 = vsel %vm826, %v2996, 0.0
        %3000 = vadd.xlane.f32.xlu0 %v2999
        %v3001 = vpop.xlane.xlu0 %3000
        %v3002 = vsel %vm826, %v2997, 0.0
        %3003 = vadd.xlane.f32.xlu0 %v3002
        %v3004 = vpop.xlane.xlu0 %3003
        %v3005 = vsel %vm833, %v2998, 0.0
        %3006 = vadd.xlane.f32.xlu0 %v3005
        %v3007 = vpop.xlane.xlu0 %3006
        %v3008 = vmul.f32 %v3001, %v837
        %v3009 = vmul.f32 %v3004, %v837
        %v3010 = vmul.f32 %v3007, %v837
        %v3011 = vadd.f32 %v3008, 1e-05
        %v3012 = vadd.f32 %v3009, 1e-05
        %v3013 = vadd.f32 %v3010, 1e-05
        %v3014 = vrsqrt.pop %v3011
        %v3015 = vrsqrt.pop %v3012
        %v3016 = vrsqrt.pop %v3013
        %v3017 = vmul.f32 %v2993, %v3014
        %v3018 = vmul.f32 %v2994, %v3015
        %v3019 = vmul.f32 %v2995, %v3016
        %v3020 = vlaneseq
        %v3021 = vshrl.u32 %v3020, 7
        %v3022 = vsub.s32 0, %v3021
        %v3023 = vrot.slane %v2979, %v3022
        %v3024 = vmul.f32 %v3017, %v3023
        %v3025 = vmul.f32 %v3018, %v3023
        %v3026 = vmul.f32 %v3019, %v3023
        %v3027 = vlaneseq
        %v3028 = vshrl.u32 %v3027, 7
        %v3029 = vsub.s32 0, %v3028
        %v3030 = vrot.slane %v2980, %v3029
        %v3031 = vadd.f32 %v3024, %v3030
        %v3032 = vadd.f32 %v3025, %v3030
        %v3033 = vadd.f32 %v3026, %v3030
        %v3034 = vpack.c.bf16 %v3032, %v3031
        %v3035 = vpack.c.bf16 %v3033, %v3033
        %v3036 = vld [vmem:[%s15 + $0x10] sm:$0xf]
        %v3037 = vld [vmem:[%s15 + $0x14] sm:$0xf]
        %v3038 = vld [vmem:[%s15 + $0x18] sm:$0xf]
        %v3039 = vld [vmem:[%s15 + $0x1c] sm:$0xf]
        %v3040 = vld [vmem:[%s16 + $0x1] sm:$0x1]
        %v3041 = vlaneseq
        %v3042 = vshrl.u32 %v3041, 7
        %v3043 = vsub.s32 0, %v3042
        %v3044 = vrot.slane %v3040, %v3043
        %v3049 = vunpack.c.l.b16 %v3036
        %v3050 = vunpack.c.l.b16 %v3037
        %v3051 = vunpack.c.l.b16 %v3038
        %v3052 = vunpack.c.l.b16 %v3039
        %v3053 = vpack.c.b16 %v3050, %v3049
        %v3054 = vpack.c.b16 %v3052, %v3051
        %v3058 = vsel %vm826, %v3034, 0
        %v3061 = vsel %vm826, %v3035, 0
        %3063 = vmatprep.subr.bf16.mxu0 0
        %3064 = vmatpush1.bf16.msra.mxu0 %v3053
        %3065 = vmatprep.subr.bf16.mxu0 0
        %3066 = vmatpush1.bf16.msra.mxu0 %v3054
        %3067 = vmatprep.subr.bf16.mxu0 0
        %3068 = vmatpush1.bf16.msra.mxu0 0
        %3069 = vmatprep.subr.bf16.mxu0 0
        %3070 = vmatpush1.bf16.msra.mxu0 0
        %3071 = vmatprep.subr.bf16.mxu0 0
        %3072 = vmatpush1.bf16.msra.mxu0 0
        %3073 = vmatprep.subr.bf16.mxu0 0
        %3074 = vmatpush1.bf16.msra.mxu0 0
        %3075 = vmatprep.subr.bf16.mxu0 0
        %3076 = vmatpush1.bf16.msra.mxu0 0
        %3077 = vmatprep.subr.bf16.mxu0 0
        %3078 = vmatpush1.bf16.msra.mxu0 0
        %3079 = vmatprep.subr.bf16.mxu0 0
        %3080 = vmatpush1.bf16.msra.mxu0 0
        %3081 = vmatprep.subr.bf16.mxu0 0
        %3082 = vmatpush1.bf16.msra.mxu0 0
        %3083 = vmatprep.subr.bf16.mxu0 0
        %3084 = vmatpush1.bf16.msra.mxu0 0
        %3085 = vmatprep.subr.bf16.mxu0 0
        %3086 = vmatpush1.bf16.msra.mxu0 0
        %3087 = vmatprep.subr.bf16.mxu0 0
        %3088 = vmatpush1.bf16.msra.mxu0 0
        %3089 = vmatprep.subr.bf16.mxu0 0
        %3090 = vmatpush1.bf16.msra.mxu0 0
        %3091 = vmatprep.subr.bf16.mxu0 0
        %3092 = vmatpush1.bf16.msra.mxu0 0
        %3093 = vmatprep.subr.bf16.mxu0 0
        %3094 = vmatpush1.bf16.msra.mxu0 0
        %3095 = vmatprep.mubr.bf16.mxu0 0
        %3096 = vmatmul.mubr.bf16.gmra.mrb[0].mxu0 %v3058
        %v3097 = vpop.f32.mrb[0].mxu0
        %v3098 = vadd.f32 %v3044, %v3097
        %v3099 = vpop.f32.mrb[0].mxu0
        %v3100 = vpop.f32.mrb[0].mxu0
        %v3101 = vadd.f32 %v3044, %v3100
        %v3102 = vpop.f32.mrb[0].mxu0
        %3103 = vmatprep.mubr.bf16.mxu0 0
        %3104 = vmatmul.mubr.bf16.gmra.mrb[0].mxu0 %v3061
        %v3105 = vpop.f32.mrb[0].mxu0
        %v3106 = vadd.f32 %v3044, %v3105
        %v3107 = vpop.f32.mrb[0].mxu0
        %v3108 = vpop.f32.mrb[0].mxu0
        %v3109 = vpop.f32.mrb[0].mxu0
        %3110 = vdwg.mxu0
        %v3111 = vmul.f32 %v3098, 1.702
        %v3112 = vmul.f32 %v3101, 1.702
        %v3113 = vmul.f32 %v3106, 1.702
        %v3114 = vxor.u32 %v3111, 2147483648
        %v3115 = vxor.u32 %v3112, 2147483648
        %v3116 = vxor.u32 %v3113, 2147483648
        %v3117 = vmul.f32 %v3114, 1.442695
        %v3118 = vpow.pop %v3117
        %v3119 = vmul.f32 %v3115, 1.442695
        %v3120 = vpow.pop %v3119
        %v3121 = vmul.f32 %v3116, 1.442695
        %v3122 = vpow.pop %v3121
        %v3123 = vadd.f32 %v3118, 1.0
        %v3124 = vadd.f32 %v3120, 1.0
        %v3125 = vadd.f32 %v3122, 1.0
        %v3126 = vrcp.pop %v3123
        %v3127 = vmul.f32 1.0, %v3126
        %v3128 = vrcp.pop %v3124
        %v3129 = vmul.f32 1.0, %v3128
        %v3130 = vrcp.pop %v3125
        %v3131 = vmul.f32 1.0, %v3130
        %v3132 = vmul.f32 %v3098, %v3127
        %v3133 = vmul.f32 %v3101, %v3129
        %v3134 = vmul.f32 %v3106, %v3131
        %v3135 = vpack.c.bf16 %v3133, %v3132
        %v3136 = vpack.c.bf16 %v3134, %v3134
        %v3137 = vld [vmem:[%s17 + $0x20] sm:$0xf]
        %v3138 = vld [vmem:[%s17 + $0x24] sm:$0xf]
        %v3139 = vld [vmem:[%s17 + $0x28] sm:$0xf]
        %v3140 = vld [vmem:[%s17 + $0x2c] sm:$0xf]
        %v3141 = vld [vmem:[%s17 + $0x30] sm:$0xf]
        %v3142 = vld [vmem:[%s17 + $0x34] sm:$0xf]
        %v3143 = vld [vmem:[%s17 + $0x38] sm:$0xf]
        %v3144 = vld [vmem:[%s17 + $0x3c] sm:$0xf]
        %v3145 = vld [vmem:[%s18 + $0x1] sm:$0x1]
        %v3146 = vlaneseq
        %v3147 = vshrl.u32 %v3146, 7
        %v3148 = vsub.s32 0, %v3147
        %v3149 = vrot.slane %v3145, %v3148
        %v3158 = vunpack.c.l.b16 %v3137
        %v3159 = vunpack.c.l.b16 %v3138
        %v3160 = vunpack.c.l.b16 %v3139
        %v3161 = vunpack.c.l.b16 %v3140
        %v3162 = vunpack.c.l.b16 %v3141
        %v3163 = vunpack.c.l.b16 %v3142
        %v3164 = vunpack.c.l.b16 %v3143
        %v3165 = vunpack.c.l.b16 %v3144
        %v3166 = vpack.c.b16 %v3159, %v3158
        %v3167 = vpack.c.b16 %v3161, %v3160
        %v3168 = vpack.c.b16 %v3163, %v3162
        %v3169 = vpack.c.b16 %v3165, %v3164
        %v3175 = vsel %vm764, %v3135, 0
        %v3178 = vsel %vm764, %v3136, 0
        %3180 = vmatprep.subr.bf16.mxu0 0
        %3181 = vmatpush1.bf16.msra.mxu0 %v3166
        %3182 = vmatprep.subr.bf16.mxu0 0
        %3183 = vmatpush1.bf16.msra.mxu0 %v3167
        %3184 = vmatprep.subr.bf16.mxu0 0
        %3185 = vmatpush1.bf16.msra.mxu0 %v3168
        %3186 = vmatprep.subr.bf16.mxu0 0
        %3187 = vmatpush1.bf16.msra.mxu0 %v3169
        %3188 = vmatprep.subr.bf16.mxu0 0
        %3189 = vmatpush1.bf16.msra.mxu0 0
        %3190 = vmatprep.subr.bf16.mxu0 0
        %3191 = vmatpush1.bf16.msra.mxu0 0
        %3192 = vmatprep.subr.bf16.mxu0 0
        %3193 = vmatpush1.bf16.msra.mxu0 0
        %3194 = vmatprep.subr.bf16.mxu0 0
        %3195 = vmatpush1.bf16.msra.mxu0 0
        %3196 = vmatprep.subr.bf16.mxu0 0
        %3197 = vmatpush1.bf16.msra.mxu0 0
        %3198 = vmatprep.subr.bf16.mxu0 0
        %3199 = vmatpush1.bf16.msra.mxu0 0
        %3200 = vmatprep.subr.bf16.mxu0 0
        %3201 = vmatpush1.bf16.msra.mxu0 0
        %3202 = vmatprep.subr.bf16.mxu0 0
        %3203 = vmatpush1.bf16.msra.mxu0 0
        %3204 = vmatprep.subr.bf16.mxu0 0
        %3205 = vmatpush1.bf16.msra.mxu0 0
        %3206 = vmatprep.subr.bf16.mxu0 0
        %3207 = vmatpush1.bf16.msra.mxu0 0
        %3208 = vmatprep.subr.bf16.mxu0 0
        %3209 = vmatpush1.bf16.msra.mxu0 0
        %3210 = vmatprep.subr.bf16.mxu0 0
        %3211 = vmatpush1.bf16.msra.mxu0 0
        %3212 = vmatprep.mubr.bf16.mxu0 0
        %3213 = vmatmul.mubr.bf16.gmra.mrb[0].mxu0 %v3175
        %v3214 = vpop.f32.mrb[0].mxu0
        %v3215 = vadd.f32 %v3149, %v3214
        %v3216 = vpop.f32.mrb[0].mxu0
        %v3217 = vpop.f32.mrb[0].mxu0
        %v3218 = vpop.f32.mrb[0].mxu0
        %3219 = vmatprep.mubr.bf16.mxu0 0
        %3220 = vmatmul.mubr.bf16.gmra.mrb[0].mxu0 %v3178
        %v3221 = vpop.f32.mrb[0].mxu0
        %v3222 = vpop.f32.mrb[0].mxu0
        %v3223 = vpop.f32.mrb[0].mxu0
        %v3224 = vpop.f32.mrb[0].mxu0
        %3225 = vdwg.mxu0
        %v3226 = vadd.f32 %v2976, %v3215
        %v3227 = vld [vmem:[%s19] sm:$0x1]
        %v3228 = vld [vmem:[%s20] sm:$0x1]
        %v3229 = vsel %vm833, %v3226, 0.0
        %3230 = vadd.xlane.f32.xlu0 %v3229
        %v3231 = vpop.xlane.xlu0 %3230
        %v3232 = vmul.f32 %v3231, %v837
        %v3233 = vsub.f32 %v3226, %v3232
        %v3234 = vmul.f32 %v3233, %v3233
        %v3235 = vsel %vm833, %v3234, 0.0
        %3236 = vadd.xlane.f32.xlu0 %v3235
        %v3237 = vpop.xlane.xlu0 %3236
        %v3238 = vmul.f32 %v3237, %v837
        %v3239 = vadd.f32 %v3238, 1e-05
        %v3240 = vrsqrt.pop %v3239
        %v3241 = vmul.f32 %v3233, %v3240
        %v3242 = vmul.f32 %v3241, %v3227
        %v3243 = vadd.f32 %v3242, %v3228
        %3244 = vst.msk [vmem:[%s648] sm:$0x1] %vm833, %v3243
        %s3245 = sand.u32 %s489, 1
        %s3246 = scalar_lea.sflag [#allocation3], %s3245
        %s3247 = sand.u32 %s489, 1
        %s3248 = scalar_lea.vmem [#allocation2], %s3247
        // Predicated region
        $region105: #{semantic_network_forward.1} parent=103 // pred_check
          %p3249 = pneg %p499
        $region106: #{semantic_network_forward.1} parent=103 // pred_check_branch
          %3251 = sbr.rel (%p3249) target = $region108
        $region107: #{semantic_network_forward.1} parent=103 // pred_region
          %s3253 = ssub.s32 16, 16
          %3254 = vsyncadd %s3246, %s3253
          %s3255 = smul.addr %s35, 16
          %s3256 = scalar_lea.hbm %s21, %s3255
          %s3258 = sshll.u32 %s3248, 4
          %s3259 = int_to_ptr.vmem [resolvable:$true] %s3258
          %3261 = dma.vmem_to_hbm [thread:$0]  %s3259, 16, %s3256, %s3246
        $region108: #{semantic_network_forward.1} parent=103 // pred_fallthru
          _
      $region104: #{semantic_network_forward.1} parent=5 // pred_fallthru
        _
      %p3262 = scmp.le.s32.totalorder 2, %s30
      // Predicated region
      $region109: #{semantic_network_forward.1} parent=5 // pred_check
        %p3263 = pneg %p3262
      $region110: #{semantic_network_forward.1} parent=5 // pred_check_branch
        %3265 = sbr.rel (%p3263) target = $region112
      $region111: #{semantic_network_forward.1} parent=5 // pred_region
        %s3266 = ssub.s32 %s30, 2
        // Predicated region
        $region113: #{semantic_network_forward.1} parent=111 // pred_check
          %p3267 = pneg %p505
        $region114: #{semantic_network_forward.1} parent=111 // pred_check_branch
          %3269 = sbr.rel (%p3267) target = $region116
        $region115: #{semantic_network_forward.1} parent=111 // pred_region
          %s3270 = sand.u32 %s490, 1
          %s3271 = scalar_lea.sflag [#allocation3], %s3270
          %s3272 = sand.u32 %s490, 1
          %s3273 = scalar_lea.vmem [#allocation2], %s3272
          %3274 = dma.done %s3271, 16
        $region116: #{semantic_network_forward.1} parent=111 // pred_fallthru
          _
      $region112: #{semantic_network_forward.1} parent=5 // pred_fallthru
        _
    $region6: #{semantic_network_forward.1} parent=1 // loop_footer
      %s34 = sadd.s32 1, %s30
    $region7: #{semantic_network_forward.1} parent=1 // loop_footer_branch
      %29 = sbr.rel target = $region3
    $region8: #{semantic_network_forward.1} parent=1 // loop_exit
      _
    %3275 = vsyncpa [#allocation3], 1
    %s3276 = scalar_lea.sflag [#allocation3], 1
    %3277 = vsyncpa %s3276, 1

</llo_original>
